<compile_context>
chip_gen: v5e
topology: v5e:2x2
jax: 0.10.0
libtpu: 0.0.40
codegen_flags: <defaults>
</compile_context>

<pallas_src>
import functools

import jax
import jax.numpy as jnp
from jax.experimental import pallas as pl
from jax.experimental.pallas import tpu as pltpu

EPS = 1e-5
LANE = 128
# Cap on the compiler's scoped-VMEM budget (not an allocation; per-block usage
# here is < 2 MiB).  64 MiB lets v5e/v6e double-buffer large row tiles while
# staying within v7x's 64 MiB physical VMEM.
VMEM_LIMIT = 64 * 1024 * 1024


# ------------------------------ small helpers -------------------------------

def _round_up(x, m):
    return ((x + m - 1) // m) * m


def _pick_tile(m):
    # Prefer the largest row tile that still yields >=2 blocks (v7x: 2 TCs).
    cands = (2048, 1024, 512, 256, 128, 64, 32, 16, 8)
    for t in cands:
        if m % t == 0 and m // t >= 2:
            return t
    for t in cands:
        if m % t == 0:
            return t
    return m


def _params(grid_len=1):
    return pltpu.CompilerParams(dimension_semantics=("parallel",) * grid_len,
                                vmem_limit_bytes=VMEM_LIMIT)


def _store_stats(st_ref, y):
    # Per-block BN partial statistics from the f32 accumulator:
    # two direct row stores (row 0 = column sum, row 1 = column sum of squares).
    st_ref[0, pl.ds(0, 1), :] = jnp.sum(y, axis=0, keepdims=True)
    st_ref[0, pl.ds(1, 1), :] = jnp.sum(y * y, axis=0, keepdims=True)


# --------------------------- Pallas kernel bodies ---------------------------

def _mm_stats_kernel(a_ref, w_ref, y_ref, st_ref):
    # 1x1 conv: (tm,K)@(K,C) on the MXU, bf16 operands, f32 accumulation.
    y = jnp.dot(a_ref[...], w_ref[...], preferred_element_type=jnp.float32)
    y_ref[...] = y.astype(y_ref.dtype)
    _store_stats(st_ref, y)


def _mm_bnrelu_stats_kernel(a_ref, w_ref, sc_ref, bi_ref, y_ref, st_ref):
    # Fused BN-apply + ReLU prologue of the previous layer, then the matmul.
    a = jnp.maximum(a_ref[...].astype(jnp.float32) * sc_ref[...] + bi_ref[...], 0.0)
    y = jnp.dot(a.astype(jnp.bfloat16), w_ref[...],
                preferred_element_type=jnp.float32)
    y_ref[...] = y.astype(y_ref.dtype)
    _store_stats(st_ref, y)


def _conv3x3_direct_kernel(y1_ref, w_ref, sc_ref, bi_ref, y_ref, st_ref,
                           act_ref, *, h, w):
    # stride == 1 path: BN1+ReLU prologue written into a zero-halo VMEM scratch
    # (true zero padding AFTER ReLU), then 3x3 conv = 9 accumulated MXU matmuls
    # over unit-stride slices; accumulation stays in registers (single store).
    c2 = y_ref.shape[-1]
    # Re-zero every block so the halo is correct on both megacore TensorCores.
    act_ref[...] = jnp.zeros_like(act_ref)
    a = jnp.maximum(y1_ref[0].astype(jnp.float32) * sc_ref[...] + bi_ref[...], 0.0)
    act_ref[pl.ds(1, h), pl.ds(1, w), :] = a
    acc = None
    for ky in range(3):
        for kx in range(3):
            tap = act_ref[pl.ds(ky, h), pl.ds(kx, w), :]
            part = jnp.dot(tap.reshape(h * w, tap.shape[-1]).astype(jnp.bfloat16),
                           w_ref[3 * ky + kx], preferred_element_type=jnp.float32)
            acc = part if acc is None else acc + part
    y_ref[...] = acc.reshape(1, h, w, c2).astype(y_ref.dtype)
    _store_stats(st_ref, acc)


def _conv3x3_phases_kernel(ph_ref, w_ref, y_ref, st_ref, *, stride, ho, wo):
    # stride > 1 path: stride-phase ("space-to-depth") decomposition of the
    # zero-padded post-BN1-ReLU activation; 9 register-accumulated matmuls.
    s = stride
    c2 = y_ref.shape[-1]
    acc = None
    for ky in range(3):
        for kx in range(3):
            tap = ph_ref[(ky % s) * s + (kx % s),
                         pl.ds(ky // s, ho), pl.ds(kx // s, wo), :]
            part = jnp.dot(tap.reshape(ho * wo, tap.shape[-1]),
                           w_ref[3 * ky + kx], preferred_element_type=jnp.float32)
            acc = part if acc is None else acc + part
    y_ref[...] = acc.reshape(1, ho, wo, c2).astype(y_ref.dtype)
    _store_stats(st_ref, acc)


def _fuse_proj_kernel(y_ref, r_ref, sy_ref, by_ref, sr_ref, br_ref, o_ref):
    # BN(main) + BN(projection shortcut) + residual add + ReLU.
    y = y_ref[...].astype(jnp.float32) * sy_ref[...] + by_ref[...]
    r = r_ref[...].astype(jnp.float32) * sr_ref[...] + br_ref[...]
    o_ref[...] = jnp.maximum(y + r, 0.0)


def _fuse_identity_kernel(y_ref, r_ref, sy_ref, by_ref, o_ref):
    # BN(main) + identity residual + ReLU (no useless shortcut scale/bias).
    y = y_ref[...].astype(jnp.float32) * sy_ref[...] + by_ref[...]
    o_ref[...] = jnp.maximum(y + r_ref[...].astype(jnp.float32), 0.0)


# ---------------------------- pallas_call wrappers ---------------------------

def matmul_stats(a, w_bf16, scale=None, bias=None):
    """1x1-conv matmul with optional fused BN+ReLU prologue.
    Returns (y bf16 (M,C), per-block stats (nblk, 2, C) f32)."""
    m, k = a.shape
    c = w_bf16.shape[1]
    tm = _pick_tile(m)
    nblk = m // tm
    a_spec = pl.BlockSpec((tm, k), lambda i: (i, 0))
    w_spec = pl.BlockSpec((k, c), lambda i: (0, 0))
    vec_spec = pl.BlockSpec((1, k), lambda i: (0, 0))
    if scale is None:
        kern, in_specs, args = _mm_stats_kernel, [a_spec, w_spec], (a, w_bf16)
    else:
        kern = _mm_bnrelu_stats_kernel
        in_specs = [a_spec, w_spec, vec_spec, vec_spec]
        args = (a, w_bf16, scale, bias)
    return pl.pallas_call(
        kern,
        out_shape=(jax.ShapeDtypeStruct((m, c), jnp.bfloat16),
                   jax.ShapeDtypeStruct((nblk, 2, c), jnp.float32)),
        grid=(nblk,),
        in_specs=in_specs,
        out_specs=(pl.BlockSpec((tm, c), lambda i: (i, 0)),
                   pl.BlockSpec((1, 2, c), lambda i: (i, 0, 0))),
        compiler_params=_params(),
    )(*args)


def conv3x3_direct(y1_img, w2, scale, bias, *, col_block):
    """stride==1 3x3 conv reading the conv1 output directly (no phase pass)."""
    n, h, w, _ = y1_img.shape
    c1, c2 = w2.shape[1], w2.shape[2]
    wpad = _round_up(w + 2, 8)
    kern = functools.partial(_conv3x3_direct_kernel, h=h, w=w)
    # TODO(synk): at real ResNet spatial sizes add a second "parallel" grid axis
    # over output-row tiles (halo read) so both v7x TCs stay busy at batch 1 and
    # the act scratch stays small.
    return pl.pallas_call(
        kern,
        out_shape=(jax.ShapeDtypeStruct((n, h, w, c2), jnp.bfloat16),
                   jax.ShapeDtypeStruct((n, 2, c2), jnp.float32)),
        grid=(n,),
        in_specs=[pl.BlockSpec((1, h, w, c1), lambda i: (i, 0, 0, col_block)),
                  pl.BlockSpec((9, c1, c2), lambda i: (0, 0, 0)),
                  pl.BlockSpec((1, c1), lambda i: (0, 0)),
                  pl.BlockSpec((1, c1), lambda i: (0, 0))],
        out_specs=(pl.BlockSpec((1, h, w, c2), lambda i: (i, 0, 0, 0)),
                   pl.BlockSpec((1, 2, c2), lambda i: (i, 0, 0))),
        scratch_shapes=[pltpu.VMEM((h + 2, wpad, c1), jnp.float32)],
        compiler_params=_params(),
    )(y1_img, w2, scale, bias)


def conv3x3_phases(phases, w2, *, n, stride, ho, wo):
    """stride>1 3x3 conv over the pre-split stride phases."""
    ss = stride * stride
    hq, wq, c1 = phases.shape[1], phases.shape[2], phases.shape[3]
    c2 = w2.shape[-1]
    kern = functools.partial(_conv3x3_phases_kernel, stride=stride, ho=ho, wo=wo)
    return pl.pallas_call(
        kern,
        out_shape=(jax.ShapeDtypeStruct((n, ho, wo, c2), jnp.bfloat16),
                   jax.ShapeDtypeStruct((n, 2, c2), jnp.float32)),
        grid=(n,),
        in_specs=[pl.BlockSpec((ss, hq, wq, c1), lambda i: (i, 0, 0, 0)),
                  pl.BlockSpec((9, c1, c2), lambda i: (0, 0, 0))],
        out_specs=(pl.BlockSpec((1, ho, wo, c2), lambda i: (i, 0, 0, 0)),
                   pl.BlockSpec((1, 2, c2), lambda i: (i, 0, 0))),
        compiler_params=_params(),
    )(phases, w2)


def fuse_proj(y, r, sy, by, sr, br):
    m, c = y.shape
    tm = _pick_tile(m)
    row = pl.BlockSpec((tm, c), lambda i: (i, 0))
    vec = pl.BlockSpec((1, c), lambda i: (0, 0))
    return pl.pallas_call(
        _fuse_proj_kernel,
        out_shape=jax.ShapeDtypeStruct((m, c), jnp.float32),
        grid=(m // tm,),
        in_specs=[row, row, vec, vec, vec, vec],
        out_specs=row,
        compiler_params=_params(),
    )(y, r, sy, by, sr, br)


def fuse_identity(y, r, sy, by):
    m, c = y.shape
    tm = _pick_tile(m)
    row = pl.BlockSpec((tm, c), lambda i: (i, 0))
    vec = pl.BlockSpec((1, c), lambda i: (0, 0))
    return pl.pallas_call(
        _fuse_identity_kernel,
        out_shape=jax.ShapeDtypeStruct((m, c), jnp.float32),
        grid=(m // tm,),
        in_specs=[row, row, vec, vec],
        out_specs=row,
        compiler_params=_params(),
    )(y, r, sy, by)


# ------------------------------- JAX glue -----------------------------------

def fold_bn(stats, gamma_p, beta_p, count):
    # TODO(synk): the tiny cross-block reduction ((blocks,C)->(C,)) and the
    # per-channel scale/bias fold stay in plain JAX; all per-element work
    # (sums, sums of squares, apply) happens inside the Pallas kernels.
    total = jnp.sum(stats[:, 0, :], axis=0)
    total_sq = jnp.sum(stats[:, 1, :], axis=0)
    mean = total / count
    var = jnp.maximum(total_sq / count - mean * mean, 0.0)   # biased (training)
    scale = gamma_p * jax.lax.rsqrt(var + EPS)
    bias = beta_p - mean * scale
    c = gamma_p.shape[0]
    return scale.reshape(1, c), bias.reshape(1, c)


def make_phases(act, stride):
    """Zero-pad the post-BN1-ReLU activation and split into stride*stride
    phases: (N,H,W,C) -> (N*s*s, Hq, Wq, C).  Only used when stride > 1."""
    n, h, w, c = act.shape
    s = stride
    hp, wp = h + 2, w + 2
    hq, wq = -(-hp // s), -(-wp // s)
    xp = jnp.pad(act, ((0, 0), (1, hq * s - h - 1), (1, wq * s - w - 1), (0, 0)))
    ph = xp.reshape(n, hq, s, wq, s, c).transpose(0, 2, 4, 1, 3, 5)
    return ph.reshape(n * s * s, hq, wq, c)


def _pad_mat(mat, rows, cols):
    out = jnp.zeros((rows, cols), jnp.float32)
    return out.at[:mat.shape[0], :mat.shape[1]].set(mat)


def _pad_vec(v, n):
    return jnp.zeros((n,), jnp.float32).at[:v.shape[0]].set(v)


def prepare_params(params, stride):
    """One-time weight repack: transposed to (in,out), 128-padded, bf16."""
    cmid, cin = params["w1"].shape[0], params["w1"].shape[1]
    cout = params["w3"].shape[0]
    cin_p, cmid_p, cout_p = (_round_up(c, LANE) for c in (cin, cmid, cout))
    w1 = _pad_mat(params["w1"][:, :, 0, 0].T, cin_p, cmid_p)
    prep = {
        "w1": w1.astype(jnp.bfloat16),
        "w3": _pad_mat(params["w3"][:, :, 0, 0].T, cmid_p, cout_p).astype(jnp.bfloat16),
        "g1": _pad_vec(params["g1"], cmid_p), "b1": _pad_vec(params["b1"], cmid_p),
        "g2": _pad_vec(params["g2"], cmid_p), "b2": _pad_vec(params["b2"], cmid_p),
        "g3": _pad_vec(params["g3"], cout_p), "b3": _pad_vec(params["b3"], cout_p),
    }
    taps = [_pad_mat(params["w2"][:, :, ky, kx].T, cmid_p, cmid_p)
            for ky in range(3) for kx in range(3)]
    prep["w2"] = jnp.stack(taps, axis=0).astype(jnp.bfloat16)
    has_proj = stride != 1 or cin != cout
    if has_proj:
        ws = _pad_mat(params["ws"][:, :, 0, 0].T, cin_p, cout_p)
        prep["ws"] = ws.astype(jnp.bfloat16)
        prep["gs"] = _pad_vec(params["gs"], cout_p)
        prep["bs"] = _pad_vec(params["bs"], cout_p)
        if stride == 1 and cout_p % cmid_p == 0:
            # Fused conv1 + projection-shortcut weight: [ws | w1].
            prep["wsw1"] = jnp.concatenate([ws, w1], axis=1).astype(jnp.bfloat16)
    dims = (cin, cmid, cout, cin_p, cmid_p, cout_p)
    return prep, dims


def bottleneck_forward(x_nchw, prep, dims, stride):
    cin, cmid, cout, cin_p, cmid_p, cout_p = dims
    n, _, h, w = x_nchw.shape
    ho = (h - 1) // stride + 1
    wo = (w - 1) // stride + 1
    has_proj = (stride != 1) or (cin != cout)
    fused_proj = has_proj and stride == 1 and cout_p % cmid_p == 0

    # NHWC, lane-pad channels, cast bf16 (one fused XLA ingress pass).
    x_nhwc = jnp.transpose(x_nchw, (0, 2, 3, 1))
    x_p = jnp.pad(x_nhwc, ((0, 0), (0, 0), (0, 0),
                           (0, cin_p - cin))).astype(jnp.bfloat16)
    x2d = x_p.reshape(n * h * w, cin_p)

    # conv1 (1x1) [+ projection shortcut fused when stride==1]: x read once.
    if fused_proj:
        y1s, st1s = matmul_stats(x2d, prep["wsw1"])          # (M, cout_p+cmid_p)
        s1, b1 = fold_bn(st1s[:, :, cout_p:], prep["g1"], prep["b1"], n * h * w)
        sr, br = fold_bn(st1s[:, :, :cout_p], prep["gs"], prep["bs"], n * h * w)
        y1_img = y1s.reshape(n, h, w, cout_p + cmid_p)
        col_block = cout_p // cmid_p
    else:
        y1, st1 = matmul_stats(x2d, prep["w1"])
        s1, b1 = fold_bn(st1, prep["g1"], prep["b1"], n * h * w)
        y1_img = y1.reshape(n, h, w, cmid_p)
        col_block = 0

    # conv2 (3x3, pad 1) with fused BN1+ReLU prologue + in-kernel BN2 stats.
    if stride == 1:
        y2, st2 = conv3x3_direct(y1_img, prep["w2"], s1, b1, col_block=col_block)
    else:
        # TODO(synk): for stride>1 the BN1+ReLU + zero-pad + phase split is one
        # extra fused XLA pass over a downsample-bound activation; it could be
        # moved in-kernel (halo masks / strided slices) to save that HBM pass.
        act = jnp.maximum(
            y1_img.astype(jnp.float32) * s1.reshape(1, 1, 1, -1)
            + b1.reshape(1, 1, 1, -1), 0.0).astype(jnp.bfloat16)
        phases = make_phases(act, stride)
        y2, st2 = conv3x3_phases(phases, prep["w2"], n=n, stride=stride,
                                 ho=ho, wo=wo)
    s2, b2 = fold_bn(st2, prep["g2"], prep["b2"], n * ho * wo)

    # conv3 (1x1 expansion) with fused BN2+ReLU prologue + BN3 stats.
    y3, st3 = matmul_stats(y2.reshape(n * ho * wo, cmid_p), prep["w3"],
                           scale=s2, bias=b2)
    s3, b3 = fold_bn(st3, prep["g3"], prep["b3"], n * ho * wo)

    # fused BN3(main) + shortcut BN / identity + residual add + ReLU.
    if has_proj:
        if fused_proj:
            out2d = fuse_proj(y3, y1s, s3, b3, sr, br)   # shortcut = cols [0:cout_p]
        else:
            xs2d = x_p[:, ::stride, ::stride, :].reshape(n * ho * wo, cin_p)
            yr, sts = matmul_stats(xs2d, prep["ws"])
            sr, br = fold_bn(sts, prep["gs"], prep["bs"], n * ho * wo)
            out2d = fuse_proj(y3, yr, s3, b3, sr, br)
    else:
        out2d = fuse_identity(y3, x2d, s3, b3)
    out = out2d.reshape(n, ho, wo, cout_p)[..., :cout]
    return jnp.transpose(out, (0, 3, 1, 2))


# --------------------------- pure-JAX reference ------------------------------

def reference_forward(x, params, stride):
    def conv(x, w, s, pad):
        return jax.lax.conv_general_dilated(
            x, w, (s, s), ((pad, pad), (pad, pad)),
            dimension_numbers=("NCHW", "OIHW", "NCHW"),
            precision=jax.lax.Precision.HIGHEST)

    def bn(y, g, b):
        mean = jnp.mean(y, axis=(0, 2, 3), keepdims=True)
        var = jnp.mean((y - mean) ** 2, axis=(0, 2, 3), keepdims=True)
        return (g.reshape(1, -1, 1, 1) * (y - mean) /
                jnp.sqrt(var + EPS) + b.reshape(1, -1, 1, 1))

    y = jnp.maximum(bn(conv(x, params["w1"], 1, 0), params["g1"], params["b1"]), 0.0)
    y = jnp.maximum(bn(conv(y, params["w2"], stride, 1), params["g2"], params["b2"]), 0.0)
    y = bn(conv(y, params["w3"], 1, 0), params["g3"], params["b3"])
    cin, cout = x.shape[1], params["w3"].shape[0]
    if stride != 1 or cin != cout:
        r = bn(conv(x, params["ws"], stride, 0), params["gs"], params["bs"])
    else:
        r = x
    return jnp.maximum(y + r, 0.0)


# ----------------------------------- main ------------------------------------

def build_params(key, cin, mid, stride):
    cout = mid * 4
    ks = jax.random.split(key, 12)

    def gam(k, c):
        return 1.0 + 0.3 * jax.random.normal(k, (c,), jnp.float32)

    def bet(k, c):
        return 0.1 * jax.random.normal(k, (c,), jnp.float32)

    params = {
        "w1": jax.random.normal(ks[0], (mid, cin, 1, 1), jnp.float32) * 0.3,
        # Force one negative gamma: exercises the halo fix (zero pad AFTER
        # BN+ReLU) that the old NEG-padding trick could not handle.
        "g1": gam(ks[1], mid).at[0].set(-1.0),
        "b1": bet(ks[2], mid),
        "w2": jax.random.normal(ks[3], (mid, mid, 3, 3), jnp.float32) * 0.1,
        "g2": gam(ks[4], mid), "b2": bet(ks[5], mid),
        "w3": jax.random.normal(ks[6], (cout, mid, 1, 1), jnp.float32) * 0.2,
        "g3": gam(ks[7], cout), "b3": bet(ks[8], cout),
    }
    if stride != 1 or cin != cout:
        params["ws"] = jax.random.normal(ks[9], (cout, cin, 1, 1), jnp.float32) * 0.2
        params["gs"] = gam(ks[10], cout)
        params["bs"] = bet(ks[11], cout)
    return params


if __name__ == "__main__":
    configs = [
        ("stride2_projection", dict(n=2, cin=4, mid=8, h=16, w=16, stride=2)),
        ("stride1_projection", dict(n=2, cin=4, mid=8, h=16, w=16, stride=1)),
        ("stride1_identity",   dict(n=2, cin=32, mid=8, h=16, w=16, stride=1)),
    ]
    root = jax.random.PRNGKey(0)
    for idx, (name, cfg) in enumerate(configs):
        kx, kp = jax.random.split(jax.random.fold_in(root, idx))
        x = jax.random.normal(kx, (cfg["n"], cfg["cin"], cfg["h"], cfg["w"]),
                              jnp.float32)
        params = build_params(kp, cfg["cin"], cfg["mid"], cfg["stride"])
        prep, dims = prepare_params(params, cfg["stride"])
        fwd = jax.jit(functools.partial(bottleneck_forward, dims=dims,
                                        stride=cfg["stride"]))
        out = jax.block_until_ready(fwd(x, prep))
        ref = jax.block_until_ready(reference_forward(x, params, cfg["stride"]))
        cout = cfg["mid"] * 4
        ho = (cfg["h"] - 1) // cfg["stride"] + 1
        assert out.shape == ref.shape == (cfg["n"], cout, ho, ho), name
        max_diff = float(jnp.max(jnp.abs(out - ref)))
        # bf16 MXU operands + bf16 intermediates vs f32-HIGHEST reference.
        assert jnp.allclose(out, ref, rtol=5e-2, atol=5e-2), (
            "%s: max abs diff %e" % (name, max_diff))
    print("KERNEL_OK")
</pallas_src>

<mosaic_0001>
module attributes {stable_mosaic.version = 11 : i64} {
  func.func @_mm_stats_kernel(%arg0: i32, %arg1: memref<256x128xbf16, #tpu.memory_space<vmem>>, %arg2: memref<128x128xbf16, #tpu.memory_space<vmem>>, %arg3: memref<256x128xbf16, #tpu.memory_space<vmem>>, %arg4: memref<1x2x128xf32, #tpu.memory_space<vmem>>) attributes {dimension_semantics = [#tpu.dimension_semantics<parallel>], iteration_bounds = array<i64: 2>, scalar_prefetch = 0 : i64, scratch_operands = 0 : i64, tpu.core_type = #tpu.core_type<tc>, window_params = [{transform_indices = @transform_0, window_bounds = array<i64: 256, 128>}, {pipeline_mode = #tpu.pipeline_mode<synchronous>, transform_indices = @transform_1, window_bounds = array<i64: 128, 128>}, {transform_indices = @transform_2, window_bounds = array<i64: 256, 128>}, {transform_indices = @transform_3, window_bounds = array<i64: 1, 2, 128>}]} {
    %c0 = arith.constant 0 : index
    %c0_0 = arith.constant 0 : index
    %0 = vector.load %arg1[%c0, %c0_0] : memref<256x128xbf16, #tpu.memory_space<vmem>>, vector<256x128xbf16>
    %c0_1 = arith.constant 0 : index
    %c0_2 = arith.constant 0 : index
    %1 = vector.load %arg2[%c0_1, %c0_2] : memref<128x128xbf16, #tpu.memory_space<vmem>>, vector<128x128xbf16>
    %cst = arith.constant dense<0.000000e+00> : vector<256x128xf32>
    %2 = tpu.matmul %0, %1, %cst {dimension_numbers = #tpu.dot_dimension_numbers<[1], [0], [0], [1], [0, 0, 1, 1], [], []>} : vector<256x128xbf16>, vector<128x128xbf16>, vector<256x128xf32> -> vector<256x128xf32>
    %3 = arith.truncf %2 : vector<256x128xf32> to vector<256x128xbf16>
    %c0_3 = arith.constant 0 : index
    %c0_4 = arith.constant 0 : index
    %4 = vector.load %arg3[%c0_3, %c0_4] : memref<256x128xbf16, #tpu.memory_space<vmem>>, vector<256x128xbf16>
    tpu.vector_store %arg3[%c0_3, %c0_4], %3 {strides = array<i32>} : memref<256x128xbf16, #tpu.memory_space<vmem>>, vector<256x128xbf16>,
    %cst_5 = arith.constant dense<0.000000e+00> : vector<128xf32>
    %5 = vector.multi_reduction <add>, %2, %cst_5 [0] : vector<256x128xf32> to vector<128xf32>
    %6 = vector.shape_cast %5 : vector<128xf32> to vector<1x128xf32>
    %c0_6 = arith.constant 0 : index
    %c0_7 = arith.constant 0 : index
    %c0_8 = arith.constant 0 : index
    %7 = vector.load %arg4[%c0_6, %c0_7, %c0_8] : memref<1x2x128xf32, #tpu.memory_space<vmem>>, vector<1x1x128xf32>
    %8 = vector.shape_cast %7 : vector<1x1x128xf32> to vector<1x128xf32>
    %9 = vector.shape_cast %6 : vector<1x128xf32> to vector<1x1x128xf32>
    tpu.vector_store %arg4[%c0_6, %c0_7, %c0_8], %9 {strides = array<i32>} : memref<1x2x128xf32, #tpu.memory_space<vmem>>, vector<1x1x128xf32>,
    %10 = arith.mulf %2, %2 : vector<256x128xf32>
    %cst_9 = arith.constant dense<0.000000e+00> : vector<128xf32>
    %11 = vector.multi_reduction <add>, %10, %cst_9 [0] : vector<256x128xf32> to vector<128xf32>
    %12 = vector.shape_cast %11 : vector<128xf32> to vector<1x128xf32>
    %c0_10 = arith.constant 0 : index
    %c1 = arith.constant 1 : index
    %c0_11 = arith.constant 0 : index
    %13 = vector.load %arg4[%c0_10, %c1, %c0_11] : memref<1x2x128xf32, #tpu.memory_space<vmem>>, vector<1x1x128xf32>
    %14 = vector.shape_cast %13 : vector<1x1x128xf32> to vector<1x128xf32>
    %15 = vector.shape_cast %12 : vector<1x128xf32> to vector<1x1x128xf32>
    tpu.vector_store %arg4[%c0_10, %c1, %c0_11], %15 {strides = array<i32>} : memref<1x2x128xf32, #tpu.memory_space<vmem>>, vector<1x1x128xf32>,
    return
  }
  func.func @transform_0(%arg0: i32) -> (i32, i32) {
    %c0_i32 = arith.constant 0 : i32
    %c0_i32_0 = arith.constant 0 : i32
    return %arg0, %c0_i32 : i32, i32
  }
  func.func @transform_1(%arg0: i32) -> (i32, i32) {
    %c0_i32 = arith.constant 0 : i32
    %c0_i32_0 = arith.constant 0 : i32
    %c0_i32_1 = arith.constant 0 : i32
    return %c0_i32, %c0_i32_0 : i32, i32
  }
  func.func @transform_2(%arg0: i32) -> (i32, i32) {
    %c0_i32 = arith.constant 0 : i32
    %c0_i32_0 = arith.constant 0 : i32
    return %arg0, %c0_i32 : i32, i32
  }
  func.func @transform_3(%arg0: i32) -> (i32, i32, i32) {
    %c0_i32 = arith.constant 0 : i32
    %c0_i32_0 = arith.constant 0 : i32
    %c0_i32_1 = arith.constant 0 : i32
    return %arg0, %c0_i32, %c0_i32_0 : i32, i32, i32
  }
}

module attributes {stable_mosaic.version = 11 : i64} {
  func.func @_conv3x3_phases_kernel(%arg0: i32, %arg1: memref<4x9x9x128xbf16, #tpu.memory_space<vmem>>, %arg2: memref<9x128x128xbf16, #tpu.memory_space<vmem>>, %arg3: memref<1x8x8x128xbf16, #tpu.memory_space<vmem>>, %arg4: memref<1x2x128xf32, #tpu.memory_space<vmem>>) attributes {dimension_semantics = [#tpu.dimension_semantics<parallel>], iteration_bounds = array<i64: 2>, scalar_prefetch = 0 : i64, scratch_operands = 0 : i64, tpu.core_type = #tpu.core_type<tc>, window_params = [{transform_indices = @transform_0, window_bounds = array<i64: 4, 9, 9, 128>}, {pipeline_mode = #tpu.pipeline_mode<synchronous>, transform_indices = @transform_1, window_bounds = array<i64: 9, 128, 128>}, {transform_indices = @transform_2, window_bounds = array<i64: 1, 8, 8, 128>}, {transform_indices = @transform_3, window_bounds = array<i64: 1, 2, 128>}]} {
    %c0 = arith.constant 0 : index
    %c0_0 = arith.constant 0 : index
    %c0_1 = arith.constant 0 : index
    %c0_2 = arith.constant 0 : index
    %0 = vector.load %arg1[%c0, %c0_0, %c0_1, %c0_2] : memref<4x9x9x128xbf16, #tpu.memory_space<vmem>>, vector<1x8x8x128xbf16>
    %1 = vector.shape_cast %0 : vector<1x8x8x128xbf16> to vector<8x8x128xbf16>
    %2 = vector.shape_cast %1 : vector<8x8x128xbf16> to vector<64x128xbf16>
    %c0_3 = arith.constant 0 : index
    %c0_4 = arith.constant 0 : index
    %c0_5 = arith.constant 0 : index
    %3 = vector.load %arg2[%c0_3, %c0_4, %c0_5] : memref<9x128x128xbf16, #tpu.memory_space<vmem>>, vector<1x128x128xbf16>
    %4 = vector.shape_cast %3 : vector<1x128x128xbf16> to vector<128x128xbf16>
    %cst = arith.constant dense<0.000000e+00> : vector<64x128xf32>
    %5 = tpu.matmul %2, %4, %cst {dimension_numbers = #tpu.dot_dimension_numbers<[1], [0], [0], [1], [0, 0, 1, 1], [], []>} : vector<64x128xbf16>, vector<128x128xbf16>, vector<64x128xf32> -> vector<64x128xf32>
    %c1 = arith.constant 1 : index
    %c0_6 = arith.constant 0 : index
    %c0_7 = arith.constant 0 : index
    %c0_8 = arith.constant 0 : index
    %6 = vector.load %arg1[%c1, %c0_6, %c0_7, %c0_8] : memref<4x9x9x128xbf16, #tpu.memory_space<vmem>>, vector<1x8x8x128xbf16>
    %7 = vector.shape_cast %6 : vector<1x8x8x128xbf16> to vector<8x8x128xbf16>
    %8 = vector.shape_cast %7 : vector<8x8x128xbf16> to vector<64x128xbf16>
    %c1_9 = arith.constant 1 : index
    %c0_10 = arith.constant 0 : index
    %c0_11 = arith.constant 0 : index
    %9 = vector.load %arg2[%c1_9, %c0_10, %c0_11] : memref<9x128x128xbf16, #tpu.memory_space<vmem>>, vector<1x128x128xbf16>
    %10 = vector.shape_cast %9 : vector<1x128x128xbf16> to vector<128x128xbf16>
    %cst_12 = arith.constant dense<0.000000e+00> : vector<64x128xf32>
    %11 = tpu.matmul %8, %10, %cst_12 {dimension_numbers = #tpu.dot_dimension_numbers<[1], [0], [0], [1], [0, 0, 1, 1], [], []>} : vector<64x128xbf16>, vector<128x128xbf16>, vector<64x128xf32> -> vector<64x128xf32>
    %12 = arith.addf %5, %11 : vector<64x128xf32>
    %c0_13 = arith.constant 0 : index
    %c0_14 = arith.constant 0 : index
    %c1_15 = arith.constant 1 : index
    %c0_16 = arith.constant 0 : index
    %13 = vector.load %arg1[%c0_13, %c0_14, %c1_15, %c0_16] : memref<4x9x9x128xbf16, #tpu.memory_space<vmem>>, vector<1x8x8x128xbf16>
    %14 = vector.shape_cast %13 : vector<1x8x8x128xbf16> to vector<8x8x128xbf16>
    %15 = vector.shape_cast %14 : vector<8x8x128xbf16> to vector<64x128xbf16>
    %c2 = arith.constant 2 : index
    %c0_17 = arith.constant 0 : index
    %c0_18 = arith.constant 0 : index
    %16 = vector.load %arg2[%c2, %c0_17, %c0_18] : memref<9x128x128xbf16, #tpu.memory_space<vmem>>, vector<1x128x128xbf16>
    %17 = vector.shape_cast %16 : vector<1x128x128xbf16> to vector<128x128xbf16>
    %cst_19 = arith.constant dense<0.000000e+00> : vector<64x128xf32>
    %18 = tpu.matmul %15, %17, %cst_19 {dimension_numbers = #tpu.dot_dimension_numbers<[1], [0], [0], [1], [0, 0, 1, 1], [], []>} : vector<64x128xbf16>, vector<128x128xbf16>, vector<64x128xf32> -> vector<64x128xf32>
    %19 = arith.addf %12, %18 : vector<64x128xf32>
    %c2_20 = arith.constant 2 : index
    %c0_21 = arith.constant 0 : index
    %c0_22 = arith.constant 0 : index
    %c0_23 = arith.constant 0 : index
    %20 = vector.load %arg1[%c2_20, %c0_21, %c0_22, %c0_23] : memref<4x9x9x128xbf16, #tpu.memory_space<vmem>>, vector<1x8x8x128xbf16>
    %21 = vector.shape_cast %20 : vector<1x8x8x128xbf16> to vector<8x8x128xbf16>
    %22 = vector.shape_cast %21 : vector<8x8x128xbf16> to vector<64x128xbf16>
    %c3 = arith.constant 3 : index
    %c0_24 = arith.constant 0 : index
    %c0_25 = arith.constant 0 : index
    %23 = vector.load %arg2[%c3, %c0_24, %c0_25] : memref<9x128x128xbf16, #tpu.memory_space<vmem>>, vector<1x128x128xbf16>
    %24 = vector.shape_cast %23 : vector<1x128x128xbf16> to vector<128x128xbf16>
    %cst_26 = arith.constant dense<0.000000e+00> : vector<64x128xf32>
    %25 = tpu.matmul %22, %24, %cst_26 {dimension_numbers = #tpu.dot_dimension_numbers<[1], [0], [0], [1], [0, 0, 1, 1], [], []>} : vector<64x128xbf16>, vector<128x128xbf16>, vector<64x128xf32> -> vector<64x128xf32>
    %26 = arith.addf %19, %25 : vector<64x128xf32>
    %c3_27 = arith.constant 3 : index
    %c0_28 = arith.constant 0 : index
    %c0_29 = arith.constant 0 : index
    %c0_30 = arith.constant 0 : index
    %27 = vector.load %arg1[%c3_27, %c0_28, %c0_29, %c0_30] : memref<4x9x9x128xbf16, #tpu.memory_space<vmem>>, vector<1x8x8x128xbf16>
    %28 = vector.shape_cast %27 : vector<1x8x8x128xbf16> to vector<8x8x128xbf16>
    %29 = vector.shape_cast %28 : vector<8x8x128xbf16> to vector<64x128xbf16>
    %c4 = arith.constant 4 : index
    %c0_31 = arith.constant 0 : index
    %c0_32 = arith.constant 0 : index
    %30 = vector.load %arg2[%c4, %c0_31, %c0_32] : memref<9x128x128xbf16, #tpu.memory_space<vmem>>, vector<1x128x128xbf16>
    %31 = vector.shape_cast %30 : vector<1x128x128xbf16> to vector<128x128xbf16>
    %cst_33 = arith.constant dense<0.000000e+00> : vector<64x128xf32>
    %32 = tpu.matmul %29, %31, %cst_33 {dimension_numbers = #tpu.dot_dimension_numbers<[1], [0], [0], [1], [0, 0, 1, 1], [], []>} : vector<64x128xbf16>, vector<128x128xbf16>, vector<64x128xf32> -> vector<64x128xf32>
    %33 = arith.addf %26, %32 : vector<64x128xf32>
    %c2_34 = arith.constant 2 : index
    %c0_35 = arith.constant 0 : index
    %c1_36 = arith.constant 1 : index
    %c0_37 = arith.constant 0 : index
    %34 = vector.load %arg1[%c2_34, %c0_35, %c1_36, %c0_37] : memref<4x9x9x128xbf16, #tpu.memory_space<vmem>>, vector<1x8x8x128xbf16>
    %35 = vector.shape_cast %34 : vector<1x8x8x128xbf16> to vector<8x8x128xbf16>
    %36 = vector.shape_cast %35 : vector<8x8x128xbf16> to vector<64x128xbf16>
    %c5 = arith.constant 5 : index
    %c0_38 = arith.constant 0 : index
    %c0_39 = arith.constant 0 : index
    %37 = vector.load %arg2[%c5, %c0_38, %c0_39] : memref<9x128x128xbf16, #tpu.memory_space<vmem>>, vector<1x128x128xbf16>
    %38 = vector.shape_cast %37 : vector<1x128x128xbf16> to vector<128x128xbf16>
    %cst_40 = arith.constant dense<0.000000e+00> : vector<64x128xf32>
    %39 = tpu.matmul %36, %38, %cst_40 {dimension_numbers = #tpu.dot_dimension_numbers<[1], [0], [0], [1], [0, 0, 1, 1], [], []>} : vector<64x128xbf16>, vector<128x128xbf16>, vector<64x128xf32> -> vector<64x128xf32>
    %40 = arith.addf %33, %39 : vector<64x128xf32>
    %c0_41 = arith.constant 0 : index
    %c1_42 = arith.constant 1 : index
    %c0_43 = arith.constant 0 : index
    %c0_44 = arith.constant 0 : index
    %41 = vector.load %arg1[%c0_41, %c1_42, %c0_43, %c0_44] : memref<4x9x9x128xbf16, #tpu.memory_space<vmem>>, vector<1x8x8x128xbf16>
    %42 = vector.shape_cast %41 : vector<1x8x8x128xbf16> to vector<8x8x128xbf16>
    %43 = vector.shape_cast %42 : vector<8x8x128xbf16> to vector<64x128xbf16>
    %c6 = arith.constant 6 : index
    %c0_45 = arith.constant 0 : index
    %c0_46 = arith.constant 0 : index
    %44 = vector.load %arg2[%c6, %c0_45, %c0_46] : memref<9x128x128xbf16, #tpu.memory_space<vmem>>, vector<1x128x128xbf16>
    %45 = vector.shape_cast %44 : vector<1x128x128xbf16> to vector<128x128xbf16>
    %cst_47 = arith.constant dense<0.000000e+00> : vector<64x128xf32>
    %46 = tpu.matmul %43, %45, %cst_47 {dimension_numbers = #tpu.dot_dimension_numbers<[1], [0], [0], [1], [0, 0, 1, 1], [], []>} : vector<64x128xbf16>, vector<128x128xbf16>, vector<64x128xf32> -> vector<64x128xf32>
    %47 = arith.addf %40, %46 : vector<64x128xf32>
    %c1_48 = arith.constant 1 : index
    %c1_49 = arith.constant 1 : index
    %c0_50 = arith.constant 0 : index
    %c0_51 = arith.constant 0 : index
    %48 = vector.load %arg1[%c1_48, %c1_49, %c0_50, %c0_51] : memref<4x9x9x128xbf16, #tpu.memory_space<vmem>>, vector<1x8x8x128xbf16>
    %49 = vector.shape_cast %48 : vector<1x8x8x128xbf16> to vector<8x8x128xbf16>
    %50 = vector.shape_cast %49 : vector<8x8x128xbf16> to vector<64x128xbf16>
    %c7 = arith.constant 7 : index
    %c0_52 = arith.constant 0 : index
    %c0_53 = arith.constant 0 : index
    %51 = vector.load %arg2[%c7, %c0_52, %c0_53] : memref<9x128x128xbf16, #tpu.memory_space<vmem>>, vector<1x128x128xbf16>
    %52 = vector.shape_cast %51 : vector<1x128x128xbf16> to vector<128x128xbf16>
    %cst_54 = arith.constant dense<0.000000e+00> : vector<64x128xf32>
    %53 = tpu.matmul %50, %52, %cst_54 {dimension_numbers = #tpu.dot_dimension_numbers<[1], [0], [0], [1], [0, 0, 1, 1], [], []>} : vector<64x128xbf16>, vector<128x128xbf16>, vector<64x128xf32> -> vector<64x128xf32>
    %54 = arith.addf %47, %53 : vector<64x128xf32>
    %c0_55 = arith.constant 0 : index
    %c1_56 = arith.constant 1 : index
    %c1_57 = arith.constant 1 : index
    %c0_58 = arith.constant 0 : index
    %55 = vector.load %arg1[%c0_55, %c1_56, %c1_57, %c0_58] : memref<4x9x9x128xbf16, #tpu.memory_space<vmem>>, vector<1x8x8x128xbf16>
    %56 = vector.shape_cast %55 : vector<1x8x8x128xbf16> to vector<8x8x128xbf16>
    %57 = vector.shape_cast %56 : vector<8x8x128xbf16> to vector<64x128xbf16>
    %c8 = arith.constant 8 : index
    %c0_59 = arith.constant 0 : index
    %c0_60 = arith.constant 0 : index
    %58 = vector.load %arg2[%c8, %c0_59, %c0_60] : memref<9x128x128xbf16, #tpu.memory_space<vmem>>, vector<1x128x128xbf16>
    %59 = vector.shape_cast %58 : vector<1x128x128xbf16> to vector<128x128xbf16>
    %cst_61 = arith.constant dense<0.000000e+00> : vector<64x128xf32>
    %60 = tpu.matmul %57, %59, %cst_61 {dimension_numbers = #tpu.dot_dimension_numbers<[1], [0], [0], [1], [0, 0, 1, 1], [], []>} : vector<64x128xbf16>, vector<128x128xbf16>, vector<64x128xf32> -> vector<64x128xf32>
    %61 = arith.addf %54, %60 : vector<64x128xf32>
    %62 = vector.shape_cast %61 : vector<64x128xf32> to vector<1x8x8x128xf32>
    %63 = arith.truncf %62 : vector<1x8x8x128xf32> to vector<1x8x8x128xbf16>
    %c0_62 = arith.constant 0 : index
    %c0_63 = arith.constant 0 : index
    %c0_64 = arith.constant 0 : index
    %c0_65 = arith.constant 0 : index
    %64 = vector.load %arg3[%c0_62, %c0_63, %c0_64, %c0_65] : memref<1x8x8x128xbf16, #tpu.memory_space<vmem>>, vector<1x8x8x128xbf16>
    tpu.vector_store %arg3[%c0_62, %c0_63, %c0_64, %c0_65], %63 {strides = array<i32>} : memref<1x8x8x128xbf16, #tpu.memory_space<vmem>>, vector<1x8x8x128xbf16>,
    %cst_66 = arith.constant dense<0.000000e+00> : vector<128xf32>
    %65 = vector.multi_reduction <add>, %61, %cst_66 [0] : vector<64x128xf32> to vector<128xf32>
    %66 = vector.shape_cast %65 : vector<128xf32> to vector<1x128xf32>
    %c0_67 = arith.constant 0 : index
    %c0_68 = arith.constant 0 : index
    %c0_69 = arith.constant 0 : index
    %67 = vector.load %arg4[%c0_67, %c0_68, %c0_69] : memref<1x2x128xf32, #tpu.memory_space<vmem>>, vector<1x1x128xf32>
    %68 = vector.shape_cast %67 : vector<1x1x128xf32> to vector<1x128xf32>
    %69 = vector.shape_cast %66 : vector<1x128xf32> to vector<1x1x128xf32>
    tpu.vector_store %arg4[%c0_67, %c0_68, %c0_69], %69 {strides = array<i32>} : memref<1x2x128xf32, #tpu.memory_space<vmem>>, vector<1x1x128xf32>,
    %70 = arith.mulf %61, %61 : vector<64x128xf32>
    %cst_70 = arith.constant dense<0.000000e+00> : vector<128xf32>
    %71 = vector.multi_reduction <add>, %70, %cst_70 [0] : vector<64x128xf32> to vector<128xf32>
    %72 = vector.shape_cast %71 : vector<128xf32> to vector<1x128xf32>
    %c0_71 = arith.constant 0 : index
    %c1_72 = arith.constant 1 : index
    %c0_73 = arith.constant 0 : index
    %73 = vector.load %arg4[%c0_71, %c1_72, %c0_73] : memref<1x2x128xf32, #tpu.memory_space<vmem>>, vector<1x1x128xf32>
    %74 = vector.shape_cast %73 : vector<1x1x128xf32> to vector<1x128xf32>
    %75 = vector.shape_cast %72 : vector<1x128xf32> to vector<1x1x128xf32>
    tpu.vector_store %arg4[%c0_71, %c1_72, %c0_73], %75 {strides = array<i32>} : memref<1x2x128xf32, #tpu.memory_space<vmem>>, vector<1x1x128xf32>,
    return
  }
  func.func @transform_0(%arg0: i32) -> (i32, i32, i32, i32) {
    %c0_i32 = arith.constant 0 : i32
    %c0_i32_0 = arith.constant 0 : i32
    %c0_i32_1 = arith.constant 0 : i32
    %c0_i32_2 = arith.constant 0 : i32
    return %arg0, %c0_i32, %c0_i32_0, %c0_i32_1 : i32, i32, i32, i32
  }
  func.func @transform_1(%arg0: i32) -> (i32, i32, i32) {
    %c0_i32 = arith.constant 0 : i32
    %c0_i32_0 = arith.constant 0 : i32
    %c0_i32_1 = arith.constant 0 : i32
    %c0_i32_2 = arith.constant 0 : i32
    return %c0_i32, %c0_i32_0, %c0_i32_1 : i32, i32, i32
  }
  func.func @transform_2(%arg0: i32) -> (i32, i32, i32, i32) {
    %c0_i32 = arith.constant 0 : i32
    %c0_i32_0 = arith.constant 0 : i32
    %c0_i32_1 = arith.constant 0 : i32
    %c0_i32_2 = arith.constant 0 : i32
    return %arg0, %c0_i32, %c0_i32_0, %c0_i32_1 : i32, i32, i32, i32
  }
  func.func @transform_3(%arg0: i32) -> (i32, i32, i32) {
    %c0_i32 = arith.constant 0 : i32
    %c0_i32_0 = arith.constant 0 : i32
    %c0_i32_1 = arith.constant 0 : i32
    return %arg0, %c0_i32, %c0_i32_0 : i32, i32, i32
  }
}

module attributes {stable_mosaic.version = 11 : i64} {
  func.func @_mm_bnrelu_stats_kernel(%arg0: i32, %arg1: memref<64x128xbf16, #tpu.memory_space<vmem>>, %arg2: memref<128x128xbf16, #tpu.memory_space<vmem>>, %arg3: memref<1x128xf32, #tpu.memory_space<vmem>>, %arg4: memref<1x128xf32, #tpu.memory_space<vmem>>, %arg5: memref<64x128xbf16, #tpu.memory_space<vmem>>, %arg6: memref<1x2x128xf32, #tpu.memory_space<vmem>>) attributes {dimension_semantics = [#tpu.dimension_semantics<parallel>], iteration_bounds = array<i64: 2>, scalar_prefetch = 0 : i64, scratch_operands = 0 : i64, tpu.core_type = #tpu.core_type<tc>, window_params = [{transform_indices = @transform_0, window_bounds = array<i64: 64, 128>}, {pipeline_mode = #tpu.pipeline_mode<synchronous>, transform_indices = @transform_1, window_bounds = array<i64: 128, 128>}, {pipeline_mode = #tpu.pipeline_mode<synchronous>, transform_indices = @transform_2, window_bounds = array<i64: 1, 128>}, {pipeline_mode = #tpu.pipeline_mode<synchronous>, transform_indices = @transform_3, window_bounds = array<i64: 1, 128>}, {transform_indices = @transform_4, window_bounds = array<i64: 64, 128>}, {transform_indices = @transform_5, window_bounds = array<i64: 1, 2, 128>}]} {
    %c0 = arith.constant 0 : index
    %c0_0 = arith.constant 0 : index
    %0 = vector.load %arg1[%c0, %c0_0] : memref<64x128xbf16, #tpu.memory_space<vmem>>, vector<64x128xbf16>
    %1 = arith.extf %0 : vector<64x128xbf16> to vector<64x128xf32>
    %c0_1 = arith.constant 0 : index
    %c0_2 = arith.constant 0 : index
    %2 = vector.load %arg3[%c0_1, %c0_2] : memref<1x128xf32, #tpu.memory_space<vmem>>, vector<1x128xf32>
    %3 = vector.broadcast %2 : vector<1x128xf32> to vector<64x128xf32>
    %4 = arith.mulf %1, %3 : vector<64x128xf32>
    %c0_3 = arith.constant 0 : index
    %c0_4 = arith.constant 0 : index
    %5 = vector.load %arg4[%c0_3, %c0_4] : memref<1x128xf32, #tpu.memory_space<vmem>>, vector<1x128xf32>
    %6 = vector.broadcast %5 : vector<1x128xf32> to vector<64x128xf32>
    %7 = arith.addf %4, %6 : vector<64x128xf32>
    %cst = arith.constant 0.000000e+00 : f32
    %8 = vector.broadcast %cst : f32 to vector<64x128xf32>
    %9 = arith.maximumf %7, %8 : vector<64x128xf32>
    %10 = arith.truncf %9 : vector<64x128xf32> to vector<64x128xbf16>
    %c0_5 = arith.constant 0 : index
    %c0_6 = arith.constant 0 : index
    %11 = vector.load %arg2[%c0_5, %c0_6] : memref<128x128xbf16, #tpu.memory_space<vmem>>, vector<128x128xbf16>
    %cst_7 = arith.constant dense<0.000000e+00> : vector<64x128xf32>
    %12 = tpu.matmul %10, %11, %cst_7 {dimension_numbers = #tpu.dot_dimension_numbers<[1], [0], [0], [1], [0, 0, 1, 1], [], []>} : vector<64x128xbf16>, vector<128x128xbf16>, vector<64x128xf32> -> vector<64x128xf32>
    %13 = arith.truncf %12 : vector<64x128xf32> to vector<64x128xbf16>
    %c0_8 = arith.constant 0 : index
    %c0_9 = arith.constant 0 : index
    %14 = vector.load %arg5[%c0_8, %c0_9] : memref<64x128xbf16, #tpu.memory_space<vmem>>, vector<64x128xbf16>
    tpu.vector_store %arg5[%c0_8, %c0_9], %13 {strides = array<i32>} : memref<64x128xbf16, #tpu.memory_space<vmem>>, vector<64x128xbf16>,
    %cst_10 = arith.constant dense<0.000000e+00> : vector<128xf32>
    %15 = vector.multi_reduction <add>, %12, %cst_10 [0] : vector<64x128xf32> to vector<128xf32>
    %16 = vector.shape_cast %15 : vector<128xf32> to vector<1x128xf32>
    %c0_11 = arith.constant 0 : index
    %c0_12 = arith.constant 0 : index
    %c0_13 = arith.constant 0 : index
    %17 = vector.load %arg6[%c0_11, %c0_12, %c0_13] : memref<1x2x128xf32, #tpu.memory_space<vmem>>, vector<1x1x128xf32>
    %18 = vector.shape_cast %17 : vector<1x1x128xf32> to vector<1x128xf32>
    %19 = vector.shape_cast %16 : vector<1x128xf32> to vector<1x1x128xf32>
    tpu.vector_store %arg6[%c0_11, %c0_12, %c0_13], %19 {strides = array<i32>} : memref<1x2x128xf32, #tpu.memory_space<vmem>>, vector<1x1x128xf32>,
    %20 = arith.mulf %12, %12 : vector<64x128xf32>
    %cst_14 = arith.constant dense<0.000000e+00> : vector<128xf32>
    %21 = vector.multi_reduction <add>, %20, %cst_14 [0] : vector<64x128xf32> to vector<128xf32>
    %22 = vector.shape_cast %21 : vector<128xf32> to vector<1x128xf32>
    %c0_15 = arith.constant 0 : index
    %c1 = arith.constant 1 : index
    %c0_16 = arith.constant 0 : index
    %23 = vector.load %arg6[%c0_15, %c1, %c0_16] : memref<1x2x128xf32, #tpu.memory_space<vmem>>, vector<1x1x128xf32>
    %24 = vector.shape_cast %23 : vector<1x1x128xf32> to vector<1x128xf32>
    %25 = vector.shape_cast %22 : vector<1x128xf32> to vector<1x1x128xf32>
    tpu.vector_store %arg6[%c0_15, %c1, %c0_16], %25 {strides = array<i32>} : memref<1x2x128xf32, #tpu.memory_space<vmem>>, vector<1x1x128xf32>,
    return
  }
  func.func @transform_0(%arg0: i32) -> (i32, i32) {
    %c0_i32 = arith.constant 0 : i32
    %c0_i32_0 = arith.constant 0 : i32
    return %arg0, %c0_i32 : i32, i32
  }
  func.func @transform_1(%arg0: i32) -> (i32, i32) {
    %c0_i32 = arith.constant 0 : i32
    %c0_i32_0 = arith.constant 0 : i32
    %c0_i32_1 = arith.constant 0 : i32
    return %c0_i32, %c0_i32_0 : i32, i32
  }
  func.func @transform_2(%arg0: i32) -> (i32, i32) {
    %c0_i32 = arith.constant 0 : i32
    %c0_i32_0 = arith.constant 0 : i32
    %c0_i32_1 = arith.constant 0 : i32
    return %c0_i32, %c0_i32_0 : i32, i32
  }
  func.func @transform_3(%arg0: i32) -> (i32, i32) {
    %c0_i32 = arith.constant 0 : i32
    %c0_i32_0 = arith.constant 0 : i32
    %c0_i32_1 = arith.constant 0 : i32
    return %c0_i32, %c0_i32_0 : i32, i32
  }
  func.func @transform_4(%arg0: i32) -> (i32, i32) {
    %c0_i32 = arith.constant 0 : i32
    %c0_i32_0 = arith.constant 0 : i32
    return %arg0, %c0_i32 : i32, i32
  }
  func.func @transform_5(%arg0: i32) -> (i32, i32, i32) {
    %c0_i32 = arith.constant 0 : i32
    %c0_i32_0 = arith.constant 0 : i32
    %c0_i32_1 = arith.constant 0 : i32
    return %arg0, %c0_i32, %c0_i32_0 : i32, i32, i32
  }
}

module attributes {stable_mosaic.version = 11 : i64} {
  func.func @_mm_stats_kernel(%arg0: i32, %arg1: memref<64x128xbf16, #tpu.memory_space<vmem>>, %arg2: memref<128x128xbf16, #tpu.memory_space<vmem>>, %arg3: memref<64x128xbf16, #tpu.memory_space<vmem>>, %arg4: memref<1x2x128xf32, #tpu.memory_space<vmem>>) attributes {dimension_semantics = [#tpu.dimension_semantics<parallel>], iteration_bounds = array<i64: 2>, scalar_prefetch = 0 : i64, scratch_operands = 0 : i64, tpu.core_type = #tpu.core_type<tc>, window_params = [{transform_indices = @transform_0, window_bounds = array<i64: 64, 128>}, {pipeline_mode = #tpu.pipeline_mode<synchronous>, transform_indices = @transform_1, window_bounds = array<i64: 128, 128>}, {transform_indices = @transform_2, window_bounds = array<i64: 64, 128>}, {transform_indices = @transform_3, window_bounds = array<i64: 1, 2, 128>}]} {
    %c0 = arith.constant 0 : index
    %c0_0 = arith.constant 0 : index
    %0 = vector.load %arg1[%c0, %c0_0] : memref<64x128xbf16, #tpu.memory_space<vmem>>, vector<64x128xbf16>
    %c0_1 = arith.constant 0 : index
    %c0_2 = arith.constant 0 : index
    %1 = vector.load %arg2[%c0_1, %c0_2] : memref<128x128xbf16, #tpu.memory_space<vmem>>, vector<128x128xbf16>
    %cst = arith.constant dense<0.000000e+00> : vector<64x128xf32>
    %2 = tpu.matmul %0, %1, %cst {dimension_numbers = #tpu.dot_dimension_numbers<[1], [0], [0], [1], [0, 0, 1, 1], [], []>} : vector<64x128xbf16>, vector<128x128xbf16>, vector<64x128xf32> -> vector<64x128xf32>
    %3 = arith.truncf %2 : vector<64x128xf32> to vector<64x128xbf16>
    %c0_3 = arith.constant 0 : index
    %c0_4 = arith.constant 0 : index
    %4 = vector.load %arg3[%c0_3, %c0_4] : memref<64x128xbf16, #tpu.memory_space<vmem>>, vector<64x128xbf16>
    tpu.vector_store %arg3[%c0_3, %c0_4], %3 {strides = array<i32>} : memref<64x128xbf16, #tpu.memory_space<vmem>>, vector<64x128xbf16>,
    %cst_5 = arith.constant dense<0.000000e+00> : vector<128xf32>
    %5 = vector.multi_reduction <add>, %2, %cst_5 [0] : vector<64x128xf32> to vector<128xf32>
    %6 = vector.shape_cast %5 : vector<128xf32> to vector<1x128xf32>
    %c0_6 = arith.constant 0 : index
    %c0_7 = arith.constant 0 : index
    %c0_8 = arith.constant 0 : index
    %7 = vector.load %arg4[%c0_6, %c0_7, %c0_8] : memref<1x2x128xf32, #tpu.memory_space<vmem>>, vector<1x1x128xf32>
    %8 = vector.shape_cast %7 : vector<1x1x128xf32> to vector<1x128xf32>
    %9 = vector.shape_cast %6 : vector<1x128xf32> to vector<1x1x128xf32>
    tpu.vector_store %arg4[%c0_6, %c0_7, %c0_8], %9 {strides = array<i32>} : memref<1x2x128xf32, #tpu.memory_space<vmem>>, vector<1x1x128xf32>,
    %10 = arith.mulf %2, %2 : vector<64x128xf32>
    %cst_9 = arith.constant dense<0.000000e+00> : vector<128xf32>
    %11 = vector.multi_reduction <add>, %10, %cst_9 [0] : vector<64x128xf32> to vector<128xf32>
    %12 = vector.shape_cast %11 : vector<128xf32> to vector<1x128xf32>
    %c0_10 = arith.constant 0 : index
    %c1 = arith.constant 1 : index
    %c0_11 = arith.constant 0 : index
    %13 = vector.load %arg4[%c0_10, %c1, %c0_11] : memref<1x2x128xf32, #tpu.memory_space<vmem>>, vector<1x1x128xf32>
    %14 = vector.shape_cast %13 : vector<1x1x128xf32> to vector<1x128xf32>
    %15 = vector.shape_cast %12 : vector<1x128xf32> to vector<1x1x128xf32>
    tpu.vector_store %arg4[%c0_10, %c1, %c0_11], %15 {strides = array<i32>} : memref<1x2x128xf32, #tpu.memory_space<vmem>>, vector<1x1x128xf32>,
    return
  }
  func.func @transform_0(%arg0: i32) -> (i32, i32) {
    %c0_i32 = arith.constant 0 : i32
    %c0_i32_0 = arith.constant 0 : i32
    return %arg0, %c0_i32 : i32, i32
  }
  func.func @transform_1(%arg0: i32) -> (i32, i32) {
    %c0_i32 = arith.constant 0 : i32
    %c0_i32_0 = arith.constant 0 : i32
    %c0_i32_1 = arith.constant 0 : i32
    return %c0_i32, %c0_i32_0 : i32, i32
  }
  func.func @transform_2(%arg0: i32) -> (i32, i32) {
    %c0_i32 = arith.constant 0 : i32
    %c0_i32_0 = arith.constant 0 : i32
    return %arg0, %c0_i32 : i32, i32
  }
  func.func @transform_3(%arg0: i32) -> (i32, i32, i32) {
    %c0_i32 = arith.constant 0 : i32
    %c0_i32_0 = arith.constant 0 : i32
    %c0_i32_1 = arith.constant 0 : i32
    return %arg0, %c0_i32, %c0_i32_0 : i32, i32, i32
  }
}

module attributes {stable_mosaic.version = 11 : i64} {
  func.func @_fuse_proj_kernel(%arg0: i32, %arg1: memref<64x128xbf16, #tpu.memory_space<vmem>>, %arg2: memref<64x128xbf16, #tpu.memory_space<vmem>>, %arg3: memref<1x128xf32, #tpu.memory_space<vmem>>, %arg4: memref<1x128xf32, #tpu.memory_space<vmem>>, %arg5: memref<1x128xf32, #tpu.memory_space<vmem>>, %arg6: memref<1x128xf32, #tpu.memory_space<vmem>>, %arg7: memref<64x128xf32, #tpu.memory_space<vmem>>) attributes {dimension_semantics = [#tpu.dimension_semantics<parallel>], iteration_bounds = array<i64: 2>, scalar_prefetch = 0 : i64, scratch_operands = 0 : i64, tpu.core_type = #tpu.core_type<tc>, window_params = [{transform_indices = @transform_0, window_bounds = array<i64: 64, 128>}, {transform_indices = @transform_1, window_bounds = array<i64: 64, 128>}, {pipeline_mode = #tpu.pipeline_mode<synchronous>, transform_indices = @transform_2, window_bounds = array<i64: 1, 128>}, {pipeline_mode = #tpu.pipeline_mode<synchronous>, transform_indices = @transform_3, window_bounds = array<i64: 1, 128>}, {pipeline_mode = #tpu.pipeline_mode<synchronous>, transform_indices = @transform_4, window_bounds = array<i64: 1, 128>}, {pipeline_mode = #tpu.pipeline_mode<synchronous>, transform_indices = @transform_5, window_bounds = array<i64: 1, 128>}, {transform_indices = @transform_6, window_bounds = array<i64: 64, 128>}]} {
    %c0 = arith.constant 0 : index
    %c0_0 = arith.constant 0 : index
    %0 = vector.load %arg1[%c0, %c0_0] : memref<64x128xbf16, #tpu.memory_space<vmem>>, vector<64x128xbf16>
    %1 = arith.extf %0 : vector<64x128xbf16> to vector<64x128xf32>
    %c0_1 = arith.constant 0 : index
    %c0_2 = arith.constant 0 : index
    %2 = vector.load %arg3[%c0_1, %c0_2] : memref<1x128xf32, #tpu.memory_space<vmem>>, vector<1x128xf32>
    %3 = vector.broadcast %2 : vector<1x128xf32> to vector<64x128xf32>
    %4 = arith.mulf %1, %3 : vector<64x128xf32>
    %c0_3 = arith.constant 0 : index
    %c0_4 = arith.constant 0 : index
    %5 = vector.load %arg4[%c0_3, %c0_4] : memref<1x128xf32, #tpu.memory_space<vmem>>, vector<1x128xf32>
    %6 = vector.broadcast %5 : vector<1x128xf32> to vector<64x128xf32>
    %7 = arith.addf %4, %6 : vector<64x128xf32>
    %c0_5 = arith.constant 0 : index
    %c0_6 = arith.constant 0 : index
    %8 = vector.load %arg2[%c0_5, %c0_6] : memref<64x128xbf16, #tpu.memory_space<vmem>>, vector<64x128xbf16>
    %9 = arith.extf %8 : vector<64x128xbf16> to vector<64x128xf32>
    %c0_7 = arith.constant 0 : index
    %c0_8 = arith.constant 0 : index
    %10 = vector.load %arg5[%c0_7, %c0_8] : memref<1x128xf32, #tpu.memory_space<vmem>>, vector<1x128xf32>
    %11 = vector.broadcast %10 : vector<1x128xf32> to vector<64x128xf32>
    %12 = arith.mulf %9, %11 : vector<64x128xf32>
    %c0_9 = arith.constant 0 : index
    %c0_10 = arith.constant 0 : index
    %13 = vector.load %arg6[%c0_9, %c0_10] : memref<1x128xf32, #tpu.memory_space<vmem>>, vector<1x128xf32>
    %14 = vector.broadcast %13 : vector<1x128xf32> to vector<64x128xf32>
    %15 = arith.addf %12, %14 : vector<64x128xf32>
    %16 = arith.addf %7, %15 : vector<64x128xf32>
    %cst = arith.constant 0.000000e+00 : f32
    %17 = vector.broadcast %cst : f32 to vector<64x128xf32>
    %18 = arith.maximumf %16, %17 : vector<64x128xf32>
    %c0_11 = arith.constant 0 : index
    %c0_12 = arith.constant 0 : index
    %19 = vector.load %arg7[%c0_11, %c0_12] : memref<64x128xf32, #tpu.memory_space<vmem>>, vector<64x128xf32>
    tpu.vector_store %arg7[%c0_11, %c0_12], %18 {strides = array<i32>} : memref<64x128xf32, #tpu.memory_space<vmem>>, vector<64x128xf32>,
    return
  }
  func.func @transform_0(%arg0: i32) -> (i32, i32) {
    %c0_i32 = arith.constant 0 : i32
    %c0_i32_0 = arith.constant 0 : i32
    return %arg0, %c0_i32 : i32, i32
  }
  func.func @transform_1(%arg0: i32) -> (i32, i32) {
    %c0_i32 = arith.constant 0 : i32
    %c0_i32_0 = arith.constant 0 : i32
    return %arg0, %c0_i32 : i32, i32
  }
  func.func @transform_2(%arg0: i32) -> (i32, i32) {
    %c0_i32 = arith.constant 0 : i32
    %c0_i32_0 = arith.constant 0 : i32
    %c0_i32_1 = arith.constant 0 : i32
    return %c0_i32, %c0_i32_0 : i32, i32
  }
  func.func @transform_3(%arg0: i32) -> (i32, i32) {
    %c0_i32 = arith.constant 0 : i32
    %c0_i32_0 = arith.constant 0 : i32
    %c0_i32_1 = arith.constant 0 : i32
    return %c0_i32, %c0_i32_0 : i32, i32
  }
  func.func @transform_4(%arg0: i32) -> (i32, i32) {
    %c0_i32 = arith.constant 0 : i32
    %c0_i32_0 = arith.constant 0 : i32
    %c0_i32_1 = arith.constant 0 : i32
    return %c0_i32, %c0_i32_0 : i32, i32
  }
  func.func @transform_5(%arg0: i32) -> (i32, i32) {
    %c0_i32 = arith.constant 0 : i32
    %c0_i32_0 = arith.constant 0 : i32
    %c0_i32_1 = arith.constant 0 : i32
    return %c0_i32, %c0_i32_0 : i32, i32
  }
  func.func @transform_6(%arg0: i32) -> (i32, i32) {
    %c0_i32 = arith.constant 0 : i32
    %c0_i32_0 = arith.constant 0 : i32
    return %arg0, %c0_i32 : i32, i32
  }
}

</mosaic_0001>

<llo_original>
// kernel: bottleneck_forward.5
$region0: #{bottleneck_forward.5}
  #allocation0 [shape = 'u32[]', space=smem, size = 0x4, offset = 0x4, fixed_abs, tag = 'smem constant byte address 0x4 - core index']
  #allocation1 [shape = 'u32[72,128]{1,0:T(1,128)}', space=vmem, size = 0x9000, scoped, tag = 'internal scratch']
  %s0 = inlined_call_operand.vmem [shape: bf16[512,128], index: 0, kind: input, shape index: {}]
  %s1 = inlined_call_operand.vmem [shape: bf16[128,128], index: 1, kind: input, shape index: {}]
  %s2 = inlined_call_operand.vmem [shape: bf16[512,128], index: 2, kind: output, shape index: {0}]
  %s3 = inlined_call_operand.vmem [shape: f32[2,2,128], index: 3, kind: output, shape index: {1}]
  %4 = xla_tuple %s2, %s3
  %s5 = sld [smem:[#allocation0]]
  $region49: #{bottleneck_forward.5} parent=0
    _
  %s7 = ssub.s32 1, %s5
  %s8 = scalar_select 0, %s7, %s5
  loop: start=0, step=1, limit=4
  $region2: #{bottleneck_forward.5} parent=0 // loop_pre_header
    _
  $region3: #{bottleneck_forward.5} parent=0 // loop_header
    %s10 = sphi 0, %s14
    %p11 = scmp.ge.s32.totalorder %s10, 4
    %s20 = sphi 0, %s22
    %s23 = sphi 0, %s20
    %s24 = sphi 0, %s23
    %s40 = sphi 0, %s24
    %s44 = sphi 0, %s44
    %s46 = sphi 0, %s44
    %s47 = sphi 0, %s46
    %s61 = sphi 0, %s47
    %s67 = sphi 0, %s69
    %s70 = sphi 0, %s67
    %s71 = sphi 0, %s70
    %s87 = sphi 0, %s71
    %s93 = sphi 0, %s95
    %s96 = sphi 0, %s93
    %s97 = sphi 0, %s96
    %s113 = sphi 0, %s97
  $region4: #{bottleneck_forward.5} parent=0 // loop_header_branch
    %13 = sbr.rel (%p11) target = $region8
  $region5: #{bottleneck_forward.5} parent=0 // loop_body
    %s15 = ssub.s32 %s10, 1
    %s16 = ssub.s32 %s10, 2
    %s17 = sadd.s32 %s10, 1
    %s18 = ssub.s32 %s10, %s17
    %p19 = scmp.eq.s32.totalorder %s18, 0
    %s21 = sadd.s32 %s20, 1
    %s22 = scalar_select %p19, %s20, %s21
    %p25 = pneg %p19
    %p26 = scmp.eq.s32.totalorder %s10, 1
    %p27 = por %p25, %p26
    %p28 = scmp.ne.s32.totalorder %s20, %s23
    %p29 = scmp.eq.s32.totalorder %s10, 0
    %p30 = por %p28, %p29
    %p31 = scmp.ne.s32.totalorder %s20, %s23
    %p32 = scmp.eq.s32.totalorder %s15, 1
    %p33 = por %p31, %p32
    %p34 = scmp.ne.s32.totalorder %s23, %s24
    %p35 = scmp.eq.s32.totalorder %s15, 0
    %p36 = por %p34, %p35
    %p37 = scmp.ne.s32.totalorder %s23, %s24
    %p38 = scmp.eq.s32.totalorder %s16, 1
    %p39 = por %p37, %p38
    %p41 = scmp.ne.s32.totalorder %s24, %s40
    %p42 = scmp.eq.s32.totalorder %s16, 0
    %p43 = por %p41, %p42
    %s45 = sadd.s32 %s44, 1
    %p48 = scmp.eq.s32.totalorder %s10, 1
    %p49 = scmp.ne.s32.totalorder %s44, %s46
    %p50 = scmp.eq.s32.totalorder %s10, 0
    %p51 = por %p49, %p50
    %p52 = scmp.ne.s32.totalorder %s44, %s46
    %p53 = scmp.eq.s32.totalorder %s15, 1
    %p54 = por %p52, %p53
    %p55 = scmp.ne.s32.totalorder %s46, %s47
    %p56 = scmp.eq.s32.totalorder %s15, 0
    %p57 = por %p55, %p56
    %p58 = scmp.ne.s32.totalorder %s46, %s47
    %p59 = scmp.eq.s32.totalorder %s16, 1
    %p60 = por %p58, %p59
    %p62 = scmp.ne.s32.totalorder %s47, %s61
    %p63 = scmp.eq.s32.totalorder %s16, 0
    %p64 = por %p62, %p63
    %s65 = ssub.s32 %s10, %s17
    %p66 = scmp.eq.s32.totalorder %s65, 0
    %s68 = sadd.s32 %s67, 1
    %s69 = scalar_select %p66, %s67, %s68
    %p72 = pneg %p66
    %p73 = scmp.eq.s32.totalorder %s10, 1
    %p74 = por %p72, %p73
    %p75 = scmp.ne.s32.totalorder %s67, %s70
    %p76 = scmp.eq.s32.totalorder %s10, 0
    %p77 = por %p75, %p76
    %p78 = scmp.ne.s32.totalorder %s67, %s70
    %p79 = scmp.eq.s32.totalorder %s15, 1
    %p80 = por %p78, %p79
    %p81 = scmp.ne.s32.totalorder %s70, %s71
    %p82 = scmp.eq.s32.totalorder %s15, 0
    %p83 = por %p81, %p82
    %p84 = scmp.ne.s32.totalorder %s70, %s71
    %p85 = scmp.eq.s32.totalorder %s16, 1
    %p86 = por %p84, %p85
    %p88 = scmp.ne.s32.totalorder %s71, %s87
    %p89 = scmp.eq.s32.totalorder %s16, 0
    %p90 = por %p88, %p89
    %s91 = ssub.s32 %s10, %s17
    %p92 = scmp.eq.s32.totalorder %s91, 0
    %s94 = sadd.s32 %s93, 1
    %s95 = scalar_select %p92, %s93, %s94
    %p98 = pneg %p92
    %p99 = scmp.eq.s32.totalorder %s10, 1
    %p100 = por %p98, %p99
    %p101 = scmp.ne.s32.totalorder %s93, %s96
    %p102 = scmp.eq.s32.totalorder %s10, 0
    %p103 = por %p101, %p102
    %p104 = scmp.ne.s32.totalorder %s93, %s96
    %p105 = scmp.eq.s32.totalorder %s15, 1
    %p106 = por %p104, %p105
    %p107 = scmp.ne.s32.totalorder %s96, %s97
    %p108 = scmp.eq.s32.totalorder %s15, 0
    %p109 = por %p107, %p108
    %p110 = scmp.ne.s32.totalorder %s96, %s97
    %p111 = scmp.eq.s32.totalorder %s16, 1
    %p112 = por %p110, %p111
    %p114 = scmp.ne.s32.totalorder %s97, %s113
    %p115 = scmp.eq.s32.totalorder %s16, 0
    %p116 = por %p114, %p115
    %p117 = scmp.le.s32.totalorder 1, %s10
    %p118 = scmp.lt.s32.totalorder %s10, 3
    %p119 = pnand %p117, %p118
    %p120 = pneg %p119
    // Predicated region
    $region9: #{bottleneck_forward.5} parent=5 // pred_check
      _
    $region10: #{bottleneck_forward.5} parent=5 // pred_check_branch
      %122 = sbr.rel (%p119) target = $region12
    $region11: #{bottleneck_forward.5} parent=5 // pred_region
      %s123 = ssub.s32 %s10, 1
      // Predicated region
      $region13: #{bottleneck_forward.5} parent=11 // pred_check
        %p124 = pneg %p57
      $region14: #{bottleneck_forward.5} parent=11 // pred_check_branch
        %126 = sbr.rel (%p124) target = $region16
      $region15: #{bottleneck_forward.5} parent=11 // pred_region
        _
      $region16: #{bottleneck_forward.5} parent=11 // pred_fallthru
        _
    $region12: #{bottleneck_forward.5} parent=5 // pred_fallthru
      _
    %p127 = scmp.lt.s32.totalorder %s10, 2
    // Predicated region
    $region17: #{bottleneck_forward.5} parent=5 // pred_check
      %p128 = pneg %p127
    $region18: #{bottleneck_forward.5} parent=5 // pred_check_branch
      %130 = sbr.rel (%p128) target = $region20
    $region19: #{bottleneck_forward.5} parent=5 // pred_region
      // Predicated region
      $region21: #{bottleneck_forward.5} parent=19 // pred_check
        %p131 = pneg %p30
      $region22: #{bottleneck_forward.5} parent=19 // pred_check_branch
        %133 = sbr.rel (%p131) target = $region24
      $region23: #{bottleneck_forward.5} parent=19 // pred_region
        %s134 = smul.u32 32, %s10
        %p135 = scmp.lt.s32.totalorder %s134, 63
        %s136 = scalar_select %p135, %s134, 63
        %s137 = smul.addr %s136, 4
        %s138 = scalar_lea.vmem %s0, %s137
        %s139 = smul.u32 32, %s10
      $region24: #{bottleneck_forward.5} parent=19 // pred_fallthru
        _
    $region20: #{bottleneck_forward.5} parent=5 // pred_fallthru
      _
    %p140 = scmp.le.s32.totalorder 1, %s10
    %p141 = scmp.lt.s32.totalorder %s10, 3
    %p142 = pnand %p140, %p141
    %p143 = pneg %p142
    // Predicated region
    $region25: #{bottleneck_forward.5} parent=5 // pred_check
      _
    $region26: #{bottleneck_forward.5} parent=5 // pred_check_branch
      %145 = sbr.rel (%p142) target = $region28
    $region27: #{bottleneck_forward.5} parent=5 // pred_region
      %s146 = ssub.s32 %s10, 1
      %s147 = smul.u32 32, %s15
      %p148 = scmp.lt.s32.totalorder %s147, 63
      %s149 = scalar_select %p148, %s147, 63
      %s150 = smul.addr %s149, 4
      %s151 = scalar_lea.vmem %s0, %s150
      %p152 = pneg %p36
      %p153 = pneg %p33
      %p154 = pneg %p57
      %p155 = pneg %p54
      %p156 = pneg %p83
      %p157 = pneg %p80
      %s158 = smul.u32 32, %s15
      %p159 = scmp.lt.s32.totalorder %s158, 63
      %s160 = scalar_select %p159, %s158, 63
      %s161 = smul.addr %s160, 4
      %s162 = scalar_lea.vmem %s2, %s161
      %p163 = pneg %p109
      %p164 = pneg %p106
      %p165 = scmp.lt.s32.totalorder %s15, 1
      %s166 = scalar_select %p165, %s15, 1
      %s167 = smul.addr %s166, 2
      %s168 = scalar_lea.vmem %s3, %s167
      %s169 = smul.u32 32, %s15
      %p170 = scmp.lt.s32.totalorder %s169, 63
      %s171 = scalar_select %p170, %s169, 63
      %s172 = smul.addr %s171, 4
      %s173 = scalar_lea.vmem %s0, %s172
      %s174 = smul.u32 32, %s15
      %s175 = smul.u32 32, %s15
      %p176 = scmp.lt.s32.totalorder %s175, 63
      %s177 = scalar_select %p176, %s175, 63
      %s178 = smul.addr %s177, 4
      %s179 = scalar_lea.vmem %s2, %s178
      %s180 = smul.u32 32, %s15
      %p181 = scmp.lt.s32.totalorder %s15, 1
      %s182 = scalar_select %p181, %s15, 1
      %s183 = smul.addr %s182, 2
      %s184 = scalar_lea.vmem %s3, %s183
      %v185 = vld [vmem:[%s173] sm:$0xf]
      %v186 = vld [vmem:[%s173 + $0x4] sm:$0xf]
      %v187 = vld [vmem:[%s173 + $0x8] sm:$0xf]
      %v188 = vld [vmem:[%s173 + $0xc] sm:$0xf]
      %v189 = vld [vmem:[%s173 + $0x10] sm:$0xf]
      %v190 = vld [vmem:[%s173 + $0x14] sm:$0xf]
      %v191 = vld [vmem:[%s173 + $0x18] sm:$0xf]
      %v192 = vld [vmem:[%s173 + $0x1c] sm:$0xf]
      %v193 = vld [vmem:[%s173 + $0x20] sm:$0xf]
      %v194 = vld [vmem:[%s173 + $0x24] sm:$0xf]
      %v195 = vld [vmem:[%s173 + $0x28] sm:$0xf]
      %v196 = vld [vmem:[%s173 + $0x2c] sm:$0xf]
      %v197 = vld [vmem:[%s173 + $0x30] sm:$0xf]
      %v198 = vld [vmem:[%s173 + $0x34] sm:$0xf]
      %v199 = vld [vmem:[%s173 + $0x38] sm:$0xf]
      %v200 = vld [vmem:[%s173 + $0x3c] sm:$0xf]
      %v201 = vld [vmem:[%s173 + $0x40] sm:$0xf]
      %v202 = vld [vmem:[%s173 + $0x44] sm:$0xf]
      %v203 = vld [vmem:[%s173 + $0x48] sm:$0xf]
      %v204 = vld [vmem:[%s173 + $0x4c] sm:$0xf]
      %v205 = vld [vmem:[%s173 + $0x50] sm:$0xf]
      %v206 = vld [vmem:[%s173 + $0x54] sm:$0xf]
      %v207 = vld [vmem:[%s173 + $0x58] sm:$0xf]
      %v208 = vld [vmem:[%s173 + $0x5c] sm:$0xf]
      %v209 = vld [vmem:[%s173 + $0x60] sm:$0xf]
      %v210 = vld [vmem:[%s173 + $0x64] sm:$0xf]
      %v211 = vld [vmem:[%s173 + $0x68] sm:$0xf]
      %v212 = vld [vmem:[%s173 + $0x6c] sm:$0xf]
      %v213 = vld [vmem:[%s173 + $0x70] sm:$0xf]
      %v214 = vld [vmem:[%s173 + $0x74] sm:$0xf]
      %v215 = vld [vmem:[%s173 + $0x78] sm:$0xf]
      %v216 = vld [vmem:[%s173 + $0x7c] sm:$0xf]
      %v217 = vld [vmem:[%s1] sm:$0xf]
      %v218 = vld [vmem:[%s1 + $0x4] sm:$0xf]
      %v219 = vld [vmem:[%s1 + $0x8] sm:$0xf]
      %v220 = vld [vmem:[%s1 + $0xc] sm:$0xf]
      %v221 = vld [vmem:[%s1 + $0x10] sm:$0xf]
      %v222 = vld [vmem:[%s1 + $0x14] sm:$0xf]
      %v223 = vld [vmem:[%s1 + $0x18] sm:$0xf]
      %v224 = vld [vmem:[%s1 + $0x1c] sm:$0xf]
      %v225 = vld [vmem:[%s1 + $0x20] sm:$0xf]
      %v226 = vld [vmem:[%s1 + $0x24] sm:$0xf]
      %v227 = vld [vmem:[%s1 + $0x28] sm:$0xf]
      %v228 = vld [vmem:[%s1 + $0x2c] sm:$0xf]
      %v229 = vld [vmem:[%s1 + $0x30] sm:$0xf]
      %v230 = vld [vmem:[%s1 + $0x34] sm:$0xf]
      %v231 = vld [vmem:[%s1 + $0x38] sm:$0xf]
      %v232 = vld [vmem:[%s1 + $0x3c] sm:$0xf]
      %v265 = vunpack.c.l.b16 %v185
      %v266 = vunpack.c.l.b16 %v186
      %v267 = vunpack.c.l.b16 %v187
      %v268 = vunpack.c.l.b16 %v188
      %v269 = vunpack.c.l.b16 %v189
      %v270 = vunpack.c.l.b16 %v190
      %v271 = vunpack.c.l.b16 %v191
      %v272 = vunpack.c.l.b16 %v192
      %v273 = vunpack.c.l.b16 %v193
      %v274 = vunpack.c.l.b16 %v194
      %v275 = vunpack.c.l.b16 %v195
      %v276 = vunpack.c.l.b16 %v196
      %v277 = vunpack.c.l.b16 %v197
      %v278 = vunpack.c.l.b16 %v198
      %v279 = vunpack.c.l.b16 %v199
      %v280 = vunpack.c.l.b16 %v200
      %v281 = vunpack.c.l.b16 %v201
      %v282 = vunpack.c.l.b16 %v202
      %v283 = vunpack.c.l.b16 %v203
      %v284 = vunpack.c.l.b16 %v204
      %v285 = vunpack.c.l.b16 %v205
      %v286 = vunpack.c.l.b16 %v206
      %v287 = vunpack.c.l.b16 %v207
      %v288 = vunpack.c.l.b16 %v208
      %v289 = vunpack.c.l.b16 %v209
      %v290 = vunpack.c.l.b16 %v210
      %v291 = vunpack.c.l.b16 %v211
      %v292 = vunpack.c.l.b16 %v212
      %v293 = vunpack.c.l.b16 %v213
      %v294 = vunpack.c.l.b16 %v214
      %v295 = vunpack.c.l.b16 %v215
      %v296 = vunpack.c.l.b16 %v216
      %v297 = vpack.c.b16 %v266, %v265
      %v298 = vpack.c.b16 %v268, %v267
      %v299 = vpack.c.b16 %v270, %v269
      %v300 = vpack.c.b16 %v272, %v271
      %v301 = vpack.c.b16 %v274, %v273
      %v302 = vpack.c.b16 %v276, %v275
      %v303 = vpack.c.b16 %v278, %v277
      %v304 = vpack.c.b16 %v280, %v279
      %v305 = vpack.c.b16 %v282, %v281
      %v306 = vpack.c.b16 %v284, %v283
      %v307 = vpack.c.b16 %v286, %v285
      %v308 = vpack.c.b16 %v288, %v287
      %v309 = vpack.c.b16 %v290, %v289
      %v310 = vpack.c.b16 %v292, %v291
      %v311 = vpack.c.b16 %v294, %v293
      %v312 = vpack.c.b16 %v296, %v295
      %v345 = vunpack.c.l.b16 %v217
      %v346 = vunpack.c.l.b16 %v218
      %v347 = vunpack.c.l.b16 %v219
      %v348 = vunpack.c.l.b16 %v220
      %v349 = vunpack.c.l.b16 %v221
      %v350 = vunpack.c.l.b16 %v222
      %v351 = vunpack.c.l.b16 %v223
      %v352 = vunpack.c.l.b16 %v224
      %v353 = vunpack.c.l.b16 %v225
      %v354 = vunpack.c.l.b16 %v226
      %v355 = vunpack.c.l.b16 %v227
      %v356 = vunpack.c.l.b16 %v228
      %v357 = vunpack.c.l.b16 %v229
      %v358 = vunpack.c.l.b16 %v230
      %v359 = vunpack.c.l.b16 %v231
      %v360 = vunpack.c.l.b16 %v232
      %v361 = vpack.c.b16 %v346, %v345
      %v362 = vpack.c.b16 %v348, %v347
      %v363 = vpack.c.b16 %v350, %v349
      %v364 = vpack.c.b16 %v352, %v351
      %v365 = vpack.c.b16 %v354, %v353
      %v366 = vpack.c.b16 %v356, %v355
      %v367 = vpack.c.b16 %v358, %v357
      %v368 = vpack.c.b16 %v360, %v359
      %377 = vmatpush.bf16.msra.mxu0 %v368
      %378 = vmatpush.bf16.msra.mxu0 %v367
      %379 = vmatpush.bf16.msra.mxu0 %v366
      %380 = vmatpush.bf16.msra.mxu0 %v365
      %381 = vmatpush.bf16.msra.mxu0 %v364
      %382 = vmatpush.bf16.msra.mxu0 %v363
      %383 = vmatpush.bf16.msra.mxu0 %v362
      %384 = vmatpush.bf16.msra.mxu0 %v361
      %385 = vmatmul.bf16.gmra.mxu0 %v297
      %v386 = vpop.f32.mrf.mxu0
      %v387 = vadd.f32 0.0, %v386
      %v388 = vpop.f32.mrf.mxu0
      %v389 = vadd.f32 0.0, %v388
      %390 = vmatmul.bf16.gmra.mxu0 %v298
      %v391 = vpop.f32.mrf.mxu0
      %v392 = vadd.f32 0.0, %v391
      %v393 = vpop.f32.mrf.mxu0
      %v394 = vadd.f32 0.0, %v393
      %395 = vmatmul.bf16.gmra.mxu0 %v299
      %v396 = vpop.f32.mrf.mxu0
      %v397 = vadd.f32 0.0, %v396
      %v398 = vpop.f32.mrf.mxu0
      %v399 = vadd.f32 0.0, %v398
      %400 = vmatmul.bf16.gmra.mxu0 %v300
      %v401 = vpop.f32.mrf.mxu0
      %v402 = vadd.f32 0.0, %v401
      %v403 = vpop.f32.mrf.mxu0
      %v404 = vadd.f32 0.0, %v403
      %405 = vmatmul.bf16.gmra.mxu0 %v301
      %v406 = vpop.f32.mrf.mxu0
      %v407 = vadd.f32 0.0, %v406
      %v408 = vpop.f32.mrf.mxu0
      %v409 = vadd.f32 0.0, %v408
      %410 = vmatmul.bf16.gmra.mxu0 %v302
      %v411 = vpop.f32.mrf.mxu0
      %v412 = vadd.f32 0.0, %v411
      %v413 = vpop.f32.mrf.mxu0
      %v414 = vadd.f32 0.0, %v413
      %415 = vmatmul.bf16.gmra.mxu0 %v303
      %v416 = vpop.f32.mrf.mxu0
      %v417 = vadd.f32 0.0, %v416
      %v418 = vpop.f32.mrf.mxu0
      %v419 = vadd.f32 0.0, %v418
      %420 = vmatmul.bf16.gmra.mxu0 %v304
      %v421 = vpop.f32.mrf.mxu0
      %v422 = vadd.f32 0.0, %v421
      %v423 = vpop.f32.mrf.mxu0
      %v424 = vadd.f32 0.0, %v423
      %425 = vmatmul.bf16.gmra.mxu0 %v305
      %v426 = vpop.f32.mrf.mxu0
      %v427 = vadd.f32 0.0, %v426
      %v428 = vpop.f32.mrf.mxu0
      %v429 = vadd.f32 0.0, %v428
      %430 = vmatmul.bf16.gmra.mxu0 %v306
      %v431 = vpop.f32.mrf.mxu0
      %v432 = vadd.f32 0.0, %v431
      %v433 = vpop.f32.mrf.mxu0
      %v434 = vadd.f32 0.0, %v433
      %435 = vmatmul.bf16.gmra.mxu0 %v307
      %v436 = vpop.f32.mrf.mxu0
      %v437 = vadd.f32 0.0, %v436
      %v438 = vpop.f32.mrf.mxu0
      %v439 = vadd.f32 0.0, %v438
      %440 = vmatmul.bf16.gmra.mxu0 %v308
      %v441 = vpop.f32.mrf.mxu0
      %v442 = vadd.f32 0.0, %v441
      %v443 = vpop.f32.mrf.mxu0
      %v444 = vadd.f32 0.0, %v443
      %445 = vmatmul.bf16.gmra.mxu0 %v309
      %v446 = vpop.f32.mrf.mxu0
      %v447 = vadd.f32 0.0, %v446
      %v448 = vpop.f32.mrf.mxu0
      %v449 = vadd.f32 0.0, %v448
      %450 = vmatmul.bf16.gmra.mxu0 %v310
      %v451 = vpop.f32.mrf.mxu0
      %v452 = vadd.f32 0.0, %v451
      %v453 = vpop.f32.mrf.mxu0
      %v454 = vadd.f32 0.0, %v453
      %455 = vmatmul.bf16.gmra.mxu0 %v311
      %v456 = vpop.f32.mrf.mxu0
      %v457 = vadd.f32 0.0, %v456
      %v458 = vpop.f32.mrf.mxu0
      %v459 = vadd.f32 0.0, %v458
      %460 = vmatmul.bf16.gmra.mxu0 %v312
      %v461 = vpop.f32.mrf.mxu0
      %v462 = vadd.f32 0.0, %v461
      %v463 = vpop.f32.mrf.mxu0
      %v464 = vadd.f32 0.0, %v463
      %465 = vdwg.mxu0
      %v466 = vpack.c.bf16 %v387, %v387
      %v467 = vpack.c.bf16 %v389, %v389
      %v468 = vpack.c.bf16 %v392, %v392
      %v469 = vpack.c.bf16 %v394, %v394
      %v470 = vpack.c.bf16 %v397, %v397
      %v471 = vpack.c.bf16 %v399, %v399
      %v472 = vpack.c.bf16 %v402, %v402
      %v473 = vpack.c.bf16 %v404, %v404
      %v474 = vpack.c.bf16 %v407, %v407
      %v475 = vpack.c.bf16 %v409, %v409
      %v476 = vpack.c.bf16 %v412, %v412
      %v477 = vpack.c.bf16 %v414, %v414
      %v478 = vpack.c.bf16 %v417, %v417
      %v479 = vpack.c.bf16 %v419, %v419
      %v480 = vpack.c.bf16 %v422, %v422
      %v481 = vpack.c.bf16 %v424, %v424
      %v482 = vpack.c.bf16 %v427, %v427
      %v483 = vpack.c.bf16 %v429, %v429
      %v484 = vpack.c.bf16 %v432, %v432
      %v485 = vpack.c.bf16 %v434, %v434
      %v486 = vpack.c.bf16 %v437, %v437
      %v487 = vpack.c.bf16 %v439, %v439
      %v488 = vpack.c.bf16 %v442, %v442
      %v489 = vpack.c.bf16 %v444, %v444
      %v490 = vpack.c.bf16 %v447, %v447
      %v491 = vpack.c.bf16 %v449, %v449
      %v492 = vpack.c.bf16 %v452, %v452
      %v493 = vpack.c.bf16 %v454, %v454
      %v494 = vpack.c.bf16 %v457, %v457
      %v495 = vpack.c.bf16 %v459, %v459
      %v496 = vpack.c.bf16 %v462, %v462
      %v497 = vpack.c.bf16 %v464, %v464
      %498 = vst [vmem:[%s179] sm:$0xf] %v466
      %499 = vst [vmem:[%s179 + $0x4] sm:$0xf] %v467
      %500 = vst [vmem:[%s179 + $0x8] sm:$0xf] %v468
      %501 = vst [vmem:[%s179 + $0xc] sm:$0xf] %v469
      %502 = vst [vmem:[%s179 + $0x10] sm:$0xf] %v470
      %503 = vst [vmem:[%s179 + $0x14] sm:$0xf] %v471
      %504 = vst [vmem:[%s179 + $0x18] sm:$0xf] %v472
      %505 = vst [vmem:[%s179 + $0x1c] sm:$0xf] %v473
      %506 = vst [vmem:[%s179 + $0x20] sm:$0xf] %v474
      %507 = vst [vmem:[%s179 + $0x24] sm:$0xf] %v475
      %508 = vst [vmem:[%s179 + $0x28] sm:$0xf] %v476
      %509 = vst [vmem:[%s179 + $0x2c] sm:$0xf] %v477
      %510 = vst [vmem:[%s179 + $0x30] sm:$0xf] %v478
      %511 = vst [vmem:[%s179 + $0x34] sm:$0xf] %v479
      %512 = vst [vmem:[%s179 + $0x38] sm:$0xf] %v480
      %513 = vst [vmem:[%s179 + $0x3c] sm:$0xf] %v481
      %514 = vst [vmem:[%s179 + $0x40] sm:$0xf] %v482
      %515 = vst [vmem:[%s179 + $0x44] sm:$0xf] %v483
      %516 = vst [vmem:[%s179 + $0x48] sm:$0xf] %v484
      %517 = vst [vmem:[%s179 + $0x4c] sm:$0xf] %v485
      %518 = vst [vmem:[%s179 + $0x50] sm:$0xf] %v486
      %519 = vst [vmem:[%s179 + $0x54] sm:$0xf] %v487
      %520 = vst [vmem:[%s179 + $0x58] sm:$0xf] %v488
      %521 = vst [vmem:[%s179 + $0x5c] sm:$0xf] %v489
      %522 = vst [vmem:[%s179 + $0x60] sm:$0xf] %v490
      %523 = vst [vmem:[%s179 + $0x64] sm:$0xf] %v491
      %524 = vst [vmem:[%s179 + $0x68] sm:$0xf] %v492
      %525 = vst [vmem:[%s179 + $0x6c] sm:$0xf] %v493
      %526 = vst [vmem:[%s179 + $0x70] sm:$0xf] %v494
      %527 = vst [vmem:[%s179 + $0x74] sm:$0xf] %v495
      %528 = vst [vmem:[%s179 + $0x78] sm:$0xf] %v496
      %529 = vst [vmem:[%s179 + $0x7c] sm:$0xf] %v497
      %v530 = vadd.f32 %v387, %v389
      %v531 = vadd.f32 %v530, %v392
      %v532 = vadd.f32 %v531, %v394
      %v533 = vadd.f32 %v532, %v397
      %v534 = vadd.f32 %v533, %v399
      %v535 = vadd.f32 %v534, %v402
      %v536 = vadd.f32 %v535, %v404
      %v537 = vadd.f32 %v536, %v407
      %v538 = vadd.f32 %v537, %v409
      %v539 = vadd.f32 %v538, %v412
      %v540 = vadd.f32 %v539, %v414
      %v541 = vadd.f32 %v540, %v417
      %v542 = vadd.f32 %v541, %v419
      %v543 = vadd.f32 %v542, %v422
      %v544 = vadd.f32 %v543, %v424
      %v545 = vadd.f32 %v544, %v427
      %v546 = vadd.f32 %v545, %v429
      %v547 = vadd.f32 %v546, %v432
      %v548 = vadd.f32 %v547, %v434
      %v549 = vadd.f32 %v548, %v437
      %v550 = vadd.f32 %v549, %v439
      %v551 = vadd.f32 %v550, %v442
      %v552 = vadd.f32 %v551, %v444
      %v553 = vadd.f32 %v552, %v447
      %v554 = vadd.f32 %v553, %v449
      %v555 = vadd.f32 %v554, %v452
      %v556 = vadd.f32 %v555, %v454
      %v557 = vadd.f32 %v556, %v457
      %v558 = vadd.f32 %v557, %v459
      %v559 = vadd.f32 %v558, %v462
      %v560 = vadd.f32 %v559, %v464
      %v561 = vrot.slane %v560, 4
      %v562 = vadd.f32 %v560, %v561
      %v563 = vrot.slane %v562, 2
      %v564 = vadd.f32 %v562, %v563
      %v565 = vrot.slane %v564, 1
      %v566 = vadd.f32 %v564, %v565
      %567 = vst [vmem:[%s184] sm:$0x1] %v566
      %v568 = vmul.f32 %v387, %v387
      %v569 = vmul.f32 %v389, %v389
      %v570 = vmul.f32 %v392, %v392
      %v571 = vmul.f32 %v394, %v394
      %v572 = vmul.f32 %v397, %v397
      %v573 = vmul.f32 %v399, %v399
      %v574 = vmul.f32 %v402, %v402
      %v575 = vmul.f32 %v404, %v404
      %v576 = vmul.f32 %v407, %v407
      %v577 = vmul.f32 %v409, %v409
      %v578 = vmul.f32 %v412, %v412
      %v579 = vmul.f32 %v414, %v414
      %v580 = vmul.f32 %v417, %v417
      %v581 = vmul.f32 %v419, %v419
      %v582 = vmul.f32 %v422, %v422
      %v583 = vmul.f32 %v424, %v424
      %v584 = vmul.f32 %v427, %v427
      %v585 = vmul.f32 %v429, %v429
      %v586 = vmul.f32 %v432, %v432
      %v587 = vmul.f32 %v434, %v434
      %v588 = vmul.f32 %v437, %v437
      %v589 = vmul.f32 %v439, %v439
      %v590 = vmul.f32 %v442, %v442
      %v591 = vmul.f32 %v444, %v444
      %v592 = vmul.f32 %v447, %v447
      %v593 = vmul.f32 %v449, %v449
      %v594 = vmul.f32 %v452, %v452
      %v595 = vmul.f32 %v454, %v454
      %v596 = vmul.f32 %v457, %v457
      %v597 = vmul.f32 %v459, %v459
      %v598 = vmul.f32 %v462, %v462
      %v599 = vmul.f32 %v464, %v464
      %v600 = vadd.f32 %v568, %v569
      %v601 = vadd.f32 %v600, %v570
      %v602 = vadd.f32 %v601, %v571
      %v603 = vadd.f32 %v602, %v572
      %v604 = vadd.f32 %v603, %v573
      %v605 = vadd.f32 %v604, %v574
      %v606 = vadd.f32 %v605, %v575
      %v607 = vadd.f32 %v606, %v576
      %v608 = vadd.f32 %v607, %v577
      %v609 = vadd.f32 %v608, %v578
      %v610 = vadd.f32 %v609, %v579
      %v611 = vadd.f32 %v610, %v580
      %v612 = vadd.f32 %v611, %v581
      %v613 = vadd.f32 %v612, %v582
      %v614 = vadd.f32 %v613, %v583
      %v615 = vadd.f32 %v614, %v584
      %v616 = vadd.f32 %v615, %v585
      %v617 = vadd.f32 %v616, %v586
      %v618 = vadd.f32 %v617, %v587
      %v619 = vadd.f32 %v618, %v588
      %v620 = vadd.f32 %v619, %v589
      %v621 = vadd.f32 %v620, %v590
      %v622 = vadd.f32 %v621, %v591
      %v623 = vadd.f32 %v622, %v592
      %v624 = vadd.f32 %v623, %v593
      %v625 = vadd.f32 %v624, %v594
      %v626 = vadd.f32 %v625, %v595
      %v627 = vadd.f32 %v626, %v596
      %v628 = vadd.f32 %v627, %v597
      %v629 = vadd.f32 %v628, %v598
      %v630 = vadd.f32 %v629, %v599
      %v631 = vrot.slane %v630, 4
      %v632 = vadd.f32 %v630, %v631
      %v633 = vrot.slane %v632, 2
      %v634 = vadd.f32 %v632, %v633
      %v635 = vrot.slane %v634, 1
      %v636 = vadd.f32 %v634, %v635
      %637 = vst [vmem:[%s184 + $0x1] sm:$0x1] %v636
      %s638 = smul.u32 32, %s15
      %p639 = scmp.lt.s32.totalorder %s638, 63
      %s640 = scalar_select %p639, %s638, 63
      %s641 = smul.addr %s640, 4
      %s642 = scalar_lea.vmem %s2, %s641
      %p643 = scmp.lt.s32.totalorder %s15, 1
      %s644 = scalar_select %p643, %s15, 1
      %s645 = smul.addr %s644, 2
      %s646 = scalar_lea.vmem %s3, %s645
      // Predicated region
      $region29: #{bottleneck_forward.5} parent=27 // pred_check
        %p647 = pneg %p80
      $region30: #{bottleneck_forward.5} parent=27 // pred_check_branch
        %649 = sbr.rel (%p647) target = $region32
      $region31: #{bottleneck_forward.5} parent=27 // pred_region
        %s650 = smul.u32 32, %s15
      $region32: #{bottleneck_forward.5} parent=27 // pred_fallthru
        _
      // Predicated region
      $region33: #{bottleneck_forward.5} parent=27 // pred_check
        %p651 = pneg %p106
      $region34: #{bottleneck_forward.5} parent=27 // pred_check_branch
        %653 = sbr.rel (%p651) target = $region36
      $region35: #{bottleneck_forward.5} parent=27 // pred_region
        _
      $region36: #{bottleneck_forward.5} parent=27 // pred_fallthru
        _
    $region28: #{bottleneck_forward.5} parent=5 // pred_fallthru
      _
    %p654 = scmp.le.s32.totalorder 2, %s10
    // Predicated region
    $region37: #{bottleneck_forward.5} parent=5 // pred_check
      %p655 = pneg %p654
    $region38: #{bottleneck_forward.5} parent=5 // pred_check_branch
      %657 = sbr.rel (%p655) target = $region40
    $region39: #{bottleneck_forward.5} parent=5 // pred_region
      %s658 = ssub.s32 %s10, 2
      // Predicated region
      $region41: #{bottleneck_forward.5} parent=39 // pred_check
        %p659 = pneg %p86
      $region42: #{bottleneck_forward.5} parent=39 // pred_check_branch
        %661 = sbr.rel (%p659) target = $region44
      $region43: #{bottleneck_forward.5} parent=39 // pred_region
        %s662 = smul.u32 32, %s16
        %p663 = scmp.lt.s32.totalorder %s662, 63
        %s664 = scalar_select %p663, %s662, 63
        %s665 = smul.addr %s664, 4
        %s666 = scalar_lea.vmem %s2, %s665
      $region44: #{bottleneck_forward.5} parent=39 // pred_fallthru
        _
      // Predicated region
      $region45: #{bottleneck_forward.5} parent=39 // pred_check
        %p667 = pneg %p112
      $region46: #{bottleneck_forward.5} parent=39 // pred_check_branch
        %669 = sbr.rel (%p667) target = $region48
      $region47: #{bottleneck_forward.5} parent=39 // pred_region
        %p670 = scmp.lt.s32.totalorder %s16, 1
        %s671 = scalar_select %p670, %s16, 1
        %s672 = smul.addr %s671, 2
        %s673 = scalar_lea.vmem %s3, %s672
      $region48: #{bottleneck_forward.5} parent=39 // pred_fallthru
        _
    $region40: #{bottleneck_forward.5} parent=5 // pred_fallthru
      _
  $region6: #{bottleneck_forward.5} parent=0 // loop_footer
    %s14 = sadd.s32 1, %s10
  $region7: #{bottleneck_forward.5} parent=0 // loop_footer_branch
    %9 = sbr.rel target = $region3
  $region8: #{bottleneck_forward.5} parent=0 // loop_exit
    _

// kernel: bottleneck_forward.7
$region0: #{bottleneck_forward.7}
  #allocation0 [shape = 'u32[]', space=smem, size = 0x4, offset = 0x4, fixed_abs, tag = 'smem constant byte address 0x4 - core index']
  #allocation1 [shape = 'u32[72,128]{1,0:T(1,128)}', space=vmem, size = 0x9000, scoped, tag = 'internal scratch']
  %s0 = inlined_call_operand.vmem [shape: bf16[128,128], index: 0, kind: input, shape index: {}]
  %s1 = inlined_call_operand.vmem [shape: bf16[128,128], index: 1, kind: input, shape index: {}]
  %s2 = inlined_call_operand.vmem [shape: f32[1,128], index: 2, kind: input, shape index: {}]
  %s3 = inlined_call_operand.vmem [shape: f32[1,128], index: 3, kind: input, shape index: {}]
  %s4 = inlined_call_operand.vmem [shape: bf16[128,128], index: 4, kind: output, shape index: {0}]
  %s5 = inlined_call_operand.vmem [shape: f32[2,2,128], index: 5, kind: output, shape index: {1}]
  %6 = xla_tuple %s4, %s5
  %s7 = sld [smem:[#allocation0]]
  $region57: #{bottleneck_forward.7} parent=0
    _
  %s9 = ssub.s32 1, %s7
  %s10 = scalar_select 0, %s9, %s7
  loop: start=0, step=1, limit=4
  $region2: #{bottleneck_forward.7} parent=0 // loop_pre_header
    _
  $region3: #{bottleneck_forward.7} parent=0 // loop_header
    %s12 = sphi 0, %s16
    %p13 = scmp.ge.s32.totalorder %s12, 4
    %s22 = sphi 0, %s24
    %s25 = sphi 0, %s22
    %s26 = sphi 0, %s25
    %s42 = sphi 0, %s26
    %s46 = sphi 0, %s46
    %s48 = sphi 0, %s46
    %s49 = sphi 0, %s48
    %s63 = sphi 0, %s49
    %s67 = sphi 0, %s67
    %s69 = sphi 0, %s67
    %s70 = sphi 0, %s69
    %s84 = sphi 0, %s70
    %s88 = sphi 0, %s88
    %s90 = sphi 0, %s88
    %s91 = sphi 0, %s90
    %s105 = sphi 0, %s91
    %s111 = sphi 0, %s113
    %s114 = sphi 0, %s111
    %s115 = sphi 0, %s114
    %s131 = sphi 0, %s115
    %s137 = sphi 0, %s139
    %s140 = sphi 0, %s137
    %s141 = sphi 0, %s140
    %s157 = sphi 0, %s141
  $region4: #{bottleneck_forward.7} parent=0 // loop_header_branch
    %15 = sbr.rel (%p13) target = $region8
  $region5: #{bottleneck_forward.7} parent=0 // loop_body
    %s17 = ssub.s32 %s12, 1
    %s18 = ssub.s32 %s12, 2
    %s19 = sadd.s32 %s12, 1
    %s20 = ssub.s32 %s12, %s19
    %p21 = scmp.eq.s32.totalorder %s20, 0
    %s23 = sadd.s32 %s22, 1
    %s24 = scalar_select %p21, %s22, %s23
    %p27 = pneg %p21
    %p28 = scmp.eq.s32.totalorder %s12, 1
    %p29 = por %p27, %p28
    %p30 = scmp.ne.s32.totalorder %s22, %s25
    %p31 = scmp.eq.s32.totalorder %s12, 0
    %p32 = por %p30, %p31
    %p33 = scmp.ne.s32.totalorder %s22, %s25
    %p34 = scmp.eq.s32.totalorder %s17, 1
    %p35 = por %p33, %p34
    %p36 = scmp.ne.s32.totalorder %s25, %s26
    %p37 = scmp.eq.s32.totalorder %s17, 0
    %p38 = por %p36, %p37
    %p39 = scmp.ne.s32.totalorder %s25, %s26
    %p40 = scmp.eq.s32.totalorder %s18, 1
    %p41 = por %p39, %p40
    %p43 = scmp.ne.s32.totalorder %s26, %s42
    %p44 = scmp.eq.s32.totalorder %s18, 0
    %p45 = por %p43, %p44
    %s47 = sadd.s32 %s46, 1
    %p50 = scmp.eq.s32.totalorder %s12, 1
    %p51 = scmp.ne.s32.totalorder %s46, %s48
    %p52 = scmp.eq.s32.totalorder %s12, 0
    %p53 = por %p51, %p52
    %p54 = scmp.ne.s32.totalorder %s46, %s48
    %p55 = scmp.eq.s32.totalorder %s17, 1
    %p56 = por %p54, %p55
    %p57 = scmp.ne.s32.totalorder %s48, %s49
    %p58 = scmp.eq.s32.totalorder %s17, 0
    %p59 = por %p57, %p58
    %p60 = scmp.ne.s32.totalorder %s48, %s49
    %p61 = scmp.eq.s32.totalorder %s18, 1
    %p62 = por %p60, %p61
    %p64 = scmp.ne.s32.totalorder %s49, %s63
    %p65 = scmp.eq.s32.totalorder %s18, 0
    %p66 = por %p64, %p65
    %s68 = sadd.s32 %s67, 1
    %p71 = scmp.eq.s32.totalorder %s12, 1
    %p72 = scmp.ne.s32.totalorder %s67, %s69
    %p73 = scmp.eq.s32.totalorder %s12, 0
    %p74 = por %p72, %p73
    %p75 = scmp.ne.s32.totalorder %s67, %s69
    %p76 = scmp.eq.s32.totalorder %s17, 1
    %p77 = por %p75, %p76
    %p78 = scmp.ne.s32.totalorder %s69, %s70
    %p79 = scmp.eq.s32.totalorder %s17, 0
    %p80 = por %p78, %p79
    %p81 = scmp.ne.s32.totalorder %s69, %s70
    %p82 = scmp.eq.s32.totalorder %s18, 1
    %p83 = por %p81, %p82
    %p85 = scmp.ne.s32.totalorder %s70, %s84
    %p86 = scmp.eq.s32.totalorder %s18, 0
    %p87 = por %p85, %p86
    %s89 = sadd.s32 %s88, 1
    %p92 = scmp.eq.s32.totalorder %s12, 1
    %p93 = scmp.ne.s32.totalorder %s88, %s90
    %p94 = scmp.eq.s32.totalorder %s12, 0
    %p95 = por %p93, %p94
    %p96 = scmp.ne.s32.totalorder %s88, %s90
    %p97 = scmp.eq.s32.totalorder %s17, 1
    %p98 = por %p96, %p97
    %p99 = scmp.ne.s32.totalorder %s90, %s91
    %p100 = scmp.eq.s32.totalorder %s17, 0
    %p101 = por %p99, %p100
    %p102 = scmp.ne.s32.totalorder %s90, %s91
    %p103 = scmp.eq.s32.totalorder %s18, 1
    %p104 = por %p102, %p103
    %p106 = scmp.ne.s32.totalorder %s91, %s105
    %p107 = scmp.eq.s32.totalorder %s18, 0
    %p108 = por %p106, %p107
    %s109 = ssub.s32 %s12, %s19
    %p110 = scmp.eq.s32.totalorder %s109, 0
    %s112 = sadd.s32 %s111, 1
    %s113 = scalar_select %p110, %s111, %s112
    %p116 = pneg %p110
    %p117 = scmp.eq.s32.totalorder %s12, 1
    %p118 = por %p116, %p117
    %p119 = scmp.ne.s32.totalorder %s111, %s114
    %p120 = scmp.eq.s32.totalorder %s12, 0
    %p121 = por %p119, %p120
    %p122 = scmp.ne.s32.totalorder %s111, %s114
    %p123 = scmp.eq.s32.totalorder %s17, 1
    %p124 = por %p122, %p123
    %p125 = scmp.ne.s32.totalorder %s114, %s115
    %p126 = scmp.eq.s32.totalorder %s17, 0
    %p127 = por %p125, %p126
    %p128 = scmp.ne.s32.totalorder %s114, %s115
    %p129 = scmp.eq.s32.totalorder %s18, 1
    %p130 = por %p128, %p129
    %p132 = scmp.ne.s32.totalorder %s115, %s131
    %p133 = scmp.eq.s32.totalorder %s18, 0
    %p134 = por %p132, %p133
    %s135 = ssub.s32 %s12, %s19
    %p136 = scmp.eq.s32.totalorder %s135, 0
    %s138 = sadd.s32 %s137, 1
    %s139 = scalar_select %p136, %s137, %s138
    %p142 = pneg %p136
    %p143 = scmp.eq.s32.totalorder %s12, 1
    %p144 = por %p142, %p143
    %p145 = scmp.ne.s32.totalorder %s137, %s140
    %p146 = scmp.eq.s32.totalorder %s12, 0
    %p147 = por %p145, %p146
    %p148 = scmp.ne.s32.totalorder %s137, %s140
    %p149 = scmp.eq.s32.totalorder %s17, 1
    %p150 = por %p148, %p149
    %p151 = scmp.ne.s32.totalorder %s140, %s141
    %p152 = scmp.eq.s32.totalorder %s17, 0
    %p153 = por %p151, %p152
    %p154 = scmp.ne.s32.totalorder %s140, %s141
    %p155 = scmp.eq.s32.totalorder %s18, 1
    %p156 = por %p154, %p155
    %p158 = scmp.ne.s32.totalorder %s141, %s157
    %p159 = scmp.eq.s32.totalorder %s18, 0
    %p160 = por %p158, %p159
    %p161 = scmp.le.s32.totalorder 1, %s12
    %p162 = scmp.lt.s32.totalorder %s12, 3
    %p163 = pnand %p161, %p162
    %p164 = pneg %p163
    // Predicated region
    $region9: #{bottleneck_forward.7} parent=5 // pred_check
      _
    $region10: #{bottleneck_forward.7} parent=5 // pred_check_branch
      %166 = sbr.rel (%p163) target = $region12
    $region11: #{bottleneck_forward.7} parent=5 // pred_region
      %s167 = ssub.s32 %s12, 1
      // Predicated region
      $region13: #{bottleneck_forward.7} parent=11 // pred_check
        %p168 = pneg %p59
      $region14: #{bottleneck_forward.7} parent=11 // pred_check_branch
        %170 = sbr.rel (%p168) target = $region16
      $region15: #{bottleneck_forward.7} parent=11 // pred_region
        _
      $region16: #{bottleneck_forward.7} parent=11 // pred_fallthru
        _
      // Predicated region
      $region17: #{bottleneck_forward.7} parent=11 // pred_check
        %p171 = pneg %p80
      $region18: #{bottleneck_forward.7} parent=11 // pred_check_branch
        %173 = sbr.rel (%p171) target = $region20
      $region19: #{bottleneck_forward.7} parent=11 // pred_region
        _
      $region20: #{bottleneck_forward.7} parent=11 // pred_fallthru
        _
      // Predicated region
      $region21: #{bottleneck_forward.7} parent=11 // pred_check
        %p174 = pneg %p101
      $region22: #{bottleneck_forward.7} parent=11 // pred_check_branch
        %176 = sbr.rel (%p174) target = $region24
      $region23: #{bottleneck_forward.7} parent=11 // pred_region
        _
      $region24: #{bottleneck_forward.7} parent=11 // pred_fallthru
        _
    $region12: #{bottleneck_forward.7} parent=5 // pred_fallthru
      _
    %p177 = scmp.lt.s32.totalorder %s12, 2
    // Predicated region
    $region25: #{bottleneck_forward.7} parent=5 // pred_check
      %p178 = pneg %p177
    $region26: #{bottleneck_forward.7} parent=5 // pred_check_branch
      %180 = sbr.rel (%p178) target = $region28
    $region27: #{bottleneck_forward.7} parent=5 // pred_region
      // Predicated region
      $region29: #{bottleneck_forward.7} parent=27 // pred_check
        %p181 = pneg %p32
      $region30: #{bottleneck_forward.7} parent=27 // pred_check_branch
        %183 = sbr.rel (%p181) target = $region32
      $region31: #{bottleneck_forward.7} parent=27 // pred_region
        %s184 = smul.u32 8, %s12
        %p185 = scmp.lt.s32.totalorder %s184, 15
        %s186 = scalar_select %p185, %s184, 15
        %s187 = smul.addr %s186, 4
        %s188 = scalar_lea.vmem %s0, %s187
        %s189 = smul.u32 8, %s12
      $region32: #{bottleneck_forward.7} parent=27 // pred_fallthru
        _
    $region28: #{bottleneck_forward.7} parent=5 // pred_fallthru
      _
    %p190 = scmp.le.s32.totalorder 1, %s12
    %p191 = scmp.lt.s32.totalorder %s12, 3
    %p192 = pnand %p190, %p191
    %p193 = pneg %p192
    // Predicated region
    $region33: #{bottleneck_forward.7} parent=5 // pred_check
      _
    $region34: #{bottleneck_forward.7} parent=5 // pred_check_branch
      %195 = sbr.rel (%p192) target = $region36
    $region35: #{bottleneck_forward.7} parent=5 // pred_region
      %s196 = ssub.s32 %s12, 1
      %s197 = smul.u32 8, %s17
      %p198 = scmp.lt.s32.totalorder %s197, 15
      %s199 = scalar_select %p198, %s197, 15
      %s200 = smul.addr %s199, 4
      %s201 = scalar_lea.vmem %s0, %s200
      %p202 = pneg %p38
      %p203 = pneg %p35
      %p204 = pneg %p59
      %p205 = pneg %p56
      %p206 = pneg %p80
      %p207 = pneg %p77
      %p208 = pneg %p101
      %p209 = pneg %p98
      %p210 = pneg %p127
      %p211 = pneg %p124
      %s212 = smul.u32 8, %s17
      %p213 = scmp.lt.s32.totalorder %s212, 15
      %s214 = scalar_select %p213, %s212, 15
      %s215 = smul.addr %s214, 4
      %s216 = scalar_lea.vmem %s4, %s215
      %p217 = pneg %p153
      %p218 = pneg %p150
      %p219 = scmp.lt.s32.totalorder %s17, 1
      %s220 = scalar_select %p219, %s17, 1
      %s221 = smul.addr %s220, 2
      %s222 = scalar_lea.vmem %s5, %s221
      %s223 = smul.u32 8, %s17
      %p224 = scmp.lt.s32.totalorder %s223, 15
      %s225 = scalar_select %p224, %s223, 15
      %s226 = smul.addr %s225, 4
      %s227 = scalar_lea.vmem %s0, %s226
      %s228 = smul.u32 8, %s17
      %s229 = smul.u32 8, %s17
      %p230 = scmp.lt.s32.totalorder %s229, 15
      %s231 = scalar_select %p230, %s229, 15
      %s232 = smul.addr %s231, 4
      %s233 = scalar_lea.vmem %s4, %s232
      %s234 = smul.u32 8, %s17
      %p235 = scmp.lt.s32.totalorder %s17, 1
      %s236 = scalar_select %p235, %s17, 1
      %s237 = smul.addr %s236, 2
      %s238 = scalar_lea.vmem %s5, %s237
      %v239 = vld [vmem:[%s227] sm:$0xf]
      %v240 = vld [vmem:[%s227 + $0x4] sm:$0xf]
      %v241 = vld [vmem:[%s227 + $0x8] sm:$0xf]
      %v242 = vld [vmem:[%s227 + $0xc] sm:$0xf]
      %v243 = vld [vmem:[%s227 + $0x10] sm:$0xf]
      %v244 = vld [vmem:[%s227 + $0x14] sm:$0xf]
      %v245 = vld [vmem:[%s227 + $0x18] sm:$0xf]
      %v246 = vld [vmem:[%s227 + $0x1c] sm:$0xf]
      %v247 = vunpack.c.l.bf16 %v239
      %v248 = vunpack.c.l.bf16 %v240
      %v249 = vunpack.c.l.bf16 %v241
      %v250 = vunpack.c.l.bf16 %v242
      %v251 = vunpack.c.l.bf16 %v243
      %v252 = vunpack.c.l.bf16 %v244
      %v253 = vunpack.c.l.bf16 %v245
      %v254 = vunpack.c.l.bf16 %v246
      %v255 = vld [vmem:[%s2] sm:$0x1]
      %v257 = vperm.slane %v255, 0
      %v259 = vmul.f32 %v247, %v257
      %v260 = vmul.f32 %v248, %v257
      %v261 = vmul.f32 %v249, %v257
      %v262 = vmul.f32 %v250, %v257
      %v263 = vmul.f32 %v251, %v257
      %v264 = vmul.f32 %v252, %v257
      %v265 = vmul.f32 %v253, %v257
      %v266 = vmul.f32 %v254, %v257
      %v267 = vld [vmem:[%s3] sm:$0x1]
      %v269 = vperm.slane %v267, 0
      %v271 = vadd.f32 %v259, %v269
      %v272 = vadd.f32 %v260, %v269
      %v273 = vadd.f32 %v261, %v269
      %v274 = vadd.f32 %v262, %v269
      %v275 = vadd.f32 %v263, %v269
      %v276 = vadd.f32 %v264, %v269
      %v277 = vadd.f32 %v265, %v269
      %v278 = vadd.f32 %v266, %v269
      %v279 = vmax.f32 %v271, 0.0
      %v280 = vmax.f32 %v272, 0.0
      %v281 = vmax.f32 %v273, 0.0
      %v282 = vmax.f32 %v274, 0.0
      %v283 = vmax.f32 %v275, 0.0
      %v284 = vmax.f32 %v276, 0.0
      %v285 = vmax.f32 %v277, 0.0
      %v286 = vmax.f32 %v278, 0.0
      %v287 = vpack.c.bf16 %v280, %v279
      %v288 = vpack.c.bf16 %v282, %v281
      %v289 = vpack.c.bf16 %v284, %v283
      %v290 = vpack.c.bf16 %v286, %v285
      %v291 = vld [vmem:[%s1] sm:$0xf]
      %v292 = vld [vmem:[%s1 + $0x4] sm:$0xf]
      %v293 = vld [vmem:[%s1 + $0x8] sm:$0xf]
      %v294 = vld [vmem:[%s1 + $0xc] sm:$0xf]
      %v295 = vld [vmem:[%s1 + $0x10] sm:$0xf]
      %v296 = vld [vmem:[%s1 + $0x14] sm:$0xf]
      %v297 = vld [vmem:[%s1 + $0x18] sm:$0xf]
      %v298 = vld [vmem:[%s1 + $0x1c] sm:$0xf]
      %v299 = vld [vmem:[%s1 + $0x20] sm:$0xf]
      %v300 = vld [vmem:[%s1 + $0x24] sm:$0xf]
      %v301 = vld [vmem:[%s1 + $0x28] sm:$0xf]
      %v302 = vld [vmem:[%s1 + $0x2c] sm:$0xf]
      %v303 = vld [vmem:[%s1 + $0x30] sm:$0xf]
      %v304 = vld [vmem:[%s1 + $0x34] sm:$0xf]
      %v305 = vld [vmem:[%s1 + $0x38] sm:$0xf]
      %v306 = vld [vmem:[%s1 + $0x3c] sm:$0xf]
      %v323 = vunpack.c.l.b16 %v291
      %v324 = vunpack.c.l.b16 %v292
      %v325 = vunpack.c.l.b16 %v293
      %v326 = vunpack.c.l.b16 %v294
      %v327 = vunpack.c.l.b16 %v295
      %v328 = vunpack.c.l.b16 %v296
      %v329 = vunpack.c.l.b16 %v297
      %v330 = vunpack.c.l.b16 %v298
      %v331 = vunpack.c.l.b16 %v299
      %v332 = vunpack.c.l.b16 %v300
      %v333 = vunpack.c.l.b16 %v301
      %v334 = vunpack.c.l.b16 %v302
      %v335 = vunpack.c.l.b16 %v303
      %v336 = vunpack.c.l.b16 %v304
      %v337 = vunpack.c.l.b16 %v305
      %v338 = vunpack.c.l.b16 %v306
      %v339 = vpack.c.b16 %v324, %v323
      %v340 = vpack.c.b16 %v326, %v325
      %v341 = vpack.c.b16 %v328, %v327
      %v342 = vpack.c.b16 %v330, %v329
      %v343 = vpack.c.b16 %v332, %v331
      %v344 = vpack.c.b16 %v334, %v333
      %v345 = vpack.c.b16 %v336, %v335
      %v346 = vpack.c.b16 %v338, %v337
      %355 = vmatpush.bf16.msra.mxu0 %v346
      %356 = vmatpush.bf16.msra.mxu0 %v345
      %357 = vmatpush.bf16.msra.mxu0 %v344
      %358 = vmatpush.bf16.msra.mxu0 %v343
      %359 = vmatpush.bf16.msra.mxu0 %v342
      %360 = vmatpush.bf16.msra.mxu0 %v341
      %361 = vmatpush.bf16.msra.mxu0 %v340
      %362 = vmatpush.bf16.msra.mxu0 %v339
      %363 = vmatmul.bf16.gmra.mxu0 %v287
      %v364 = vpop.f32.mrf.mxu0
      %v365 = vadd.f32 0.0, %v364
      %v366 = vpop.f32.mrf.mxu0
      %v367 = vadd.f32 0.0, %v366
      %368 = vmatmul.bf16.gmra.mxu0 %v288
      %v369 = vpop.f32.mrf.mxu0
      %v370 = vadd.f32 0.0, %v369
      %v371 = vpop.f32.mrf.mxu0
      %v372 = vadd.f32 0.0, %v371
      %373 = vmatmul.bf16.gmra.mxu0 %v289
      %v374 = vpop.f32.mrf.mxu0
      %v375 = vadd.f32 0.0, %v374
      %v376 = vpop.f32.mrf.mxu0
      %v377 = vadd.f32 0.0, %v376
      %378 = vmatmul.bf16.gmra.mxu0 %v290
      %v379 = vpop.f32.mrf.mxu0
      %v380 = vadd.f32 0.0, %v379
      %v381 = vpop.f32.mrf.mxu0
      %v382 = vadd.f32 0.0, %v381
      %383 = vdwg.mxu0
      %v384 = vpack.c.bf16 %v365, %v365
      %v385 = vpack.c.bf16 %v367, %v367
      %v386 = vpack.c.bf16 %v370, %v370
      %v387 = vpack.c.bf16 %v372, %v372
      %v388 = vpack.c.bf16 %v375, %v375
      %v389 = vpack.c.bf16 %v377, %v377
      %v390 = vpack.c.bf16 %v380, %v380
      %v391 = vpack.c.bf16 %v382, %v382
      %392 = vst [vmem:[%s233] sm:$0xf] %v384
      %393 = vst [vmem:[%s233 + $0x4] sm:$0xf] %v385
      %394 = vst [vmem:[%s233 + $0x8] sm:$0xf] %v386
      %395 = vst [vmem:[%s233 + $0xc] sm:$0xf] %v387
      %396 = vst [vmem:[%s233 + $0x10] sm:$0xf] %v388
      %397 = vst [vmem:[%s233 + $0x14] sm:$0xf] %v389
      %398 = vst [vmem:[%s233 + $0x18] sm:$0xf] %v390
      %399 = vst [vmem:[%s233 + $0x1c] sm:$0xf] %v391
      %v400 = vadd.f32 %v365, %v367
      %v401 = vadd.f32 %v400, %v370
      %v402 = vadd.f32 %v401, %v372
      %v403 = vadd.f32 %v402, %v375
      %v404 = vadd.f32 %v403, %v377
      %v405 = vadd.f32 %v404, %v380
      %v406 = vadd.f32 %v405, %v382
      %v407 = vrot.slane %v406, 4
      %v408 = vadd.f32 %v406, %v407
      %v409 = vrot.slane %v408, 2
      %v410 = vadd.f32 %v408, %v409
      %v411 = vrot.slane %v410, 1
      %v412 = vadd.f32 %v410, %v411
      %413 = vst [vmem:[%s238] sm:$0x1] %v412
      %v414 = vmul.f32 %v365, %v365
      %v415 = vmul.f32 %v367, %v367
      %v416 = vmul.f32 %v370, %v370
      %v417 = vmul.f32 %v372, %v372
      %v418 = vmul.f32 %v375, %v375
      %v419 = vmul.f32 %v377, %v377
      %v420 = vmul.f32 %v380, %v380
      %v421 = vmul.f32 %v382, %v382
      %v422 = vadd.f32 %v414, %v415
      %v423 = vadd.f32 %v422, %v416
      %v424 = vadd.f32 %v423, %v417
      %v425 = vadd.f32 %v424, %v418
      %v426 = vadd.f32 %v425, %v419
      %v427 = vadd.f32 %v426, %v420
      %v428 = vadd.f32 %v427, %v421
      %v429 = vrot.slane %v428, 4
      %v430 = vadd.f32 %v428, %v429
      %v431 = vrot.slane %v430, 2
      %v432 = vadd.f32 %v430, %v431
      %v433 = vrot.slane %v432, 1
      %v434 = vadd.f32 %v432, %v433
      %435 = vst [vmem:[%s238 + $0x1] sm:$0x1] %v434
      %s436 = smul.u32 8, %s17
      %p437 = scmp.lt.s32.totalorder %s436, 15
      %s438 = scalar_select %p437, %s436, 15
      %s439 = smul.addr %s438, 4
      %s440 = scalar_lea.vmem %s4, %s439
      %p441 = scmp.lt.s32.totalorder %s17, 1
      %s442 = scalar_select %p441, %s17, 1
      %s443 = smul.addr %s442, 2
      %s444 = scalar_lea.vmem %s5, %s443
      // Predicated region
      $region37: #{bottleneck_forward.7} parent=35 // pred_check
        %p445 = pneg %p124
      $region38: #{bottleneck_forward.7} parent=35 // pred_check_branch
        %447 = sbr.rel (%p445) target = $region40
      $region39: #{bottleneck_forward.7} parent=35 // pred_region
        %s448 = smul.u32 8, %s17
      $region40: #{bottleneck_forward.7} parent=35 // pred_fallthru
        _
      // Predicated region
      $region41: #{bottleneck_forward.7} parent=35 // pred_check
        %p449 = pneg %p150
      $region42: #{bottleneck_forward.7} parent=35 // pred_check_branch
        %451 = sbr.rel (%p449) target = $region44
      $region43: #{bottleneck_forward.7} parent=35 // pred_region
        _
      $region44: #{bottleneck_forward.7} parent=35 // pred_fallthru
        _
    $region36: #{bottleneck_forward.7} parent=5 // pred_fallthru
      _
    %p452 = scmp.le.s32.totalorder 2, %s12
    // Predicated region
    $region45: #{bottleneck_forward.7} parent=5 // pred_check
      %p453 = pneg %p452
    $region46: #{bottleneck_forward.7} parent=5 // pred_check_branch
      %455 = sbr.rel (%p453) target = $region48
    $region47: #{bottleneck_forward.7} parent=5 // pred_region
      %s456 = ssub.s32 %s12, 2
      // Predicated region
      $region49: #{bottleneck_forward.7} parent=47 // pred_check
        %p457 = pneg %p130
      $region50: #{bottleneck_forward.7} parent=47 // pred_check_branch
        %459 = sbr.rel (%p457) target = $region52
      $region51: #{bottleneck_forward.7} parent=47 // pred_region
        %s460 = smul.u32 8, %s18
        %p461 = scmp.lt.s32.totalorder %s460, 15
        %s462 = scalar_select %p461, %s460, 15
        %s463 = smul.addr %s462, 4
        %s464 = scalar_lea.vmem %s4, %s463
      $region52: #{bottleneck_forward.7} parent=47 // pred_fallthru
        _
      // Predicated region
      $region53: #{bottleneck_forward.7} parent=47 // pred_check
        %p465 = pneg %p156
      $region54: #{bottleneck_forward.7} parent=47 // pred_check_branch
        %467 = sbr.rel (%p465) target = $region56
      $region55: #{bottleneck_forward.7} parent=47 // pred_region
        %p468 = scmp.lt.s32.totalorder %s18, 1
        %s469 = scalar_select %p468, %s18, 1
        %s470 = smul.addr %s469, 2
        %s471 = scalar_lea.vmem %s5, %s470
      $region56: #{bottleneck_forward.7} parent=47 // pred_fallthru
        _
    $region48: #{bottleneck_forward.7} parent=5 // pred_fallthru
      _
  $region6: #{bottleneck_forward.7} parent=0 // loop_footer
    %s16 = sadd.s32 1, %s12
  $region7: #{bottleneck_forward.7} parent=0 // loop_footer_branch
    %11 = sbr.rel target = $region3
  $region8: #{bottleneck_forward.7} parent=0 // loop_exit
    _

// kernel: bottleneck_forward.6
$region0: #{bottleneck_forward.6}
  #allocation0 [shape = 'u32[]', space=smem, size = 0x4, offset = 0x4, fixed_abs, tag = 'smem constant byte address 0x4 - core index']
  #allocation1 [shape = 'u32[72,128]{1,0:T(1,128)}', space=vmem, size = 0x9000, scoped, tag = 'internal scratch']
  %s0 = inlined_call_operand.vmem [shape: bf16[8,9,9,128], index: 0, kind: input, shape index: {}]
  %s1 = inlined_call_operand.vmem [shape: bf16[9,128,128], index: 1, kind: input, shape index: {}]
  %s2 = inlined_call_operand.vmem [shape: bf16[2,8,8,128], index: 2, kind: output, shape index: {0}]
  %s3 = inlined_call_operand.vmem [shape: f32[2,2,128], index: 3, kind: output, shape index: {1}]
  %4 = xla_tuple %s2, %s3
  %s5 = sld [smem:[#allocation0]]
  $region49: #{bottleneck_forward.6} parent=0
    _
  %s7 = ssub.s32 1, %s5
  %s8 = scalar_select 0, %s7, %s5
  loop: start=0, step=1, limit=4
  $region2: #{bottleneck_forward.6} parent=0 // loop_pre_header
    _
  $region3: #{bottleneck_forward.6} parent=0 // loop_header
    %s10 = sphi 0, %s14
    %p11 = scmp.ge.s32.totalorder %s10, 4
    %s20 = sphi 0, %s22
    %s23 = sphi 0, %s20
    %s24 = sphi 0, %s23
    %s40 = sphi 0, %s24
    %s44 = sphi 0, %s44
    %s46 = sphi 0, %s44
    %s47 = sphi 0, %s46
    %s61 = sphi 0, %s47
    %s67 = sphi 0, %s69
    %s70 = sphi 0, %s67
    %s71 = sphi 0, %s70
    %s87 = sphi 0, %s71
    %s93 = sphi 0, %s95
    %s96 = sphi 0, %s93
    %s97 = sphi 0, %s96
    %s113 = sphi 0, %s97
  $region4: #{bottleneck_forward.6} parent=0 // loop_header_branch
    %13 = sbr.rel (%p11) target = $region8
  $region5: #{bottleneck_forward.6} parent=0 // loop_body
    %s15 = ssub.s32 %s10, 1
    %s16 = ssub.s32 %s10, 2
    %s17 = sadd.s32 %s10, 1
    %s18 = ssub.s32 %s10, %s17
    %p19 = scmp.eq.s32.totalorder %s18, 0
    %s21 = sadd.s32 %s20, 1
    %s22 = scalar_select %p19, %s20, %s21
    %p25 = pneg %p19
    %p26 = scmp.eq.s32.totalorder %s10, 1
    %p27 = por %p25, %p26
    %p28 = scmp.ne.s32.totalorder %s20, %s23
    %p29 = scmp.eq.s32.totalorder %s10, 0
    %p30 = por %p28, %p29
    %p31 = scmp.ne.s32.totalorder %s20, %s23
    %p32 = scmp.eq.s32.totalorder %s15, 1
    %p33 = por %p31, %p32
    %p34 = scmp.ne.s32.totalorder %s23, %s24
    %p35 = scmp.eq.s32.totalorder %s15, 0
    %p36 = por %p34, %p35
    %p37 = scmp.ne.s32.totalorder %s23, %s24
    %p38 = scmp.eq.s32.totalorder %s16, 1
    %p39 = por %p37, %p38
    %p41 = scmp.ne.s32.totalorder %s24, %s40
    %p42 = scmp.eq.s32.totalorder %s16, 0
    %p43 = por %p41, %p42
    %s45 = sadd.s32 %s44, 1
    %p48 = scmp.eq.s32.totalorder %s10, 1
    %p49 = scmp.ne.s32.totalorder %s44, %s46
    %p50 = scmp.eq.s32.totalorder %s10, 0
    %p51 = por %p49, %p50
    %p52 = scmp.ne.s32.totalorder %s44, %s46
    %p53 = scmp.eq.s32.totalorder %s15, 1
    %p54 = por %p52, %p53
    %p55 = scmp.ne.s32.totalorder %s46, %s47
    %p56 = scmp.eq.s32.totalorder %s15, 0
    %p57 = por %p55, %p56
    %p58 = scmp.ne.s32.totalorder %s46, %s47
    %p59 = scmp.eq.s32.totalorder %s16, 1
    %p60 = por %p58, %p59
    %p62 = scmp.ne.s32.totalorder %s47, %s61
    %p63 = scmp.eq.s32.totalorder %s16, 0
    %p64 = por %p62, %p63
    %s65 = ssub.s32 %s10, %s17
    %p66 = scmp.eq.s32.totalorder %s65, 0
    %s68 = sadd.s32 %s67, 1
    %s69 = scalar_select %p66, %s67, %s68
    %p72 = pneg %p66
    %p73 = scmp.eq.s32.totalorder %s10, 1
    %p74 = por %p72, %p73
    %p75 = scmp.ne.s32.totalorder %s67, %s70
    %p76 = scmp.eq.s32.totalorder %s10, 0
    %p77 = por %p75, %p76
    %p78 = scmp.ne.s32.totalorder %s67, %s70
    %p79 = scmp.eq.s32.totalorder %s15, 1
    %p80 = por %p78, %p79
    %p81 = scmp.ne.s32.totalorder %s70, %s71
    %p82 = scmp.eq.s32.totalorder %s15, 0
    %p83 = por %p81, %p82
    %p84 = scmp.ne.s32.totalorder %s70, %s71
    %p85 = scmp.eq.s32.totalorder %s16, 1
    %p86 = por %p84, %p85
    %p88 = scmp.ne.s32.totalorder %s71, %s87
    %p89 = scmp.eq.s32.totalorder %s16, 0
    %p90 = por %p88, %p89
    %s91 = ssub.s32 %s10, %s17
    %p92 = scmp.eq.s32.totalorder %s91, 0
    %s94 = sadd.s32 %s93, 1
    %s95 = scalar_select %p92, %s93, %s94
    %p98 = pneg %p92
    %p99 = scmp.eq.s32.totalorder %s10, 1
    %p100 = por %p98, %p99
    %p101 = scmp.ne.s32.totalorder %s93, %s96
    %p102 = scmp.eq.s32.totalorder %s10, 0
    %p103 = por %p101, %p102
    %p104 = scmp.ne.s32.totalorder %s93, %s96
    %p105 = scmp.eq.s32.totalorder %s15, 1
    %p106 = por %p104, %p105
    %p107 = scmp.ne.s32.totalorder %s96, %s97
    %p108 = scmp.eq.s32.totalorder %s15, 0
    %p109 = por %p107, %p108
    %p110 = scmp.ne.s32.totalorder %s96, %s97
    %p111 = scmp.eq.s32.totalorder %s16, 1
    %p112 = por %p110, %p111
    %p114 = scmp.ne.s32.totalorder %s97, %s113
    %p115 = scmp.eq.s32.totalorder %s16, 0
    %p116 = por %p114, %p115
    %p117 = scmp.le.s32.totalorder 1, %s10
    %p118 = scmp.lt.s32.totalorder %s10, 3
    %p119 = pnand %p117, %p118
    %p120 = pneg %p119
    // Predicated region
    $region9: #{bottleneck_forward.6} parent=5 // pred_check
      _
    $region10: #{bottleneck_forward.6} parent=5 // pred_check_branch
      %122 = sbr.rel (%p119) target = $region12
    $region11: #{bottleneck_forward.6} parent=5 // pred_region
      %s123 = ssub.s32 %s10, 1
      // Predicated region
      $region13: #{bottleneck_forward.6} parent=11 // pred_check
        %p124 = pneg %p57
      $region14: #{bottleneck_forward.6} parent=11 // pred_check_branch
        %126 = sbr.rel (%p124) target = $region16
      $region15: #{bottleneck_forward.6} parent=11 // pred_region
        _
      $region16: #{bottleneck_forward.6} parent=11 // pred_fallthru
        _
    $region12: #{bottleneck_forward.6} parent=5 // pred_fallthru
      _
    %p127 = scmp.lt.s32.totalorder %s10, 2
    // Predicated region
    $region17: #{bottleneck_forward.6} parent=5 // pred_check
      %p128 = pneg %p127
    $region18: #{bottleneck_forward.6} parent=5 // pred_check_branch
      %130 = sbr.rel (%p128) target = $region20
    $region19: #{bottleneck_forward.6} parent=5 // pred_region
      // Predicated region
      $region21: #{bottleneck_forward.6} parent=19 // pred_check
        %p131 = pneg %p30
      $region22: #{bottleneck_forward.6} parent=19 // pred_check_branch
        %133 = sbr.rel (%p131) target = $region24
      $region23: #{bottleneck_forward.6} parent=19 // pred_region
        %s134 = smul.u32 4, %s10
        %p135 = scmp.lt.s32.totalorder %s134, 7
        %s136 = scalar_select %p135, %s134, 7
        %s137 = smul.addr %s136, 18
        %s138 = smul.addr %s137, 4
        %s139 = scalar_lea.vmem %s0, %s138
        %s140 = smul.u32 4, %s10
      $region24: #{bottleneck_forward.6} parent=19 // pred_fallthru
        _
    $region20: #{bottleneck_forward.6} parent=5 // pred_fallthru
      _
    %p141 = scmp.le.s32.totalorder 1, %s10
    %p142 = scmp.lt.s32.totalorder %s10, 3
    %p143 = pnand %p141, %p142
    %p144 = pneg %p143
    // Predicated region
    $region25: #{bottleneck_forward.6} parent=5 // pred_check
      _
    $region26: #{bottleneck_forward.6} parent=5 // pred_check_branch
      %146 = sbr.rel (%p143) target = $region28
    $region27: #{bottleneck_forward.6} parent=5 // pred_region
      %s147 = ssub.s32 %s10, 1
      %s148 = smul.u32 4, %s15
      %p149 = scmp.lt.s32.totalorder %s148, 7
      %s150 = scalar_select %p149, %s148, 7
      %s151 = smul.addr %s150, 18
      %s152 = smul.addr %s151, 4
      %s153 = scalar_lea.vmem %s0, %s152
      %p154 = pneg %p36
      %p155 = pneg %p33
      %p156 = pneg %p57
      %p157 = pneg %p54
      %p158 = pneg %p83
      %p159 = pneg %p80
      %p160 = scmp.lt.s32.totalorder %s15, 1
      %s161 = scalar_select %p160, %s15, 1
      %s162 = smul.addr %s161, 8
      %s163 = smul.addr %s162, 4
      %s164 = scalar_lea.vmem %s2, %s163
      %p165 = pneg %p109
      %p166 = pneg %p106
      %p167 = scmp.lt.s32.totalorder %s15, 1
      %s168 = scalar_select %p167, %s15, 1
      %s169 = smul.addr %s168, 2
      %s170 = scalar_lea.vmem %s3, %s169
      %s171 = smul.u32 4, %s15
      %p172 = scmp.lt.s32.totalorder %s171, 7
      %s173 = scalar_select %p172, %s171, 7
      %s174 = smul.addr %s173, 18
      %s175 = smul.addr %s174, 4
      %s176 = scalar_lea.vmem %s0, %s175
      %s177 = smul.u32 4, %s15
      %p178 = scmp.lt.s32.totalorder %s15, 1
      %s179 = scalar_select %p178, %s15, 1
      %s180 = smul.addr %s179, 8
      %s181 = smul.addr %s180, 4
      %s182 = scalar_lea.vmem %s2, %s181
      %p183 = scmp.lt.s32.totalorder %s15, 1
      %s184 = scalar_select %p183, %s15, 1
      %s185 = smul.addr %s184, 2
      %s186 = scalar_lea.vmem %s3, %s185
      %v187 = vld [vmem:[%s176] sm:$0xf]
      %v188 = vld [vmem:[%s176 + $0x8] sm:$0xf]
      %v189 = vld [vmem:[%s176 + $0x10] sm:$0xf]
      %v190 = vld [vmem:[%s176 + $0x18] sm:$0xf]
      %v191 = vld [vmem:[%s176 + $0x20] sm:$0xf]
      %v192 = vld [vmem:[%s176 + $0x28] sm:$0xf]
      %v193 = vld [vmem:[%s176 + $0x30] sm:$0xf]
      %v194 = vld [vmem:[%s176 + $0x38] sm:$0xf]
      %v195 = vld [vmem:[%s1] sm:$0xf]
      %v196 = vld [vmem:[%s1 + $0x4] sm:$0xf]
      %v197 = vld [vmem:[%s1 + $0x8] sm:$0xf]
      %v198 = vld [vmem:[%s1 + $0xc] sm:$0xf]
      %v199 = vld [vmem:[%s1 + $0x10] sm:$0xf]
      %v200 = vld [vmem:[%s1 + $0x14] sm:$0xf]
      %v201 = vld [vmem:[%s1 + $0x18] sm:$0xf]
      %v202 = vld [vmem:[%s1 + $0x1c] sm:$0xf]
      %v203 = vld [vmem:[%s1 + $0x20] sm:$0xf]
      %v204 = vld [vmem:[%s1 + $0x24] sm:$0xf]
      %v205 = vld [vmem:[%s1 + $0x28] sm:$0xf]
      %v206 = vld [vmem:[%s1 + $0x2c] sm:$0xf]
      %v207 = vld [vmem:[%s1 + $0x30] sm:$0xf]
      %v208 = vld [vmem:[%s1 + $0x34] sm:$0xf]
      %v209 = vld [vmem:[%s1 + $0x38] sm:$0xf]
      %v210 = vld [vmem:[%s1 + $0x3c] sm:$0xf]
      %s211 = scalar_lea.vmem %s176, 72
      %v212 = vld [vmem:[%s211] sm:$0xf]
      %v213 = vld [vmem:[%s211 + $0x8] sm:$0xf]
      %v214 = vld [vmem:[%s211 + $0x10] sm:$0xf]
      %v215 = vld [vmem:[%s211 + $0x18] sm:$0xf]
      %v216 = vld [vmem:[%s211 + $0x20] sm:$0xf]
      %v217 = vld [vmem:[%s211 + $0x28] sm:$0xf]
      %v218 = vld [vmem:[%s211 + $0x30] sm:$0xf]
      %v219 = vld [vmem:[%s211 + $0x38] sm:$0xf]
      %s220 = scalar_lea.vmem %s1, 64
      %v221 = vld [vmem:[%s220] sm:$0xf]
      %v222 = vld [vmem:[%s220 + $0x4] sm:$0xf]
      %v223 = vld [vmem:[%s220 + $0x8] sm:$0xf]
      %v224 = vld [vmem:[%s220 + $0xc] sm:$0xf]
      %v225 = vld [vmem:[%s220 + $0x10] sm:$0xf]
      %v226 = vld [vmem:[%s220 + $0x14] sm:$0xf]
      %v227 = vld [vmem:[%s220 + $0x18] sm:$0xf]
      %v228 = vld [vmem:[%s220 + $0x1c] sm:$0xf]
      %v229 = vld [vmem:[%s220 + $0x20] sm:$0xf]
      %v230 = vld [vmem:[%s220 + $0x24] sm:$0xf]
      %v231 = vld [vmem:[%s220 + $0x28] sm:$0xf]
      %v232 = vld [vmem:[%s220 + $0x2c] sm:$0xf]
      %v233 = vld [vmem:[%s220 + $0x30] sm:$0xf]
      %v234 = vld [vmem:[%s220 + $0x34] sm:$0xf]
      %v235 = vld [vmem:[%s220 + $0x38] sm:$0xf]
      %v236 = vld [vmem:[%s220 + $0x3c] sm:$0xf]
      %v245 = vunpack.c.l.b16 %v212
      %v246 = vunpack.c.l.b16 %v213
      %v247 = vunpack.c.l.b16 %v214
      %v248 = vunpack.c.l.b16 %v215
      %v249 = vunpack.c.l.b16 %v216
      %v250 = vunpack.c.l.b16 %v217
      %v251 = vunpack.c.l.b16 %v218
      %v252 = vunpack.c.l.b16 %v219
      %v253 = vpack.c.b16 %v246, %v245
      %v254 = vpack.c.b16 %v248, %v247
      %v255 = vpack.c.b16 %v250, %v249
      %v256 = vpack.c.b16 %v252, %v251
      %v277 = vunpack.c.l.b16 %v221
      %v278 = vunpack.c.l.b16 %v222
      %v279 = vunpack.c.l.b16 %v223
      %v280 = vunpack.c.l.b16 %v224
      %v281 = vunpack.c.l.b16 %v225
      %v282 = vunpack.c.l.b16 %v226
      %v283 = vunpack.c.l.b16 %v227
      %v284 = vunpack.c.l.b16 %v228
      %v285 = vunpack.c.l.b16 %v229
      %v286 = vunpack.c.l.b16 %v230
      %v287 = vunpack.c.l.b16 %v231
      %v288 = vunpack.c.l.b16 %v232
      %v289 = vunpack.c.l.b16 %v233
      %v290 = vunpack.c.l.b16 %v234
      %v291 = vunpack.c.l.b16 %v235
      %v292 = vunpack.c.l.b16 %v236
      %v293 = vpack.c.b16 %v278, %v277
      %v294 = vpack.c.b16 %v280, %v279
      %v295 = vpack.c.b16 %v282, %v281
      %v296 = vpack.c.b16 %v284, %v283
      %v297 = vpack.c.b16 %v286, %v285
      %v298 = vpack.c.b16 %v288, %v287
      %v299 = vpack.c.b16 %v290, %v289
      %v300 = vpack.c.b16 %v292, %v291
      %309 = vmatpush.bf16.msra.mxu0 %v300
      %310 = vmatpush.bf16.msra.mxu0 %v299
      %311 = vmatpush.bf16.msra.mxu0 %v298
      %312 = vmatpush.bf16.msra.mxu0 %v297
      %313 = vmatpush.bf16.msra.mxu0 %v296
      %314 = vmatpush.bf16.msra.mxu0 %v295
      %315 = vmatpush.bf16.msra.mxu0 %v294
      %316 = vmatpush.bf16.msra.mxu0 %v293
      %317 = vmatmul.bf16.gmra.mxu0 %v253
      %v318 = vpop.f32.mrf.mxu0
      %v319 = vadd.f32 0.0, %v318
      %v320 = vpop.f32.mrf.mxu0
      %v321 = vadd.f32 0.0, %v320
      %322 = vmatmul.bf16.gmra.mxu0 %v254
      %v323 = vpop.f32.mrf.mxu0
      %v324 = vadd.f32 0.0, %v323
      %v325 = vpop.f32.mrf.mxu0
      %v326 = vadd.f32 0.0, %v325
      %327 = vmatmul.bf16.gmra.mxu0 %v255
      %v328 = vpop.f32.mrf.mxu0
      %v329 = vadd.f32 0.0, %v328
      %v330 = vpop.f32.mrf.mxu0
      %v331 = vadd.f32 0.0, %v330
      %332 = vmatmul.bf16.gmra.mxu0 %v256
      %v333 = vpop.f32.mrf.mxu0
      %v334 = vadd.f32 0.0, %v333
      %v335 = vpop.f32.mrf.mxu0
      %v336 = vadd.f32 0.0, %v335
      %337 = vdwg.mxu0
      %v346 = vunpack.c.l.b16 %v187
      %v347 = vunpack.c.l.b16 %v188
      %v348 = vunpack.c.l.b16 %v189
      %v349 = vunpack.c.l.b16 %v190
      %v350 = vunpack.c.l.b16 %v191
      %v351 = vunpack.c.l.b16 %v192
      %v352 = vunpack.c.l.b16 %v193
      %v353 = vunpack.c.l.b16 %v194
      %v354 = vpack.c.b16 %v347, %v346
      %v355 = vpack.c.b16 %v349, %v348
      %v356 = vpack.c.b16 %v351, %v350
      %v357 = vpack.c.b16 %v353, %v352
      %v378 = vunpack.c.l.b16 %v195
      %v379 = vunpack.c.l.b16 %v196
      %v380 = vunpack.c.l.b16 %v197
      %v381 = vunpack.c.l.b16 %v198
      %v382 = vunpack.c.l.b16 %v199
      %v383 = vunpack.c.l.b16 %v200
      %v384 = vunpack.c.l.b16 %v201
      %v385 = vunpack.c.l.b16 %v202
      %v386 = vunpack.c.l.b16 %v203
      %v387 = vunpack.c.l.b16 %v204
      %v388 = vunpack.c.l.b16 %v205
      %v389 = vunpack.c.l.b16 %v206
      %v390 = vunpack.c.l.b16 %v207
      %v391 = vunpack.c.l.b16 %v208
      %v392 = vunpack.c.l.b16 %v209
      %v393 = vunpack.c.l.b16 %v210
      %v394 = vpack.c.b16 %v379, %v378
      %v395 = vpack.c.b16 %v381, %v380
      %v396 = vpack.c.b16 %v383, %v382
      %v397 = vpack.c.b16 %v385, %v384
      %v398 = vpack.c.b16 %v387, %v386
      %v399 = vpack.c.b16 %v389, %v388
      %v400 = vpack.c.b16 %v391, %v390
      %v401 = vpack.c.b16 %v393, %v392
      %410 = vmatpush.bf16.msra.mxu0 %v401
      %411 = vmatpush.bf16.msra.mxu0 %v400
      %412 = vmatpush.bf16.msra.mxu0 %v399
      %413 = vmatpush.bf16.msra.mxu0 %v398
      %414 = vmatpush.bf16.msra.mxu0 %v397
      %415 = vmatpush.bf16.msra.mxu0 %v396
      %416 = vmatpush.bf16.msra.mxu0 %v395
      %417 = vmatpush.bf16.msra.mxu0 %v394
      %418 = vmatmul.bf16.gmra.mxu0 %v354
      %v419 = vpop.f32.mrf.mxu0
      %v420 = vadd.f32 %v319, %v419
      %v421 = vpop.f32.mrf.mxu0
      %v422 = vadd.f32 %v321, %v421
      %423 = vmatmul.bf16.gmra.mxu0 %v355
      %v424 = vpop.f32.mrf.mxu0
      %v425 = vadd.f32 %v324, %v424
      %v426 = vpop.f32.mrf.mxu0
      %v427 = vadd.f32 %v326, %v426
      %428 = vmatmul.bf16.gmra.mxu0 %v356
      %v429 = vpop.f32.mrf.mxu0
      %v430 = vadd.f32 %v329, %v429
      %v431 = vpop.f32.mrf.mxu0
      %v432 = vadd.f32 %v331, %v431
      %433 = vmatmul.bf16.gmra.mxu0 %v357
      %v434 = vpop.f32.mrf.mxu0
      %v435 = vadd.f32 %v334, %v434
      %v436 = vpop.f32.mrf.mxu0
      %v437 = vadd.f32 %v336, %v436
      %438 = vdwg.mxu0
      %v439 = vld [vmem:[%s176] sm:$0xf]
      %v440 = vld [vmem:[%s176 + $0x4] sm:$0x1]
      %v441 = vld [vmem:[%s176 + $0x8] sm:$0xf]
      %v442 = vld [vmem:[%s176 + $0xc] sm:$0x1]
      %v443 = vld [vmem:[%s176 + $0x10] sm:$0xf]
      %v444 = vld [vmem:[%s176 + $0x14] sm:$0x1]
      %v445 = vld [vmem:[%s176 + $0x18] sm:$0xf]
      %v446 = vld [vmem:[%s176 + $0x1c] sm:$0x1]
      %v447 = vld [vmem:[%s176 + $0x20] sm:$0xf]
      %v448 = vld [vmem:[%s176 + $0x24] sm:$0x1]
      %v449 = vld [vmem:[%s176 + $0x28] sm:$0xf]
      %v450 = vld [vmem:[%s176 + $0x2c] sm:$0x1]
      %v451 = vld [vmem:[%s176 + $0x30] sm:$0xf]
      %v452 = vld [vmem:[%s176 + $0x34] sm:$0x1]
      %v453 = vld [vmem:[%s176 + $0x38] sm:$0xf]
      %v454 = vld [vmem:[%s176 + $0x3c] sm:$0x1]
      %vm455 = vsmask.f32 3328
      %vm456 = vsmask.f32 7440
      %vm457 = vmor %vm455, %vm456
      %v459 = vshrl.u32 %v439, 16
      %v461 = vrot.slane %v459, 4
      %v462 = vshll.u32 %v439, 16
      %v464 = vrot.slane %v462, 5
      %v465 = vor.u32 %v461, %v464
      %v466 = vrot.slane %v465, 4
      %v468 = vshll.u32 %v440, 16
      %v470 = vrot.slane %v468, 5
      %v471 = vsel %vm457, %v466, %v470
      %v473 = vshrl.u32 %v441, 16
      %v475 = vrot.slane %v473, 4
      %v476 = vshll.u32 %v441, 16
      %v478 = vrot.slane %v476, 5
      %v479 = vor.u32 %v475, %v478
      %v480 = vrot.slane %v479, 4
      %v482 = vshll.u32 %v442, 16
      %v484 = vrot.slane %v482, 5
      %v485 = vsel %vm457, %v480, %v484
      %v487 = vshrl.u32 %v443, 16
      %v489 = vrot.slane %v487, 4
      %v490 = vshll.u32 %v443, 16
      %v492 = vrot.slane %v490, 5
      %v493 = vor.u32 %v489, %v492
      %v494 = vrot.slane %v493, 4
      %v496 = vshll.u32 %v444, 16
      %v498 = vrot.slane %v496, 5
      %v499 = vsel %vm457, %v494, %v498
      %v501 = vshrl.u32 %v445, 16
      %v503 = vrot.slane %v501, 4
      %v504 = vshll.u32 %v445, 16
      %v506 = vrot.slane %v504, 5
      %v507 = vor.u32 %v503, %v506
      %v508 = vrot.slane %v507, 4
      %v510 = vshll.u32 %v446, 16
      %v512 = vrot.slane %v510, 5
      %v513 = vsel %vm457, %v508, %v512
      %v515 = vshrl.u32 %v447, 16
      %v517 = vrot.slane %v515, 4
      %v518 = vshll.u32 %v447, 16
      %v520 = vrot.slane %v518, 5
      %v521 = vor.u32 %v517, %v520
      %v522 = vrot.slane %v521, 4
      %v524 = vshll.u32 %v448, 16
      %v526 = vrot.slane %v524, 5
      %v527 = vsel %vm457, %v522, %v526
      %v529 = vshrl.u32 %v449, 16
      %v531 = vrot.slane %v529, 4
      %v532 = vshll.u32 %v449, 16
      %v534 = vrot.slane %v532, 5
      %v535 = vor.u32 %v531, %v534
      %v536 = vrot.slane %v535, 4
      %v538 = vshll.u32 %v450, 16
      %v540 = vrot.slane %v538, 5
      %v541 = vsel %vm457, %v536, %v540
      %v543 = vshrl.u32 %v451, 16
      %v545 = vrot.slane %v543, 4
      %v546 = vshll.u32 %v451, 16
      %v548 = vrot.slane %v546, 5
      %v549 = vor.u32 %v545, %v548
      %v550 = vrot.slane %v549, 4
      %v552 = vshll.u32 %v452, 16
      %v554 = vrot.slane %v552, 5
      %v555 = vsel %vm457, %v550, %v554
      %v557 = vshrl.u32 %v453, 16
      %v559 = vrot.slane %v557, 4
      %v560 = vshll.u32 %v453, 16
      %v562 = vrot.slane %v560, 5
      %v563 = vor.u32 %v559, %v562
      %v564 = vrot.slane %v563, 4
      %v566 = vshll.u32 %v454, 16
      %v568 = vrot.slane %v566, 5
      %v569 = vsel %vm457, %v564, %v568
      %s570 = scalar_lea.vmem %s1, 128
      %v571 = vld [vmem:[%s570] sm:$0xf]
      %v572 = vld [vmem:[%s570 + $0x4] sm:$0xf]
      %v573 = vld [vmem:[%s570 + $0x8] sm:$0xf]
      %v574 = vld [vmem:[%s570 + $0xc] sm:$0xf]
      %v575 = vld [vmem:[%s570 + $0x10] sm:$0xf]
      %v576 = vld [vmem:[%s570 + $0x14] sm:$0xf]
      %v577 = vld [vmem:[%s570 + $0x18] sm:$0xf]
      %v578 = vld [vmem:[%s570 + $0x1c] sm:$0xf]
      %v579 = vld [vmem:[%s570 + $0x20] sm:$0xf]
      %v580 = vld [vmem:[%s570 + $0x24] sm:$0xf]
      %v581 = vld [vmem:[%s570 + $0x28] sm:$0xf]
      %v582 = vld [vmem:[%s570 + $0x2c] sm:$0xf]
      %v583 = vld [vmem:[%s570 + $0x30] sm:$0xf]
      %v584 = vld [vmem:[%s570 + $0x34] sm:$0xf]
      %v585 = vld [vmem:[%s570 + $0x38] sm:$0xf]
      %v586 = vld [vmem:[%s570 + $0x3c] sm:$0xf]
      %v587 = vunpack.c.l.b16 %v471
      %v588 = vunpack.c.l.b16 %v485
      %v589 = vunpack.c.l.b16 %v499
      %v590 = vunpack.c.l.b16 %v513
      %v591 = vunpack.c.l.b16 %v527
      %v592 = vunpack.c.l.b16 %v541
      %v593 = vunpack.c.l.b16 %v555
      %v594 = vunpack.c.l.b16 %v569
      %v595 = vpack.c.b16 %v588, %v587
      %v596 = vpack.c.b16 %v590, %v589
      %v597 = vpack.c.b16 %v592, %v591
      %v598 = vpack.c.b16 %v594, %v593
      %v619 = vunpack.c.l.b16 %v571
      %v620 = vunpack.c.l.b16 %v572
      %v621 = vunpack.c.l.b16 %v573
      %v622 = vunpack.c.l.b16 %v574
      %v623 = vunpack.c.l.b16 %v575
      %v624 = vunpack.c.l.b16 %v576
      %v625 = vunpack.c.l.b16 %v577
      %v626 = vunpack.c.l.b16 %v578
      %v627 = vunpack.c.l.b16 %v579
      %v628 = vunpack.c.l.b16 %v580
      %v629 = vunpack.c.l.b16 %v581
      %v630 = vunpack.c.l.b16 %v582
      %v631 = vunpack.c.l.b16 %v583
      %v632 = vunpack.c.l.b16 %v584
      %v633 = vunpack.c.l.b16 %v585
      %v634 = vunpack.c.l.b16 %v586
      %v635 = vpack.c.b16 %v620, %v619
      %v636 = vpack.c.b16 %v622, %v621
      %v637 = vpack.c.b16 %v624, %v623
      %v638 = vpack.c.b16 %v626, %v625
      %v639 = vpack.c.b16 %v628, %v627
      %v640 = vpack.c.b16 %v630, %v629
      %v641 = vpack.c.b16 %v632, %v631
      %v642 = vpack.c.b16 %v634, %v633
      %651 = vmatpush.bf16.msra.mxu0 %v642
      %652 = vmatpush.bf16.msra.mxu0 %v641
      %653 = vmatpush.bf16.msra.mxu0 %v640
      %654 = vmatpush.bf16.msra.mxu0 %v639
      %655 = vmatpush.bf16.msra.mxu0 %v638
      %656 = vmatpush.bf16.msra.mxu0 %v637
      %657 = vmatpush.bf16.msra.mxu0 %v636
      %658 = vmatpush.bf16.msra.mxu0 %v635
      %659 = vmatmul.bf16.gmra.mxu0 %v595
      %v660 = vpop.f32.mrf.mxu0
      %v661 = vadd.f32 0.0, %v660
      %v662 = vpop.f32.mrf.mxu0
      %v663 = vadd.f32 0.0, %v662
      %664 = vmatmul.bf16.gmra.mxu0 %v596
      %v665 = vpop.f32.mrf.mxu0
      %v666 = vadd.f32 0.0, %v665
      %v667 = vpop.f32.mrf.mxu0
      %v668 = vadd.f32 0.0, %v667
      %669 = vmatmul.bf16.gmra.mxu0 %v597
      %v670 = vpop.f32.mrf.mxu0
      %v671 = vadd.f32 0.0, %v670
      %v672 = vpop.f32.mrf.mxu0
      %v673 = vadd.f32 0.0, %v672
      %674 = vmatmul.bf16.gmra.mxu0 %v598
      %v675 = vpop.f32.mrf.mxu0
      %v676 = vadd.f32 0.0, %v675
      %v677 = vpop.f32.mrf.mxu0
      %v678 = vadd.f32 0.0, %v677
      %679 = vdwg.mxu0
      %v680 = vadd.f32 %v420, %v661
      %v681 = vadd.f32 %v422, %v663
      %v682 = vadd.f32 %v425, %v666
      %v683 = vadd.f32 %v427, %v668
      %v684 = vadd.f32 %v430, %v671
      %v685 = vadd.f32 %v432, %v673
      %v686 = vadd.f32 %v435, %v676
      %v687 = vadd.f32 %v437, %v678
      %s688 = scalar_lea.vmem %s176, 144
      %v689 = vld [vmem:[%s688] sm:$0xf]
      %v690 = vld [vmem:[%s688 + $0x8] sm:$0xf]
      %v691 = vld [vmem:[%s688 + $0x10] sm:$0xf]
      %v692 = vld [vmem:[%s688 + $0x18] sm:$0xf]
      %v693 = vld [vmem:[%s688 + $0x20] sm:$0xf]
      %v694 = vld [vmem:[%s688 + $0x28] sm:$0xf]
      %v695 = vld [vmem:[%s688 + $0x30] sm:$0xf]
      %v696 = vld [vmem:[%s688 + $0x38] sm:$0xf]
      %s697 = scalar_lea.vmem %s1, 192
      %v698 = vld [vmem:[%s697] sm:$0xf]
      %v699 = vld [vmem:[%s697 + $0x4] sm:$0xf]
      %v700 = vld [vmem:[%s697 + $0x8] sm:$0xf]
      %v701 = vld [vmem:[%s697 + $0xc] sm:$0xf]
      %v702 = vld [vmem:[%s697 + $0x10] sm:$0xf]
      %v703 = vld [vmem:[%s697 + $0x14] sm:$0xf]
      %v704 = vld [vmem:[%s697 + $0x18] sm:$0xf]
      %v705 = vld [vmem:[%s697 + $0x1c] sm:$0xf]
      %v706 = vld [vmem:[%s697 + $0x20] sm:$0xf]
      %v707 = vld [vmem:[%s697 + $0x24] sm:$0xf]
      %v708 = vld [vmem:[%s697 + $0x28] sm:$0xf]
      %v709 = vld [vmem:[%s697 + $0x2c] sm:$0xf]
      %v710 = vld [vmem:[%s697 + $0x30] sm:$0xf]
      %v711 = vld [vmem:[%s697 + $0x34] sm:$0xf]
      %v712 = vld [vmem:[%s697 + $0x38] sm:$0xf]
      %v713 = vld [vmem:[%s697 + $0x3c] sm:$0xf]
      %v722 = vunpack.c.l.b16 %v689
      %v723 = vunpack.c.l.b16 %v690
      %v724 = vunpack.c.l.b16 %v691
      %v725 = vunpack.c.l.b16 %v692
      %v726 = vunpack.c.l.b16 %v693
      %v727 = vunpack.c.l.b16 %v694
      %v728 = vunpack.c.l.b16 %v695
      %v729 = vunpack.c.l.b16 %v696
      %v730 = vpack.c.b16 %v723, %v722
      %v731 = vpack.c.b16 %v725, %v724
      %v732 = vpack.c.b16 %v727, %v726
      %v733 = vpack.c.b16 %v729, %v728
      %v754 = vunpack.c.l.b16 %v698
      %v755 = vunpack.c.l.b16 %v699
      %v756 = vunpack.c.l.b16 %v700
      %v757 = vunpack.c.l.b16 %v701
      %v758 = vunpack.c.l.b16 %v702
      %v759 = vunpack.c.l.b16 %v703
      %v760 = vunpack.c.l.b16 %v704
      %v761 = vunpack.c.l.b16 %v705
      %v762 = vunpack.c.l.b16 %v706
      %v763 = vunpack.c.l.b16 %v707
      %v764 = vunpack.c.l.b16 %v708
      %v765 = vunpack.c.l.b16 %v709
      %v766 = vunpack.c.l.b16 %v710
      %v767 = vunpack.c.l.b16 %v711
      %v768 = vunpack.c.l.b16 %v712
      %v769 = vunpack.c.l.b16 %v713
      %v770 = vpack.c.b16 %v755, %v754
      %v771 = vpack.c.b16 %v757, %v756
      %v772 = vpack.c.b16 %v759, %v758
      %v773 = vpack.c.b16 %v761, %v760
      %v774 = vpack.c.b16 %v763, %v762
      %v775 = vpack.c.b16 %v765, %v764
      %v776 = vpack.c.b16 %v767, %v766
      %v777 = vpack.c.b16 %v769, %v768
      %786 = vmatpush.bf16.msra.mxu0 %v777
      %787 = vmatpush.bf16.msra.mxu0 %v776
      %788 = vmatpush.bf16.msra.mxu0 %v775
      %789 = vmatpush.bf16.msra.mxu0 %v774
      %790 = vmatpush.bf16.msra.mxu0 %v773
      %791 = vmatpush.bf16.msra.mxu0 %v772
      %792 = vmatpush.bf16.msra.mxu0 %v771
      %793 = vmatpush.bf16.msra.mxu0 %v770
      %794 = vmatmul.bf16.gmra.mxu0 %v730
      %v795 = vpop.f32.mrf.mxu0
      %v796 = vadd.f32 0.0, %v795
      %v797 = vpop.f32.mrf.mxu0
      %v798 = vadd.f32 0.0, %v797
      %799 = vmatmul.bf16.gmra.mxu0 %v731
      %v800 = vpop.f32.mrf.mxu0
      %v801 = vadd.f32 0.0, %v800
      %v802 = vpop.f32.mrf.mxu0
      %v803 = vadd.f32 0.0, %v802
      %804 = vmatmul.bf16.gmra.mxu0 %v732
      %v805 = vpop.f32.mrf.mxu0
      %v806 = vadd.f32 0.0, %v805
      %v807 = vpop.f32.mrf.mxu0
      %v808 = vadd.f32 0.0, %v807
      %809 = vmatmul.bf16.gmra.mxu0 %v733
      %v810 = vpop.f32.mrf.mxu0
      %v811 = vadd.f32 0.0, %v810
      %v812 = vpop.f32.mrf.mxu0
      %v813 = vadd.f32 0.0, %v812
      %814 = vdwg.mxu0
      %v815 = vadd.f32 %v680, %v796
      %v816 = vadd.f32 %v681, %v798
      %v817 = vadd.f32 %v682, %v801
      %v818 = vadd.f32 %v683, %v803
      %v819 = vadd.f32 %v684, %v806
      %v820 = vadd.f32 %v685, %v808
      %v821 = vadd.f32 %v686, %v811
      %v822 = vadd.f32 %v687, %v813
      %s823 = scalar_lea.vmem %s176, 216
      %v824 = vld [vmem:[%s823] sm:$0xf]
      %v825 = vld [vmem:[%s823 + $0x8] sm:$0xf]
      %v826 = vld [vmem:[%s823 + $0x10] sm:$0xf]
      %v827 = vld [vmem:[%s823 + $0x18] sm:$0xf]
      %v828 = vld [vmem:[%s823 + $0x20] sm:$0xf]
      %v829 = vld [vmem:[%s823 + $0x28] sm:$0xf]
      %v830 = vld [vmem:[%s823 + $0x30] sm:$0xf]
      %v831 = vld [vmem:[%s823 + $0x38] sm:$0xf]
      %s832 = scalar_lea.vmem %s1, 256
      %v833 = vld [vmem:[%s832] sm:$0xf]
      %v834 = vld [vmem:[%s832 + $0x4] sm:$0xf]
      %v835 = vld [vmem:[%s832 + $0x8] sm:$0xf]
      %v836 = vld [vmem:[%s832 + $0xc] sm:$0xf]
      %v837 = vld [vmem:[%s832 + $0x10] sm:$0xf]
      %v838 = vld [vmem:[%s832 + $0x14] sm:$0xf]
      %v839 = vld [vmem:[%s832 + $0x18] sm:$0xf]
      %v840 = vld [vmem:[%s832 + $0x1c] sm:$0xf]
      %v841 = vld [vmem:[%s832 + $0x20] sm:$0xf]
      %v842 = vld [vmem:[%s832 + $0x24] sm:$0xf]
      %v843 = vld [vmem:[%s832 + $0x28] sm:$0xf]
      %v844 = vld [vmem:[%s832 + $0x2c] sm:$0xf]
      %v845 = vld [vmem:[%s832 + $0x30] sm:$0xf]
      %v846 = vld [vmem:[%s832 + $0x34] sm:$0xf]
      %v847 = vld [vmem:[%s832 + $0x38] sm:$0xf]
      %v848 = vld [vmem:[%s832 + $0x3c] sm:$0xf]
      %v857 = vunpack.c.l.b16 %v824
      %v858 = vunpack.c.l.b16 %v825
      %v859 = vunpack.c.l.b16 %v826
      %v860 = vunpack.c.l.b16 %v827
      %v861 = vunpack.c.l.b16 %v828
      %v862 = vunpack.c.l.b16 %v829
      %v863 = vunpack.c.l.b16 %v830
      %v864 = vunpack.c.l.b16 %v831
      %v865 = vpack.c.b16 %v858, %v857
      %v866 = vpack.c.b16 %v860, %v859
      %v867 = vpack.c.b16 %v862, %v861
      %v868 = vpack.c.b16 %v864, %v863
      %v889 = vunpack.c.l.b16 %v833
      %v890 = vunpack.c.l.b16 %v834
      %v891 = vunpack.c.l.b16 %v835
      %v892 = vunpack.c.l.b16 %v836
      %v893 = vunpack.c.l.b16 %v837
      %v894 = vunpack.c.l.b16 %v838
      %v895 = vunpack.c.l.b16 %v839
      %v896 = vunpack.c.l.b16 %v840
      %v897 = vunpack.c.l.b16 %v841
      %v898 = vunpack.c.l.b16 %v842
      %v899 = vunpack.c.l.b16 %v843
      %v900 = vunpack.c.l.b16 %v844
      %v901 = vunpack.c.l.b16 %v845
      %v902 = vunpack.c.l.b16 %v846
      %v903 = vunpack.c.l.b16 %v847
      %v904 = vunpack.c.l.b16 %v848
      %v905 = vpack.c.b16 %v890, %v889
      %v906 = vpack.c.b16 %v892, %v891
      %v907 = vpack.c.b16 %v894, %v893
      %v908 = vpack.c.b16 %v896, %v895
      %v909 = vpack.c.b16 %v898, %v897
      %v910 = vpack.c.b16 %v900, %v899
      %v911 = vpack.c.b16 %v902, %v901
      %v912 = vpack.c.b16 %v904, %v903
      %921 = vmatpush.bf16.msra.mxu0 %v912
      %922 = vmatpush.bf16.msra.mxu0 %v911
      %923 = vmatpush.bf16.msra.mxu0 %v910
      %924 = vmatpush.bf16.msra.mxu0 %v909
      %925 = vmatpush.bf16.msra.mxu0 %v908
      %926 = vmatpush.bf16.msra.mxu0 %v907
      %927 = vmatpush.bf16.msra.mxu0 %v906
      %928 = vmatpush.bf16.msra.mxu0 %v905
      %929 = vmatmul.bf16.gmra.mxu0 %v865
      %v930 = vpop.f32.mrf.mxu0
      %v931 = vadd.f32 0.0, %v930
      %v932 = vpop.f32.mrf.mxu0
      %v933 = vadd.f32 0.0, %v932
      %934 = vmatmul.bf16.gmra.mxu0 %v866
      %v935 = vpop.f32.mrf.mxu0
      %v936 = vadd.f32 0.0, %v935
      %v937 = vpop.f32.mrf.mxu0
      %v938 = vadd.f32 0.0, %v937
      %939 = vmatmul.bf16.gmra.mxu0 %v867
      %v940 = vpop.f32.mrf.mxu0
      %v941 = vadd.f32 0.0, %v940
      %v942 = vpop.f32.mrf.mxu0
      %v943 = vadd.f32 0.0, %v942
      %944 = vmatmul.bf16.gmra.mxu0 %v868
      %v945 = vpop.f32.mrf.mxu0
      %v946 = vadd.f32 0.0, %v945
      %v947 = vpop.f32.mrf.mxu0
      %v948 = vadd.f32 0.0, %v947
      %949 = vdwg.mxu0
      %v950 = vadd.f32 %v815, %v931
      %v951 = vadd.f32 %v816, %v933
      %v952 = vadd.f32 %v817, %v936
      %v953 = vadd.f32 %v818, %v938
      %v954 = vadd.f32 %v819, %v941
      %v955 = vadd.f32 %v820, %v943
      %v956 = vadd.f32 %v821, %v946
      %v957 = vadd.f32 %v822, %v948
      %v958 = vld [vmem:[%s688] sm:$0xf]
      %v959 = vld [vmem:[%s688 + $0x4] sm:$0x1]
      %v960 = vld [vmem:[%s688 + $0x8] sm:$0xf]
      %v961 = vld [vmem:[%s688 + $0xc] sm:$0x1]
      %v962 = vld [vmem:[%s688 + $0x10] sm:$0xf]
      %v963 = vld [vmem:[%s688 + $0x14] sm:$0x1]
      %v964 = vld [vmem:[%s688 + $0x18] sm:$0xf]
      %v965 = vld [vmem:[%s688 + $0x1c] sm:$0x1]
      %v966 = vld [vmem:[%s688 + $0x20] sm:$0xf]
      %v967 = vld [vmem:[%s688 + $0x24] sm:$0x1]
      %v968 = vld [vmem:[%s688 + $0x28] sm:$0xf]
      %v969 = vld [vmem:[%s688 + $0x2c] sm:$0x1]
      %v970 = vld [vmem:[%s688 + $0x30] sm:$0xf]
      %v971 = vld [vmem:[%s688 + $0x34] sm:$0x1]
      %v972 = vld [vmem:[%s688 + $0x38] sm:$0xf]
      %v973 = vld [vmem:[%s688 + $0x3c] sm:$0x1]
      %v975 = vshrl.u32 %v958, 16
      %v977 = vrot.slane %v975, 4
      %v978 = vshll.u32 %v958, 16
      %v980 = vrot.slane %v978, 5
      %v981 = vor.u32 %v977, %v980
      %v982 = vrot.slane %v981, 4
      %v984 = vshll.u32 %v959, 16
      %v986 = vrot.slane %v984, 5
      %v987 = vsel %vm457, %v982, %v986
      %v989 = vshrl.u32 %v960, 16
      %v991 = vrot.slane %v989, 4
      %v992 = vshll.u32 %v960, 16
      %v994 = vrot.slane %v992, 5
      %v995 = vor.u32 %v991, %v994
      %v996 = vrot.slane %v995, 4
      %v998 = vshll.u32 %v961, 16
      %v1000 = vrot.slane %v998, 5
      %v1001 = vsel %vm457, %v996, %v1000
      %v1003 = vshrl.u32 %v962, 16
      %v1005 = vrot.slane %v1003, 4
      %v1006 = vshll.u32 %v962, 16
      %v1008 = vrot.slane %v1006, 5
      %v1009 = vor.u32 %v1005, %v1008
      %v1010 = vrot.slane %v1009, 4
      %v1012 = vshll.u32 %v963, 16
      %v1014 = vrot.slane %v1012, 5
      %v1015 = vsel %vm457, %v1010, %v1014
      %v1017 = vshrl.u32 %v964, 16
      %v1019 = vrot.slane %v1017, 4
      %v1020 = vshll.u32 %v964, 16
      %v1022 = vrot.slane %v1020, 5
      %v1023 = vor.u32 %v1019, %v1022
      %v1024 = vrot.slane %v1023, 4
      %v1026 = vshll.u32 %v965, 16
      %v1028 = vrot.slane %v1026, 5
      %v1029 = vsel %vm457, %v1024, %v1028
      %v1031 = vshrl.u32 %v966, 16
      %v1033 = vrot.slane %v1031, 4
      %v1034 = vshll.u32 %v966, 16
      %v1036 = vrot.slane %v1034, 5
      %v1037 = vor.u32 %v1033, %v1036
      %v1038 = vrot.slane %v1037, 4
      %v1040 = vshll.u32 %v967, 16
      %v1042 = vrot.slane %v1040, 5
      %v1043 = vsel %vm457, %v1038, %v1042
      %v1045 = vshrl.u32 %v968, 16
      %v1047 = vrot.slane %v1045, 4
      %v1048 = vshll.u32 %v968, 16
      %v1050 = vrot.slane %v1048, 5
      %v1051 = vor.u32 %v1047, %v1050
      %v1052 = vrot.slane %v1051, 4
      %v1054 = vshll.u32 %v969, 16
      %v1056 = vrot.slane %v1054, 5
      %v1057 = vsel %vm457, %v1052, %v1056
      %v1059 = vshrl.u32 %v970, 16
      %v1061 = vrot.slane %v1059, 4
      %v1062 = vshll.u32 %v970, 16
      %v1064 = vrot.slane %v1062, 5
      %v1065 = vor.u32 %v1061, %v1064
      %v1066 = vrot.slane %v1065, 4
      %v1068 = vshll.u32 %v971, 16
      %v1070 = vrot.slane %v1068, 5
      %v1071 = vsel %vm457, %v1066, %v1070
      %v1073 = vshrl.u32 %v972, 16
      %v1075 = vrot.slane %v1073, 4
      %v1076 = vshll.u32 %v972, 16
      %v1078 = vrot.slane %v1076, 5
      %v1079 = vor.u32 %v1075, %v1078
      %v1080 = vrot.slane %v1079, 4
      %v1082 = vshll.u32 %v973, 16
      %v1084 = vrot.slane %v1082, 5
      %v1085 = vsel %vm457, %v1080, %v1084
      %s1086 = scalar_lea.vmem %s1, 320
      %v1087 = vld [vmem:[%s1086] sm:$0xf]
      %v1088 = vld [vmem:[%s1086 + $0x4] sm:$0xf]
      %v1089 = vld [vmem:[%s1086 + $0x8] sm:$0xf]
      %v1090 = vld [vmem:[%s1086 + $0xc] sm:$0xf]
      %v1091 = vld [vmem:[%s1086 + $0x10] sm:$0xf]
      %v1092 = vld [vmem:[%s1086 + $0x14] sm:$0xf]
      %v1093 = vld [vmem:[%s1086 + $0x18] sm:$0xf]
      %v1094 = vld [vmem:[%s1086 + $0x1c] sm:$0xf]
      %v1095 = vld [vmem:[%s1086 + $0x20] sm:$0xf]
      %v1096 = vld [vmem:[%s1086 + $0x24] sm:$0xf]
      %v1097 = vld [vmem:[%s1086 + $0x28] sm:$0xf]
      %v1098 = vld [vmem:[%s1086 + $0x2c] sm:$0xf]
      %v1099 = vld [vmem:[%s1086 + $0x30] sm:$0xf]
      %v1100 = vld [vmem:[%s1086 + $0x34] sm:$0xf]
      %v1101 = vld [vmem:[%s1086 + $0x38] sm:$0xf]
      %v1102 = vld [vmem:[%s1086 + $0x3c] sm:$0xf]
      %v1103 = vunpack.c.l.b16 %v987
      %v1104 = vunpack.c.l.b16 %v1001
      %v1105 = vunpack.c.l.b16 %v1015
      %v1106 = vunpack.c.l.b16 %v1029
      %v1107 = vunpack.c.l.b16 %v1043
      %v1108 = vunpack.c.l.b16 %v1057
      %v1109 = vunpack.c.l.b16 %v1071
      %v1110 = vunpack.c.l.b16 %v1085
      %v1111 = vpack.c.b16 %v1104, %v1103
      %v1112 = vpack.c.b16 %v1106, %v1105
      %v1113 = vpack.c.b16 %v1108, %v1107
      %v1114 = vpack.c.b16 %v1110, %v1109
      %v1135 = vunpack.c.l.b16 %v1087
      %v1136 = vunpack.c.l.b16 %v1088
      %v1137 = vunpack.c.l.b16 %v1089
      %v1138 = vunpack.c.l.b16 %v1090
      %v1139 = vunpack.c.l.b16 %v1091
      %v1140 = vunpack.c.l.b16 %v1092
      %v1141 = vunpack.c.l.b16 %v1093
      %v1142 = vunpack.c.l.b16 %v1094
      %v1143 = vunpack.c.l.b16 %v1095
      %v1144 = vunpack.c.l.b16 %v1096
      %v1145 = vunpack.c.l.b16 %v1097
      %v1146 = vunpack.c.l.b16 %v1098
      %v1147 = vunpack.c.l.b16 %v1099
      %v1148 = vunpack.c.l.b16 %v1100
      %v1149 = vunpack.c.l.b16 %v1101
      %v1150 = vunpack.c.l.b16 %v1102
      %v1151 = vpack.c.b16 %v1136, %v1135
      %v1152 = vpack.c.b16 %v1138, %v1137
      %v1153 = vpack.c.b16 %v1140, %v1139
      %v1154 = vpack.c.b16 %v1142, %v1141
      %v1155 = vpack.c.b16 %v1144, %v1143
      %v1156 = vpack.c.b16 %v1146, %v1145
      %v1157 = vpack.c.b16 %v1148, %v1147
      %v1158 = vpack.c.b16 %v1150, %v1149
      %1167 = vmatpush.bf16.msra.mxu0 %v1158
      %1168 = vmatpush.bf16.msra.mxu0 %v1157
      %1169 = vmatpush.bf16.msra.mxu0 %v1156
      %1170 = vmatpush.bf16.msra.mxu0 %v1155
      %1171 = vmatpush.bf16.msra.mxu0 %v1154
      %1172 = vmatpush.bf16.msra.mxu0 %v1153
      %1173 = vmatpush.bf16.msra.mxu0 %v1152
      %1174 = vmatpush.bf16.msra.mxu0 %v1151
      %1175 = vmatmul.bf16.gmra.mxu0 %v1111
      %v1176 = vpop.f32.mrf.mxu0
      %v1177 = vadd.f32 0.0, %v1176
      %v1178 = vpop.f32.mrf.mxu0
      %v1179 = vadd.f32 0.0, %v1178
      %1180 = vmatmul.bf16.gmra.mxu0 %v1112
      %v1181 = vpop.f32.mrf.mxu0
      %v1182 = vadd.f32 0.0, %v1181
      %v1183 = vpop.f32.mrf.mxu0
      %v1184 = vadd.f32 0.0, %v1183
      %1185 = vmatmul.bf16.gmra.mxu0 %v1113
      %v1186 = vpop.f32.mrf.mxu0
      %v1187 = vadd.f32 0.0, %v1186
      %v1188 = vpop.f32.mrf.mxu0
      %v1189 = vadd.f32 0.0, %v1188
      %1190 = vmatmul.bf16.gmra.mxu0 %v1114
      %v1191 = vpop.f32.mrf.mxu0
      %v1192 = vadd.f32 0.0, %v1191
      %v1193 = vpop.f32.mrf.mxu0
      %v1194 = vadd.f32 0.0, %v1193
      %1195 = vdwg.mxu0
      %v1196 = vadd.f32 %v950, %v1177
      %v1197 = vadd.f32 %v951, %v1179
      %v1198 = vadd.f32 %v952, %v1182
      %v1199 = vadd.f32 %v953, %v1184
      %v1200 = vadd.f32 %v954, %v1187
      %v1201 = vadd.f32 %v955, %v1189
      %v1202 = vadd.f32 %v956, %v1192
      %v1203 = vadd.f32 %v957, %v1194
      %s1204 = scalar_lea.vmem %s176, 8
      %v1205 = vld [vmem:[%s1204] sm:$0xf]
      %v1206 = vld [vmem:[%s1204 + $0x8] sm:$0xf]
      %v1207 = vld [vmem:[%s1204 + $0x10] sm:$0xf]
      %v1208 = vld [vmem:[%s1204 + $0x18] sm:$0xf]
      %v1209 = vld [vmem:[%s1204 + $0x20] sm:$0xf]
      %v1210 = vld [vmem:[%s1204 + $0x28] sm:$0xf]
      %v1211 = vld [vmem:[%s1204 + $0x30] sm:$0xf]
      %v1212 = vld [vmem:[%s1204 + $0x38] sm:$0xf]
      %s1213 = scalar_lea.vmem %s1, 384
      %v1214 = vld [vmem:[%s1213] sm:$0xf]
      %v1215 = vld [vmem:[%s1213 + $0x4] sm:$0xf]
      %v1216 = vld [vmem:[%s1213 + $0x8] sm:$0xf]
      %v1217 = vld [vmem:[%s1213 + $0xc] sm:$0xf]
      %v1218 = vld [vmem:[%s1213 + $0x10] sm:$0xf]
      %v1219 = vld [vmem:[%s1213 + $0x14] sm:$0xf]
      %v1220 = vld [vmem:[%s1213 + $0x18] sm:$0xf]
      %v1221 = vld [vmem:[%s1213 + $0x1c] sm:$0xf]
      %v1222 = vld [vmem:[%s1213 + $0x20] sm:$0xf]
      %v1223 = vld [vmem:[%s1213 + $0x24] sm:$0xf]
      %v1224 = vld [vmem:[%s1213 + $0x28] sm:$0xf]
      %v1225 = vld [vmem:[%s1213 + $0x2c] sm:$0xf]
      %v1226 = vld [vmem:[%s1213 + $0x30] sm:$0xf]
      %v1227 = vld [vmem:[%s1213 + $0x34] sm:$0xf]
      %v1228 = vld [vmem:[%s1213 + $0x38] sm:$0xf]
      %v1229 = vld [vmem:[%s1213 + $0x3c] sm:$0xf]
      %v1238 = vunpack.c.l.b16 %v1205
      %v1239 = vunpack.c.l.b16 %v1206
      %v1240 = vunpack.c.l.b16 %v1207
      %v1241 = vunpack.c.l.b16 %v1208
      %v1242 = vunpack.c.l.b16 %v1209
      %v1243 = vunpack.c.l.b16 %v1210
      %v1244 = vunpack.c.l.b16 %v1211
      %v1245 = vunpack.c.l.b16 %v1212
      %v1246 = vpack.c.b16 %v1239, %v1238
      %v1247 = vpack.c.b16 %v1241, %v1240
      %v1248 = vpack.c.b16 %v1243, %v1242
      %v1249 = vpack.c.b16 %v1245, %v1244
      %v1270 = vunpack.c.l.b16 %v1214
      %v1271 = vunpack.c.l.b16 %v1215
      %v1272 = vunpack.c.l.b16 %v1216
      %v1273 = vunpack.c.l.b16 %v1217
      %v1274 = vunpack.c.l.b16 %v1218
      %v1275 = vunpack.c.l.b16 %v1219
      %v1276 = vunpack.c.l.b16 %v1220
      %v1277 = vunpack.c.l.b16 %v1221
      %v1278 = vunpack.c.l.b16 %v1222
      %v1279 = vunpack.c.l.b16 %v1223
      %v1280 = vunpack.c.l.b16 %v1224
      %v1281 = vunpack.c.l.b16 %v1225
      %v1282 = vunpack.c.l.b16 %v1226
      %v1283 = vunpack.c.l.b16 %v1227
      %v1284 = vunpack.c.l.b16 %v1228
      %v1285 = vunpack.c.l.b16 %v1229
      %v1286 = vpack.c.b16 %v1271, %v1270
      %v1287 = vpack.c.b16 %v1273, %v1272
      %v1288 = vpack.c.b16 %v1275, %v1274
      %v1289 = vpack.c.b16 %v1277, %v1276
      %v1290 = vpack.c.b16 %v1279, %v1278
      %v1291 = vpack.c.b16 %v1281, %v1280
      %v1292 = vpack.c.b16 %v1283, %v1282
      %v1293 = vpack.c.b16 %v1285, %v1284
      %1302 = vmatpush.bf16.msra.mxu0 %v1293
      %1303 = vmatpush.bf16.msra.mxu0 %v1292
      %1304 = vmatpush.bf16.msra.mxu0 %v1291
      %1305 = vmatpush.bf16.msra.mxu0 %v1290
      %1306 = vmatpush.bf16.msra.mxu0 %v1289
      %1307 = vmatpush.bf16.msra.mxu0 %v1288
      %1308 = vmatpush.bf16.msra.mxu0 %v1287
      %1309 = vmatpush.bf16.msra.mxu0 %v1286
      %1310 = vmatmul.bf16.gmra.mxu0 %v1246
      %v1311 = vpop.f32.mrf.mxu0
      %v1312 = vadd.f32 0.0, %v1311
      %v1313 = vpop.f32.mrf.mxu0
      %v1314 = vadd.f32 0.0, %v1313
      %1315 = vmatmul.bf16.gmra.mxu0 %v1247
      %v1316 = vpop.f32.mrf.mxu0
      %v1317 = vadd.f32 0.0, %v1316
      %v1318 = vpop.f32.mrf.mxu0
      %v1319 = vadd.f32 0.0, %v1318
      %1320 = vmatmul.bf16.gmra.mxu0 %v1248
      %v1321 = vpop.f32.mrf.mxu0
      %v1322 = vadd.f32 0.0, %v1321
      %v1323 = vpop.f32.mrf.mxu0
      %v1324 = vadd.f32 0.0, %v1323
      %1325 = vmatmul.bf16.gmra.mxu0 %v1249
      %v1326 = vpop.f32.mrf.mxu0
      %v1327 = vadd.f32 0.0, %v1326
      %v1328 = vpop.f32.mrf.mxu0
      %v1329 = vadd.f32 0.0, %v1328
      %1330 = vdwg.mxu0
      %v1331 = vadd.f32 %v1196, %v1312
      %v1332 = vadd.f32 %v1197, %v1314
      %v1333 = vadd.f32 %v1198, %v1317
      %v1334 = vadd.f32 %v1199, %v1319
      %v1335 = vadd.f32 %v1200, %v1322
      %v1336 = vadd.f32 %v1201, %v1324
      %v1337 = vadd.f32 %v1202, %v1327
      %v1338 = vadd.f32 %v1203, %v1329
      %s1339 = scalar_lea.vmem %s176, 80
      %v1340 = vld [vmem:[%s1339] sm:$0xf]
      %v1341 = vld [vmem:[%s1339 + $0x8] sm:$0xf]
      %v1342 = vld [vmem:[%s1339 + $0x10] sm:$0xf]
      %v1343 = vld [vmem:[%s1339 + $0x18] sm:$0xf]
      %v1344 = vld [vmem:[%s1339 + $0x20] sm:$0xf]
      %v1345 = vld [vmem:[%s1339 + $0x28] sm:$0xf]
      %v1346 = vld [vmem:[%s1339 + $0x30] sm:$0xf]
      %v1347 = vld [vmem:[%s1339 + $0x38] sm:$0xf]
      %s1348 = scalar_lea.vmem %s1, 448
      %v1349 = vld [vmem:[%s1348] sm:$0xf]
      %v1350 = vld [vmem:[%s1348 + $0x4] sm:$0xf]
      %v1351 = vld [vmem:[%s1348 + $0x8] sm:$0xf]
      %v1352 = vld [vmem:[%s1348 + $0xc] sm:$0xf]
      %v1353 = vld [vmem:[%s1348 + $0x10] sm:$0xf]
      %v1354 = vld [vmem:[%s1348 + $0x14] sm:$0xf]
      %v1355 = vld [vmem:[%s1348 + $0x18] sm:$0xf]
      %v1356 = vld [vmem:[%s1348 + $0x1c] sm:$0xf]
      %v1357 = vld [vmem:[%s1348 + $0x20] sm:$0xf]
      %v1358 = vld [vmem:[%s1348 + $0x24] sm:$0xf]
      %v1359 = vld [vmem:[%s1348 + $0x28] sm:$0xf]
      %v1360 = vld [vmem:[%s1348 + $0x2c] sm:$0xf]
      %v1361 = vld [vmem:[%s1348 + $0x30] sm:$0xf]
      %v1362 = vld [vmem:[%s1348 + $0x34] sm:$0xf]
      %v1363 = vld [vmem:[%s1348 + $0x38] sm:$0xf]
      %v1364 = vld [vmem:[%s1348 + $0x3c] sm:$0xf]
      %v1373 = vunpack.c.l.b16 %v1340
      %v1374 = vunpack.c.l.b16 %v1341
      %v1375 = vunpack.c.l.b16 %v1342
      %v1376 = vunpack.c.l.b16 %v1343
      %v1377 = vunpack.c.l.b16 %v1344
      %v1378 = vunpack.c.l.b16 %v1345
      %v1379 = vunpack.c.l.b16 %v1346
      %v1380 = vunpack.c.l.b16 %v1347
      %v1381 = vpack.c.b16 %v1374, %v1373
      %v1382 = vpack.c.b16 %v1376, %v1375
      %v1383 = vpack.c.b16 %v1378, %v1377
      %v1384 = vpack.c.b16 %v1380, %v1379
      %v1405 = vunpack.c.l.b16 %v1349
      %v1406 = vunpack.c.l.b16 %v1350
      %v1407 = vunpack.c.l.b16 %v1351
      %v1408 = vunpack.c.l.b16 %v1352
      %v1409 = vunpack.c.l.b16 %v1353
      %v1410 = vunpack.c.l.b16 %v1354
      %v1411 = vunpack.c.l.b16 %v1355
      %v1412 = vunpack.c.l.b16 %v1356
      %v1413 = vunpack.c.l.b16 %v1357
      %v1414 = vunpack.c.l.b16 %v1358
      %v1415 = vunpack.c.l.b16 %v1359
      %v1416 = vunpack.c.l.b16 %v1360
      %v1417 = vunpack.c.l.b16 %v1361
      %v1418 = vunpack.c.l.b16 %v1362
      %v1419 = vunpack.c.l.b16 %v1363
      %v1420 = vunpack.c.l.b16 %v1364
      %v1421 = vpack.c.b16 %v1406, %v1405
      %v1422 = vpack.c.b16 %v1408, %v1407
      %v1423 = vpack.c.b16 %v1410, %v1409
      %v1424 = vpack.c.b16 %v1412, %v1411
      %v1425 = vpack.c.b16 %v1414, %v1413
      %v1426 = vpack.c.b16 %v1416, %v1415
      %v1427 = vpack.c.b16 %v1418, %v1417
      %v1428 = vpack.c.b16 %v1420, %v1419
      %1437 = vmatpush.bf16.msra.mxu0 %v1428
      %1438 = vmatpush.bf16.msra.mxu0 %v1427
      %1439 = vmatpush.bf16.msra.mxu0 %v1426
      %1440 = vmatpush.bf16.msra.mxu0 %v1425
      %1441 = vmatpush.bf16.msra.mxu0 %v1424
      %1442 = vmatpush.bf16.msra.mxu0 %v1423
      %1443 = vmatpush.bf16.msra.mxu0 %v1422
      %1444 = vmatpush.bf16.msra.mxu0 %v1421
      %1445 = vmatmul.bf16.gmra.mxu0 %v1381
      %v1446 = vpop.f32.mrf.mxu0
      %v1447 = vadd.f32 0.0, %v1446
      %v1448 = vpop.f32.mrf.mxu0
      %v1449 = vadd.f32 0.0, %v1448
      %1450 = vmatmul.bf16.gmra.mxu0 %v1382
      %v1451 = vpop.f32.mrf.mxu0
      %v1452 = vadd.f32 0.0, %v1451
      %v1453 = vpop.f32.mrf.mxu0
      %v1454 = vadd.f32 0.0, %v1453
      %1455 = vmatmul.bf16.gmra.mxu0 %v1383
      %v1456 = vpop.f32.mrf.mxu0
      %v1457 = vadd.f32 0.0, %v1456
      %v1458 = vpop.f32.mrf.mxu0
      %v1459 = vadd.f32 0.0, %v1458
      %1460 = vmatmul.bf16.gmra.mxu0 %v1384
      %v1461 = vpop.f32.mrf.mxu0
      %v1462 = vadd.f32 0.0, %v1461
      %v1463 = vpop.f32.mrf.mxu0
      %v1464 = vadd.f32 0.0, %v1463
      %1465 = vdwg.mxu0
      %v1466 = vadd.f32 %v1331, %v1447
      %v1467 = vadd.f32 %v1332, %v1449
      %v1468 = vadd.f32 %v1333, %v1452
      %v1469 = vadd.f32 %v1334, %v1454
      %v1470 = vadd.f32 %v1335, %v1457
      %v1471 = vadd.f32 %v1336, %v1459
      %v1472 = vadd.f32 %v1337, %v1462
      %v1473 = vadd.f32 %v1338, %v1464
      %v1474 = vld [vmem:[%s1204] sm:$0xf]
      %v1475 = vld [vmem:[%s1204 + $0x4] sm:$0x1]
      %v1476 = vld [vmem:[%s1204 + $0x8] sm:$0xf]
      %v1477 = vld [vmem:[%s1204 + $0xc] sm:$0x1]
      %v1478 = vld [vmem:[%s1204 + $0x10] sm:$0xf]
      %v1479 = vld [vmem:[%s1204 + $0x14] sm:$0x1]
      %v1480 = vld [vmem:[%s1204 + $0x18] sm:$0xf]
      %v1481 = vld [vmem:[%s1204 + $0x1c] sm:$0x1]
      %v1482 = vld [vmem:[%s1204 + $0x20] sm:$0xf]
      %v1483 = vld [vmem:[%s1204 + $0x24] sm:$0x1]
      %v1484 = vld [vmem:[%s1204 + $0x28] sm:$0xf]
      %v1485 = vld [vmem:[%s1204 + $0x2c] sm:$0x1]
      %v1486 = vld [vmem:[%s1204 + $0x30] sm:$0xf]
      %v1487 = vld [vmem:[%s1204 + $0x34] sm:$0x1]
      %v1488 = vld [vmem:[%s1204 + $0x38] sm:$0xf]
      %v1489 = vld [vmem:[%s1204 + $0x3c] sm:$0x1]
      %v1491 = vshrl.u32 %v1474, 16
      %v1493 = vrot.slane %v1491, 4
      %v1494 = vshll.u32 %v1474, 16
      %v1496 = vrot.slane %v1494, 5
      %v1497 = vor.u32 %v1493, %v1496
      %v1498 = vrot.slane %v1497, 4
      %v1500 = vshll.u32 %v1475, 16
      %v1502 = vrot.slane %v1500, 5
      %v1503 = vsel %vm457, %v1498, %v1502
      %v1505 = vshrl.u32 %v1476, 16
      %v1507 = vrot.slane %v1505, 4
      %v1508 = vshll.u32 %v1476, 16
      %v1510 = vrot.slane %v1508, 5
      %v1511 = vor.u32 %v1507, %v1510
      %v1512 = vrot.slane %v1511, 4
      %v1514 = vshll.u32 %v1477, 16
      %v1516 = vrot.slane %v1514, 5
      %v1517 = vsel %vm457, %v1512, %v1516
      %v1519 = vshrl.u32 %v1478, 16
      %v1521 = vrot.slane %v1519, 4
      %v1522 = vshll.u32 %v1478, 16
      %v1524 = vrot.slane %v1522, 5
      %v1525 = vor.u32 %v1521, %v1524
      %v1526 = vrot.slane %v1525, 4
      %v1528 = vshll.u32 %v1479, 16
      %v1530 = vrot.slane %v1528, 5
      %v1531 = vsel %vm457, %v1526, %v1530
      %v1533 = vshrl.u32 %v1480, 16
      %v1535 = vrot.slane %v1533, 4
      %v1536 = vshll.u32 %v1480, 16
      %v1538 = vrot.slane %v1536, 5
      %v1539 = vor.u32 %v1535, %v1538
      %v1540 = vrot.slane %v1539, 4
      %v1542 = vshll.u32 %v1481, 16
      %v1544 = vrot.slane %v1542, 5
      %v1545 = vsel %vm457, %v1540, %v1544
      %v1547 = vshrl.u32 %v1482, 16
      %v1549 = vrot.slane %v1547, 4
      %v1550 = vshll.u32 %v1482, 16
      %v1552 = vrot.slane %v1550, 5
      %v1553 = vor.u32 %v1549, %v1552
      %v1554 = vrot.slane %v1553, 4
      %v1556 = vshll.u32 %v1483, 16
      %v1558 = vrot.slane %v1556, 5
      %v1559 = vsel %vm457, %v1554, %v1558
      %v1561 = vshrl.u32 %v1484, 16
      %v1563 = vrot.slane %v1561, 4
      %v1564 = vshll.u32 %v1484, 16
      %v1566 = vrot.slane %v1564, 5
      %v1567 = vor.u32 %v1563, %v1566
      %v1568 = vrot.slane %v1567, 4
      %v1570 = vshll.u32 %v1485, 16
      %v1572 = vrot.slane %v1570, 5
      %v1573 = vsel %vm457, %v1568, %v1572
      %v1575 = vshrl.u32 %v1486, 16
      %v1577 = vrot.slane %v1575, 4
      %v1578 = vshll.u32 %v1486, 16
      %v1580 = vrot.slane %v1578, 5
      %v1581 = vor.u32 %v1577, %v1580
      %v1582 = vrot.slane %v1581, 4
      %v1584 = vshll.u32 %v1487, 16
      %v1586 = vrot.slane %v1584, 5
      %v1587 = vsel %vm457, %v1582, %v1586
      %v1589 = vshrl.u32 %v1488, 16
      %v1591 = vrot.slane %v1589, 4
      %v1592 = vshll.u32 %v1488, 16
      %v1594 = vrot.slane %v1592, 5
      %v1595 = vor.u32 %v1591, %v1594
      %v1596 = vrot.slane %v1595, 4
      %v1598 = vshll.u32 %v1489, 16
      %v1600 = vrot.slane %v1598, 5
      %v1601 = vsel %vm457, %v1596, %v1600
      %s1602 = scalar_lea.vmem %s1, 512
      %v1603 = vld [vmem:[%s1602] sm:$0xf]
      %v1604 = vld [vmem:[%s1602 + $0x4] sm:$0xf]
      %v1605 = vld [vmem:[%s1602 + $0x8] sm:$0xf]
      %v1606 = vld [vmem:[%s1602 + $0xc] sm:$0xf]
      %v1607 = vld [vmem:[%s1602 + $0x10] sm:$0xf]
      %v1608 = vld [vmem:[%s1602 + $0x14] sm:$0xf]
      %v1609 = vld [vmem:[%s1602 + $0x18] sm:$0xf]
      %v1610 = vld [vmem:[%s1602 + $0x1c] sm:$0xf]
      %v1611 = vld [vmem:[%s1602 + $0x20] sm:$0xf]
      %v1612 = vld [vmem:[%s1602 + $0x24] sm:$0xf]
      %v1613 = vld [vmem:[%s1602 + $0x28] sm:$0xf]
      %v1614 = vld [vmem:[%s1602 + $0x2c] sm:$0xf]
      %v1615 = vld [vmem:[%s1602 + $0x30] sm:$0xf]
      %v1616 = vld [vmem:[%s1602 + $0x34] sm:$0xf]
      %v1617 = vld [vmem:[%s1602 + $0x38] sm:$0xf]
      %v1618 = vld [vmem:[%s1602 + $0x3c] sm:$0xf]
      %v1619 = vunpack.c.l.b16 %v1503
      %v1620 = vunpack.c.l.b16 %v1517
      %v1621 = vunpack.c.l.b16 %v1531
      %v1622 = vunpack.c.l.b16 %v1545
      %v1623 = vunpack.c.l.b16 %v1559
      %v1624 = vunpack.c.l.b16 %v1573
      %v1625 = vunpack.c.l.b16 %v1587
      %v1626 = vunpack.c.l.b16 %v1601
      %v1627 = vpack.c.b16 %v1620, %v1619
      %v1628 = vpack.c.b16 %v1622, %v1621
      %v1629 = vpack.c.b16 %v1624, %v1623
      %v1630 = vpack.c.b16 %v1626, %v1625
      %v1651 = vunpack.c.l.b16 %v1603
      %v1652 = vunpack.c.l.b16 %v1604
      %v1653 = vunpack.c.l.b16 %v1605
      %v1654 = vunpack.c.l.b16 %v1606
      %v1655 = vunpack.c.l.b16 %v1607
      %v1656 = vunpack.c.l.b16 %v1608
      %v1657 = vunpack.c.l.b16 %v1609
      %v1658 = vunpack.c.l.b16 %v1610
      %v1659 = vunpack.c.l.b16 %v1611
      %v1660 = vunpack.c.l.b16 %v1612
      %v1661 = vunpack.c.l.b16 %v1613
      %v1662 = vunpack.c.l.b16 %v1614
      %v1663 = vunpack.c.l.b16 %v1615
      %v1664 = vunpack.c.l.b16 %v1616
      %v1665 = vunpack.c.l.b16 %v1617
      %v1666 = vunpack.c.l.b16 %v1618
      %v1667 = vpack.c.b16 %v1652, %v1651
      %v1668 = vpack.c.b16 %v1654, %v1653
      %v1669 = vpack.c.b16 %v1656, %v1655
      %v1670 = vpack.c.b16 %v1658, %v1657
      %v1671 = vpack.c.b16 %v1660, %v1659
      %v1672 = vpack.c.b16 %v1662, %v1661
      %v1673 = vpack.c.b16 %v1664, %v1663
      %v1674 = vpack.c.b16 %v1666, %v1665
      %1683 = vmatpush.bf16.msra.mxu0 %v1674
      %1684 = vmatpush.bf16.msra.mxu0 %v1673
      %1685 = vmatpush.bf16.msra.mxu0 %v1672
      %1686 = vmatpush.bf16.msra.mxu0 %v1671
      %1687 = vmatpush.bf16.msra.mxu0 %v1670
      %1688 = vmatpush.bf16.msra.mxu0 %v1669
      %1689 = vmatpush.bf16.msra.mxu0 %v1668
      %1690 = vmatpush.bf16.msra.mxu0 %v1667
      %1691 = vmatmul.bf16.gmra.mxu0 %v1627
      %v1692 = vpop.f32.mrf.mxu0
      %v1693 = vadd.f32 0.0, %v1692
      %v1694 = vpop.f32.mrf.mxu0
      %v1695 = vadd.f32 0.0, %v1694
      %1696 = vmatmul.bf16.gmra.mxu0 %v1628
      %v1697 = vpop.f32.mrf.mxu0
      %v1698 = vadd.f32 0.0, %v1697
      %v1699 = vpop.f32.mrf.mxu0
      %v1700 = vadd.f32 0.0, %v1699
      %1701 = vmatmul.bf16.gmra.mxu0 %v1629
      %v1702 = vpop.f32.mrf.mxu0
      %v1703 = vadd.f32 0.0, %v1702
      %v1704 = vpop.f32.mrf.mxu0
      %v1705 = vadd.f32 0.0, %v1704
      %1706 = vmatmul.bf16.gmra.mxu0 %v1630
      %v1707 = vpop.f32.mrf.mxu0
      %v1708 = vadd.f32 0.0, %v1707
      %v1709 = vpop.f32.mrf.mxu0
      %v1710 = vadd.f32 0.0, %v1709
      %1711 = vdwg.mxu0
      %v1712 = vadd.f32 %v1466, %v1693
      %v1713 = vadd.f32 %v1467, %v1695
      %v1714 = vadd.f32 %v1468, %v1698
      %v1715 = vadd.f32 %v1469, %v1700
      %v1716 = vadd.f32 %v1470, %v1703
      %v1717 = vadd.f32 %v1471, %v1705
      %v1718 = vadd.f32 %v1472, %v1708
      %v1719 = vadd.f32 %v1473, %v1710
      %v1720 = vpack.c.bf16 %v1712, %v1712
      %v1721 = vpack.c.bf16 %v1713, %v1713
      %v1722 = vpack.c.bf16 %v1714, %v1714
      %v1723 = vpack.c.bf16 %v1715, %v1715
      %v1724 = vpack.c.bf16 %v1716, %v1716
      %v1725 = vpack.c.bf16 %v1717, %v1717
      %v1726 = vpack.c.bf16 %v1718, %v1718
      %v1727 = vpack.c.bf16 %v1719, %v1719
      %1728 = vst [vmem:[%s182] sm:$0xf] %v1720
      %1729 = vst [vmem:[%s182 + $0x4] sm:$0xf] %v1721
      %1730 = vst [vmem:[%s182 + $0x8] sm:$0xf] %v1722
      %1731 = vst [vmem:[%s182 + $0xc] sm:$0xf] %v1723
      %1732 = vst [vmem:[%s182 + $0x10] sm:$0xf] %v1724
      %1733 = vst [vmem:[%s182 + $0x14] sm:$0xf] %v1725
      %1734 = vst [vmem:[%s182 + $0x18] sm:$0xf] %v1726
      %1735 = vst [vmem:[%s182 + $0x1c] sm:$0xf] %v1727
      %v1736 = vadd.f32 %v1712, %v1713
      %v1737 = vadd.f32 %v1736, %v1714
      %v1738 = vadd.f32 %v1737, %v1715
      %v1739 = vadd.f32 %v1738, %v1716
      %v1740 = vadd.f32 %v1739, %v1717
      %v1741 = vadd.f32 %v1740, %v1718
      %v1742 = vadd.f32 %v1741, %v1719
      %v1743 = vrot.slane %v1742, 4
      %v1744 = vadd.f32 %v1742, %v1743
      %v1745 = vrot.slane %v1744, 2
      %v1746 = vadd.f32 %v1744, %v1745
      %v1747 = vrot.slane %v1746, 1
      %v1748 = vadd.f32 %v1746, %v1747
      %1749 = vst [vmem:[%s186] sm:$0x1] %v1748
      %v1750 = vmul.f32 %v1712, %v1712
      %v1751 = vmul.f32 %v1713, %v1713
      %v1752 = vmul.f32 %v1714, %v1714
      %v1753 = vmul.f32 %v1715, %v1715
      %v1754 = vmul.f32 %v1716, %v1716
      %v1755 = vmul.f32 %v1717, %v1717
      %v1756 = vmul.f32 %v1718, %v1718
      %v1757 = vmul.f32 %v1719, %v1719
      %v1758 = vadd.f32 %v1750, %v1751
      %v1759 = vadd.f32 %v1758, %v1752
      %v1760 = vadd.f32 %v1759, %v1753
      %v1761 = vadd.f32 %v1760, %v1754
      %v1762 = vadd.f32 %v1761, %v1755
      %v1763 = vadd.f32 %v1762, %v1756
      %v1764 = vadd.f32 %v1763, %v1757
      %v1765 = vrot.slane %v1764, 4
      %v1766 = vadd.f32 %v1764, %v1765
      %v1767 = vrot.slane %v1766, 2
      %v1768 = vadd.f32 %v1766, %v1767
      %v1769 = vrot.slane %v1768, 1
      %v1770 = vadd.f32 %v1768, %v1769
      %1771 = vst [vmem:[%s186 + $0x1] sm:$0x1] %v1770
      %p1772 = scmp.lt.s32.totalorder %s15, 1
      %s1773 = scalar_select %p1772, %s15, 1
      %s1774 = smul.addr %s1773, 8
      %s1775 = smul.addr %s1774, 4
      %s1776 = scalar_lea.vmem %s2, %s1775
      %p1777 = scmp.lt.s32.totalorder %s15, 1
      %s1778 = scalar_select %p1777, %s15, 1
      %s1779 = smul.addr %s1778, 2
      %s1780 = scalar_lea.vmem %s3, %s1779
      // Predicated region
      $region29: #{bottleneck_forward.6} parent=27 // pred_check
        %p1781 = pneg %p80
      $region30: #{bottleneck_forward.6} parent=27 // pred_check_branch
        %1783 = sbr.rel (%p1781) target = $region32
      $region31: #{bottleneck_forward.6} parent=27 // pred_region
        _
      $region32: #{bottleneck_forward.6} parent=27 // pred_fallthru
        _
      // Predicated region
      $region33: #{bottleneck_forward.6} parent=27 // pred_check
        %p1784 = pneg %p106
      $region34: #{bottleneck_forward.6} parent=27 // pred_check_branch
        %1786 = sbr.rel (%p1784) target = $region36
      $region35: #{bottleneck_forward.6} parent=27 // pred_region
        _
      $region36: #{bottleneck_forward.6} parent=27 // pred_fallthru
        _
    $region28: #{bottleneck_forward.6} parent=5 // pred_fallthru
      _
    %p1787 = scmp.le.s32.totalorder 2, %s10
    // Predicated region
    $region37: #{bottleneck_forward.6} parent=5 // pred_check
      %p1788 = pneg %p1787
    $region38: #{bottleneck_forward.6} parent=5 // pred_check_branch
      %1790 = sbr.rel (%p1788) target = $region40
    $region39: #{bottleneck_forward.6} parent=5 // pred_region
      %s1791 = ssub.s32 %s10, 2
      // Predicated region
      $region41: #{bottleneck_forward.6} parent=39 // pred_check
        %p1792 = pneg %p86
      $region42: #{bottleneck_forward.6} parent=39 // pred_check_branch
        %1794 = sbr.rel (%p1792) target = $region44
      $region43: #{bottleneck_forward.6} parent=39 // pred_region
        %p1795 = scmp.lt.s32.totalorder %s16, 1
        %s1796 = scalar_select %p1795, %s16, 1
        %s1797 = smul.addr %s1796, 8
        %s1798 = smul.addr %s1797, 4
        %s1799 = scalar_lea.vmem %s2, %s1798
      $region44: #{bottleneck_forward.6} parent=39 // pred_fallthru
        _
      // Predicated region
      $region45: #{bottleneck_forward.6} parent=39 // pred_check
        %p1800 = pneg %p112
      $region46: #{bottleneck_forward.6} parent=39 // pred_check_branch
        %1802 = sbr.rel (%p1800) target = $region48
      $region47: #{bottleneck_forward.6} parent=39 // pred_region
        %p1803 = scmp.lt.s32.totalorder %s16, 1
        %s1804 = scalar_select %p1803, %s16, 1
        %s1805 = smul.addr %s1804, 2
        %s1806 = scalar_lea.vmem %s3, %s1805
      $region48: #{bottleneck_forward.6} parent=39 // pred_fallthru
        _
    $region40: #{bottleneck_forward.6} parent=5 // pred_fallthru
      _
  $region6: #{bottleneck_forward.6} parent=0 // loop_footer
    %s14 = sadd.s32 1, %s10
  $region7: #{bottleneck_forward.6} parent=0 // loop_footer_branch
    %9 = sbr.rel target = $region3
  $region8: #{bottleneck_forward.6} parent=0 // loop_exit
    _

// kernel: bottleneck_forward.8
$region0: #{bottleneck_forward.8}
  #allocation0 [shape = 'u32[]', space=smem, size = 0x4, offset = 0x4, fixed_abs, tag = 'smem constant byte address 0x4 - core index']
  #allocation1 [shape = 'u32[72,128]{1,0:T(1,128)}', space=vmem, size = 0x9000, scoped, tag = 'internal scratch']
  %s0 = inlined_call_operand.vmem [shape: bf16[128,128], index: 0, kind: input, shape index: {}]
  %s1 = inlined_call_operand.vmem [shape: bf16[128,128], index: 1, kind: input, shape index: {}]
  %s2 = inlined_call_operand.vmem [shape: bf16[128,128], index: 2, kind: output, shape index: {0}]
  %s3 = inlined_call_operand.vmem [shape: f32[2,2,128], index: 3, kind: output, shape index: {1}]
  %4 = xla_tuple %s2, %s3
  %s5 = sld [smem:[#allocation0]]
  $region49: #{bottleneck_forward.8} parent=0
    _
  %s7 = ssub.s32 1, %s5
  %s8 = scalar_select 0, %s7, %s5
  loop: start=0, step=1, limit=4
  $region2: #{bottleneck_forward.8} parent=0 // loop_pre_header
    _
  $region3: #{bottleneck_forward.8} parent=0 // loop_header
    %s10 = sphi 0, %s14
    %p11 = scmp.ge.s32.totalorder %s10, 4
    %s20 = sphi 0, %s22
    %s23 = sphi 0, %s20
    %s24 = sphi 0, %s23
    %s40 = sphi 0, %s24
    %s44 = sphi 0, %s44
    %s46 = sphi 0, %s44
    %s47 = sphi 0, %s46
    %s61 = sphi 0, %s47
    %s67 = sphi 0, %s69
    %s70 = sphi 0, %s67
    %s71 = sphi 0, %s70
    %s87 = sphi 0, %s71
    %s93 = sphi 0, %s95
    %s96 = sphi 0, %s93
    %s97 = sphi 0, %s96
    %s113 = sphi 0, %s97
  $region4: #{bottleneck_forward.8} parent=0 // loop_header_branch
    %13 = sbr.rel (%p11) target = $region8
  $region5: #{bottleneck_forward.8} parent=0 // loop_body
    %s15 = ssub.s32 %s10, 1
    %s16 = ssub.s32 %s10, 2
    %s17 = sadd.s32 %s10, 1
    %s18 = ssub.s32 %s10, %s17
    %p19 = scmp.eq.s32.totalorder %s18, 0
    %s21 = sadd.s32 %s20, 1
    %s22 = scalar_select %p19, %s20, %s21
    %p25 = pneg %p19
    %p26 = scmp.eq.s32.totalorder %s10, 1
    %p27 = por %p25, %p26
    %p28 = scmp.ne.s32.totalorder %s20, %s23
    %p29 = scmp.eq.s32.totalorder %s10, 0
    %p30 = por %p28, %p29
    %p31 = scmp.ne.s32.totalorder %s20, %s23
    %p32 = scmp.eq.s32.totalorder %s15, 1
    %p33 = por %p31, %p32
    %p34 = scmp.ne.s32.totalorder %s23, %s24
    %p35 = scmp.eq.s32.totalorder %s15, 0
    %p36 = por %p34, %p35
    %p37 = scmp.ne.s32.totalorder %s23, %s24
    %p38 = scmp.eq.s32.totalorder %s16, 1
    %p39 = por %p37, %p38
    %p41 = scmp.ne.s32.totalorder %s24, %s40
    %p42 = scmp.eq.s32.totalorder %s16, 0
    %p43 = por %p41, %p42
    %s45 = sadd.s32 %s44, 1
    %p48 = scmp.eq.s32.totalorder %s10, 1
    %p49 = scmp.ne.s32.totalorder %s44, %s46
    %p50 = scmp.eq.s32.totalorder %s10, 0
    %p51 = por %p49, %p50
    %p52 = scmp.ne.s32.totalorder %s44, %s46
    %p53 = scmp.eq.s32.totalorder %s15, 1
    %p54 = por %p52, %p53
    %p55 = scmp.ne.s32.totalorder %s46, %s47
    %p56 = scmp.eq.s32.totalorder %s15, 0
    %p57 = por %p55, %p56
    %p58 = scmp.ne.s32.totalorder %s46, %s47
    %p59 = scmp.eq.s32.totalorder %s16, 1
    %p60 = por %p58, %p59
    %p62 = scmp.ne.s32.totalorder %s47, %s61
    %p63 = scmp.eq.s32.totalorder %s16, 0
    %p64 = por %p62, %p63
    %s65 = ssub.s32 %s10, %s17
    %p66 = scmp.eq.s32.totalorder %s65, 0
    %s68 = sadd.s32 %s67, 1
    %s69 = scalar_select %p66, %s67, %s68
    %p72 = pneg %p66
    %p73 = scmp.eq.s32.totalorder %s10, 1
    %p74 = por %p72, %p73
    %p75 = scmp.ne.s32.totalorder %s67, %s70
    %p76 = scmp.eq.s32.totalorder %s10, 0
    %p77 = por %p75, %p76
    %p78 = scmp.ne.s32.totalorder %s67, %s70
    %p79 = scmp.eq.s32.totalorder %s15, 1
    %p80 = por %p78, %p79
    %p81 = scmp.ne.s32.totalorder %s70, %s71
    %p82 = scmp.eq.s32.totalorder %s15, 0
    %p83 = por %p81, %p82
    %p84 = scmp.ne.s32.totalorder %s70, %s71
    %p85 = scmp.eq.s32.totalorder %s16, 1
    %p86 = por %p84, %p85
    %p88 = scmp.ne.s32.totalorder %s71, %s87
    %p89 = scmp.eq.s32.totalorder %s16, 0
    %p90 = por %p88, %p89
    %s91 = ssub.s32 %s10, %s17
    %p92 = scmp.eq.s32.totalorder %s91, 0
    %s94 = sadd.s32 %s93, 1
    %s95 = scalar_select %p92, %s93, %s94
    %p98 = pneg %p92
    %p99 = scmp.eq.s32.totalorder %s10, 1
    %p100 = por %p98, %p99
    %p101 = scmp.ne.s32.totalorder %s93, %s96
    %p102 = scmp.eq.s32.totalorder %s10, 0
    %p103 = por %p101, %p102
    %p104 = scmp.ne.s32.totalorder %s93, %s96
    %p105 = scmp.eq.s32.totalorder %s15, 1
    %p106 = por %p104, %p105
    %p107 = scmp.ne.s32.totalorder %s96, %s97
    %p108 = scmp.eq.s32.totalorder %s15, 0
    %p109 = por %p107, %p108
    %p110 = scmp.ne.s32.totalorder %s96, %s97
    %p111 = scmp.eq.s32.totalorder %s16, 1
    %p112 = por %p110, %p111
    %p114 = scmp.ne.s32.totalorder %s97, %s113
    %p115 = scmp.eq.s32.totalorder %s16, 0
    %p116 = por %p114, %p115
    %p117 = scmp.le.s32.totalorder 1, %s10
    %p118 = scmp.lt.s32.totalorder %s10, 3
    %p119 = pnand %p117, %p118
    %p120 = pneg %p119
    // Predicated region
    $region9: #{bottleneck_forward.8} parent=5 // pred_check
      _
    $region10: #{bottleneck_forward.8} parent=5 // pred_check_branch
      %122 = sbr.rel (%p119) target = $region12
    $region11: #{bottleneck_forward.8} parent=5 // pred_region
      %s123 = ssub.s32 %s10, 1
      // Predicated region
      $region13: #{bottleneck_forward.8} parent=11 // pred_check
        %p124 = pneg %p57
      $region14: #{bottleneck_forward.8} parent=11 // pred_check_branch
        %126 = sbr.rel (%p124) target = $region16
      $region15: #{bottleneck_forward.8} parent=11 // pred_region
        _
      $region16: #{bottleneck_forward.8} parent=11 // pred_fallthru
        _
    $region12: #{bottleneck_forward.8} parent=5 // pred_fallthru
      _
    %p127 = scmp.lt.s32.totalorder %s10, 2
    // Predicated region
    $region17: #{bottleneck_forward.8} parent=5 // pred_check
      %p128 = pneg %p127
    $region18: #{bottleneck_forward.8} parent=5 // pred_check_branch
      %130 = sbr.rel (%p128) target = $region20
    $region19: #{bottleneck_forward.8} parent=5 // pred_region
      // Predicated region
      $region21: #{bottleneck_forward.8} parent=19 // pred_check
        %p131 = pneg %p30
      $region22: #{bottleneck_forward.8} parent=19 // pred_check_branch
        %133 = sbr.rel (%p131) target = $region24
      $region23: #{bottleneck_forward.8} parent=19 // pred_region
        %s134 = smul.u32 8, %s10
        %p135 = scmp.lt.s32.totalorder %s134, 15
        %s136 = scalar_select %p135, %s134, 15
        %s137 = smul.addr %s136, 4
        %s138 = scalar_lea.vmem %s0, %s137
        %s139 = smul.u32 8, %s10
      $region24: #{bottleneck_forward.8} parent=19 // pred_fallthru
        _
    $region20: #{bottleneck_forward.8} parent=5 // pred_fallthru
      _
    %p140 = scmp.le.s32.totalorder 1, %s10
    %p141 = scmp.lt.s32.totalorder %s10, 3
    %p142 = pnand %p140, %p141
    %p143 = pneg %p142
    // Predicated region
    $region25: #{bottleneck_forward.8} parent=5 // pred_check
      _
    $region26: #{bottleneck_forward.8} parent=5 // pred_check_branch
      %145 = sbr.rel (%p142) target = $region28
    $region27: #{bottleneck_forward.8} parent=5 // pred_region
      %s146 = ssub.s32 %s10, 1
      %s147 = smul.u32 8, %s15
      %p148 = scmp.lt.s32.totalorder %s147, 15
      %s149 = scalar_select %p148, %s147, 15
      %s150 = smul.addr %s149, 4
      %s151 = scalar_lea.vmem %s0, %s150
      %p152 = pneg %p36
      %p153 = pneg %p33
      %p154 = pneg %p57
      %p155 = pneg %p54
      %p156 = pneg %p83
      %p157 = pneg %p80
      %s158 = smul.u32 8, %s15
      %p159 = scmp.lt.s32.totalorder %s158, 15
      %s160 = scalar_select %p159, %s158, 15
      %s161 = smul.addr %s160, 4
      %s162 = scalar_lea.vmem %s2, %s161
      %p163 = pneg %p109
      %p164 = pneg %p106
      %p165 = scmp.lt.s32.totalorder %s15, 1
      %s166 = scalar_select %p165, %s15, 1
      %s167 = smul.addr %s166, 2
      %s168 = scalar_lea.vmem %s3, %s167
      %s169 = smul.u32 8, %s15
      %p170 = scmp.lt.s32.totalorder %s169, 15
      %s171 = scalar_select %p170, %s169, 15
      %s172 = smul.addr %s171, 4
      %s173 = scalar_lea.vmem %s0, %s172
      %s174 = smul.u32 8, %s15
      %s175 = smul.u32 8, %s15
      %p176 = scmp.lt.s32.totalorder %s175, 15
      %s177 = scalar_select %p176, %s175, 15
      %s178 = smul.addr %s177, 4
      %s179 = scalar_lea.vmem %s2, %s178
      %s180 = smul.u32 8, %s15
      %p181 = scmp.lt.s32.totalorder %s15, 1
      %s182 = scalar_select %p181, %s15, 1
      %s183 = smul.addr %s182, 2
      %s184 = scalar_lea.vmem %s3, %s183
      %v185 = vld [vmem:[%s173] sm:$0xf]
      %v186 = vld [vmem:[%s173 + $0x4] sm:$0xf]
      %v187 = vld [vmem:[%s173 + $0x8] sm:$0xf]
      %v188 = vld [vmem:[%s173 + $0xc] sm:$0xf]
      %v189 = vld [vmem:[%s173 + $0x10] sm:$0xf]
      %v190 = vld [vmem:[%s173 + $0x14] sm:$0xf]
      %v191 = vld [vmem:[%s173 + $0x18] sm:$0xf]
      %v192 = vld [vmem:[%s173 + $0x1c] sm:$0xf]
      %v193 = vld [vmem:[%s1] sm:$0xf]
      %v194 = vld [vmem:[%s1 + $0x4] sm:$0xf]
      %v195 = vld [vmem:[%s1 + $0x8] sm:$0xf]
      %v196 = vld [vmem:[%s1 + $0xc] sm:$0xf]
      %v197 = vld [vmem:[%s1 + $0x10] sm:$0xf]
      %v198 = vld [vmem:[%s1 + $0x14] sm:$0xf]
      %v199 = vld [vmem:[%s1 + $0x18] sm:$0xf]
      %v200 = vld [vmem:[%s1 + $0x1c] sm:$0xf]
      %v201 = vld [vmem:[%s1 + $0x20] sm:$0xf]
      %v202 = vld [vmem:[%s1 + $0x24] sm:$0xf]
      %v203 = vld [vmem:[%s1 + $0x28] sm:$0xf]
      %v204 = vld [vmem:[%s1 + $0x2c] sm:$0xf]
      %v205 = vld [vmem:[%s1 + $0x30] sm:$0xf]
      %v206 = vld [vmem:[%s1 + $0x34] sm:$0xf]
      %v207 = vld [vmem:[%s1 + $0x38] sm:$0xf]
      %v208 = vld [vmem:[%s1 + $0x3c] sm:$0xf]
      %v217 = vunpack.c.l.b16 %v185
      %v218 = vunpack.c.l.b16 %v186
      %v219 = vunpack.c.l.b16 %v187
      %v220 = vunpack.c.l.b16 %v188
      %v221 = vunpack.c.l.b16 %v189
      %v222 = vunpack.c.l.b16 %v190
      %v223 = vunpack.c.l.b16 %v191
      %v224 = vunpack.c.l.b16 %v192
      %v225 = vpack.c.b16 %v218, %v217
      %v226 = vpack.c.b16 %v220, %v219
      %v227 = vpack.c.b16 %v222, %v221
      %v228 = vpack.c.b16 %v224, %v223
      %v249 = vunpack.c.l.b16 %v193
      %v250 = vunpack.c.l.b16 %v194
      %v251 = vunpack.c.l.b16 %v195
      %v252 = vunpack.c.l.b16 %v196
      %v253 = vunpack.c.l.b16 %v197
      %v254 = vunpack.c.l.b16 %v198
      %v255 = vunpack.c.l.b16 %v199
      %v256 = vunpack.c.l.b16 %v200
      %v257 = vunpack.c.l.b16 %v201
      %v258 = vunpack.c.l.b16 %v202
      %v259 = vunpack.c.l.b16 %v203
      %v260 = vunpack.c.l.b16 %v204
      %v261 = vunpack.c.l.b16 %v205
      %v262 = vunpack.c.l.b16 %v206
      %v263 = vunpack.c.l.b16 %v207
      %v264 = vunpack.c.l.b16 %v208
      %v265 = vpack.c.b16 %v250, %v249
      %v266 = vpack.c.b16 %v252, %v251
      %v267 = vpack.c.b16 %v254, %v253
      %v268 = vpack.c.b16 %v256, %v255
      %v269 = vpack.c.b16 %v258, %v257
      %v270 = vpack.c.b16 %v260, %v259
      %v271 = vpack.c.b16 %v262, %v261
      %v272 = vpack.c.b16 %v264, %v263
      %281 = vmatpush.bf16.msra.mxu0 %v272
      %282 = vmatpush.bf16.msra.mxu0 %v271
      %283 = vmatpush.bf16.msra.mxu0 %v270
      %284 = vmatpush.bf16.msra.mxu0 %v269
      %285 = vmatpush.bf16.msra.mxu0 %v268
      %286 = vmatpush.bf16.msra.mxu0 %v267
      %287 = vmatpush.bf16.msra.mxu0 %v266
      %288 = vmatpush.bf16.msra.mxu0 %v265
      %289 = vmatmul.bf16.gmra.mxu0 %v225
      %v290 = vpop.f32.mrf.mxu0
      %v291 = vadd.f32 0.0, %v290
      %v292 = vpop.f32.mrf.mxu0
      %v293 = vadd.f32 0.0, %v292
      %294 = vmatmul.bf16.gmra.mxu0 %v226
      %v295 = vpop.f32.mrf.mxu0
      %v296 = vadd.f32 0.0, %v295
      %v297 = vpop.f32.mrf.mxu0
      %v298 = vadd.f32 0.0, %v297
      %299 = vmatmul.bf16.gmra.mxu0 %v227
      %v300 = vpop.f32.mrf.mxu0
      %v301 = vadd.f32 0.0, %v300
      %v302 = vpop.f32.mrf.mxu0
      %v303 = vadd.f32 0.0, %v302
      %304 = vmatmul.bf16.gmra.mxu0 %v228
      %v305 = vpop.f32.mrf.mxu0
      %v306 = vadd.f32 0.0, %v305
      %v307 = vpop.f32.mrf.mxu0
      %v308 = vadd.f32 0.0, %v307
      %309 = vdwg.mxu0
      %v310 = vpack.c.bf16 %v291, %v291
      %v311 = vpack.c.bf16 %v293, %v293
      %v312 = vpack.c.bf16 %v296, %v296
      %v313 = vpack.c.bf16 %v298, %v298
      %v314 = vpack.c.bf16 %v301, %v301
      %v315 = vpack.c.bf16 %v303, %v303
      %v316 = vpack.c.bf16 %v306, %v306
      %v317 = vpack.c.bf16 %v308, %v308
      %318 = vst [vmem:[%s179] sm:$0xf] %v310
      %319 = vst [vmem:[%s179 + $0x4] sm:$0xf] %v311
      %320 = vst [vmem:[%s179 + $0x8] sm:$0xf] %v312
      %321 = vst [vmem:[%s179 + $0xc] sm:$0xf] %v313
      %322 = vst [vmem:[%s179 + $0x10] sm:$0xf] %v314
      %323 = vst [vmem:[%s179 + $0x14] sm:$0xf] %v315
      %324 = vst [vmem:[%s179 + $0x18] sm:$0xf] %v316
      %325 = vst [vmem:[%s179 + $0x1c] sm:$0xf] %v317
      %v326 = vadd.f32 %v291, %v293
      %v327 = vadd.f32 %v326, %v296
      %v328 = vadd.f32 %v327, %v298
      %v329 = vadd.f32 %v328, %v301
      %v330 = vadd.f32 %v329, %v303
      %v331 = vadd.f32 %v330, %v306
      %v332 = vadd.f32 %v331, %v308
      %v333 = vrot.slane %v332, 4
      %v334 = vadd.f32 %v332, %v333
      %v335 = vrot.slane %v334, 2
      %v336 = vadd.f32 %v334, %v335
      %v337 = vrot.slane %v336, 1
      %v338 = vadd.f32 %v336, %v337
      %339 = vst [vmem:[%s184] sm:$0x1] %v338
      %v340 = vmul.f32 %v291, %v291
      %v341 = vmul.f32 %v293, %v293
      %v342 = vmul.f32 %v296, %v296
      %v343 = vmul.f32 %v298, %v298
      %v344 = vmul.f32 %v301, %v301
      %v345 = vmul.f32 %v303, %v303
      %v346 = vmul.f32 %v306, %v306
      %v347 = vmul.f32 %v308, %v308
      %v348 = vadd.f32 %v340, %v341
      %v349 = vadd.f32 %v348, %v342
      %v350 = vadd.f32 %v349, %v343
      %v351 = vadd.f32 %v350, %v344
      %v352 = vadd.f32 %v351, %v345
      %v353 = vadd.f32 %v352, %v346
      %v354 = vadd.f32 %v353, %v347
      %v355 = vrot.slane %v354, 4
      %v356 = vadd.f32 %v354, %v355
      %v357 = vrot.slane %v356, 2
      %v358 = vadd.f32 %v356, %v357
      %v359 = vrot.slane %v358, 1
      %v360 = vadd.f32 %v358, %v359
      %361 = vst [vmem:[%s184 + $0x1] sm:$0x1] %v360
      %s362 = smul.u32 8, %s15
      %p363 = scmp.lt.s32.totalorder %s362, 15
      %s364 = scalar_select %p363, %s362, 15
      %s365 = smul.addr %s364, 4
      %s366 = scalar_lea.vmem %s2, %s365
      %p367 = scmp.lt.s32.totalorder %s15, 1
      %s368 = scalar_select %p367, %s15, 1
      %s369 = smul.addr %s368, 2
      %s370 = scalar_lea.vmem %s3, %s369
      // Predicated region
      $region29: #{bottleneck_forward.8} parent=27 // pred_check
        %p371 = pneg %p80
      $region30: #{bottleneck_forward.8} parent=27 // pred_check_branch
        %373 = sbr.rel (%p371) target = $region32
      $region31: #{bottleneck_forward.8} parent=27 // pred_region
        %s374 = smul.u32 8, %s15
      $region32: #{bottleneck_forward.8} parent=27 // pred_fallthru
        _
      // Predicated region
      $region33: #{bottleneck_forward.8} parent=27 // pred_check
        %p375 = pneg %p106
      $region34: #{bottleneck_forward.8} parent=27 // pred_check_branch
        %377 = sbr.rel (%p375) target = $region36
      $region35: #{bottleneck_forward.8} parent=27 // pred_region
        _
      $region36: #{bottleneck_forward.8} parent=27 // pred_fallthru
        _
    $region28: #{bottleneck_forward.8} parent=5 // pred_fallthru
      _
    %p378 = scmp.le.s32.totalorder 2, %s10
    // Predicated region
    $region37: #{bottleneck_forward.8} parent=5 // pred_check
      %p379 = pneg %p378
    $region38: #{bottleneck_forward.8} parent=5 // pred_check_branch
      %381 = sbr.rel (%p379) target = $region40
    $region39: #{bottleneck_forward.8} parent=5 // pred_region
      %s382 = ssub.s32 %s10, 2
      // Predicated region
      $region41: #{bottleneck_forward.8} parent=39 // pred_check
        %p383 = pneg %p86
      $region42: #{bottleneck_forward.8} parent=39 // pred_check_branch
        %385 = sbr.rel (%p383) target = $region44
      $region43: #{bottleneck_forward.8} parent=39 // pred_region
        %s386 = smul.u32 8, %s16
        %p387 = scmp.lt.s32.totalorder %s386, 15
        %s388 = scalar_select %p387, %s386, 15
        %s389 = smul.addr %s388, 4
        %s390 = scalar_lea.vmem %s2, %s389
      $region44: #{bottleneck_forward.8} parent=39 // pred_fallthru
        _
      // Predicated region
      $region45: #{bottleneck_forward.8} parent=39 // pred_check
        %p391 = pneg %p112
      $region46: #{bottleneck_forward.8} parent=39 // pred_check_branch
        %393 = sbr.rel (%p391) target = $region48
      $region47: #{bottleneck_forward.8} parent=39 // pred_region
        %p394 = scmp.lt.s32.totalorder %s16, 1
        %s395 = scalar_select %p394, %s16, 1
        %s396 = smul.addr %s395, 2
        %s397 = scalar_lea.vmem %s3, %s396
      $region48: #{bottleneck_forward.8} parent=39 // pred_fallthru
        _
    $region40: #{bottleneck_forward.8} parent=5 // pred_fallthru
      _
  $region6: #{bottleneck_forward.8} parent=0 // loop_footer
    %s14 = sadd.s32 1, %s10
  $region7: #{bottleneck_forward.8} parent=0 // loop_footer_branch
    %9 = sbr.rel target = $region3
  $region8: #{bottleneck_forward.8} parent=0 // loop_exit
    _

// kernel: bottleneck_forward.9
$region0: #{bottleneck_forward.9}
  #allocation0 [shape = 'u32[]', space=smem, size = 0x4, offset = 0x4, fixed_abs, tag = 'smem constant byte address 0x4 - core index']
  #allocation1 [shape = 'u32[72,128]{1,0:T(1,128)}', space=vmem, size = 0x9000, scoped, tag = 'internal scratch']
  %s0 = inlined_call_operand.vmem [shape: bf16[128,128], index: 0, kind: input, shape index: {}]
  %s1 = inlined_call_operand.vmem [shape: bf16[128,128], index: 1, kind: input, shape index: {}]
  %s2 = inlined_call_operand.vmem [shape: f32[1,128], index: 2, kind: input, shape index: {}]
  %s3 = inlined_call_operand.vmem [shape: f32[1,128], index: 3, kind: input, shape index: {}]
  %s4 = inlined_call_operand.vmem [shape: f32[1,128], index: 4, kind: input, shape index: {}]
  %s5 = inlined_call_operand.vmem [shape: f32[1,128], index: 5, kind: input, shape index: {}]
  %s6 = inlined_call_operand.vmem [shape: f32[128,128], index: 6, kind: output, shape index: {}]
  %s7 = sld [smem:[#allocation0]]
  $region57: #{bottleneck_forward.9} parent=0
    _
  %s9 = ssub.s32 1, %s7
  %s10 = scalar_select 0, %s9, %s7
  loop: start=0, step=1, limit=4
  $region2: #{bottleneck_forward.9} parent=0 // loop_pre_header
    _
  $region3: #{bottleneck_forward.9} parent=0 // loop_header
    %s12 = sphi 0, %s16
    %p13 = scmp.ge.s32.totalorder %s12, 4
    %s22 = sphi 0, %s24
    %s25 = sphi 0, %s22
    %s26 = sphi 0, %s25
    %s42 = sphi 0, %s26
    %s48 = sphi 0, %s50
    %s51 = sphi 0, %s48
    %s52 = sphi 0, %s51
    %s68 = sphi 0, %s52
    %s72 = sphi 0, %s72
    %s74 = sphi 0, %s72
    %s75 = sphi 0, %s74
    %s89 = sphi 0, %s75
    %s93 = sphi 0, %s93
    %s95 = sphi 0, %s93
    %s96 = sphi 0, %s95
    %s110 = sphi 0, %s96
    %s114 = sphi 0, %s114
    %s116 = sphi 0, %s114
    %s117 = sphi 0, %s116
    %s131 = sphi 0, %s117
    %s135 = sphi 0, %s135
    %s137 = sphi 0, %s135
    %s138 = sphi 0, %s137
    %s152 = sphi 0, %s138
    %s158 = sphi 0, %s160
    %s161 = sphi 0, %s158
    %s162 = sphi 0, %s161
    %s178 = sphi 0, %s162
  $region4: #{bottleneck_forward.9} parent=0 // loop_header_branch
    %15 = sbr.rel (%p13) target = $region8
  $region5: #{bottleneck_forward.9} parent=0 // loop_body
    %s17 = ssub.s32 %s12, 1
    %s18 = ssub.s32 %s12, 2
    %s19 = sadd.s32 %s12, 1
    %s20 = ssub.s32 %s12, %s19
    %p21 = scmp.eq.s32.totalorder %s20, 0
    %s23 = sadd.s32 %s22, 1
    %s24 = scalar_select %p21, %s22, %s23
    %p27 = pneg %p21
    %p28 = scmp.eq.s32.totalorder %s12, 1
    %p29 = por %p27, %p28
    %p30 = scmp.ne.s32.totalorder %s22, %s25
    %p31 = scmp.eq.s32.totalorder %s12, 0
    %p32 = por %p30, %p31
    %p33 = scmp.ne.s32.totalorder %s22, %s25
    %p34 = scmp.eq.s32.totalorder %s17, 1
    %p35 = por %p33, %p34
    %p36 = scmp.ne.s32.totalorder %s25, %s26
    %p37 = scmp.eq.s32.totalorder %s17, 0
    %p38 = por %p36, %p37
    %p39 = scmp.ne.s32.totalorder %s25, %s26
    %p40 = scmp.eq.s32.totalorder %s18, 1
    %p41 = por %p39, %p40
    %p43 = scmp.ne.s32.totalorder %s26, %s42
    %p44 = scmp.eq.s32.totalorder %s18, 0
    %p45 = por %p43, %p44
    %s46 = ssub.s32 %s12, %s19
    %p47 = scmp.eq.s32.totalorder %s46, 0
    %s49 = sadd.s32 %s48, 1
    %s50 = scalar_select %p47, %s48, %s49
    %p53 = pneg %p47
    %p54 = scmp.eq.s32.totalorder %s12, 1
    %p55 = por %p53, %p54
    %p56 = scmp.ne.s32.totalorder %s48, %s51
    %p57 = scmp.eq.s32.totalorder %s12, 0
    %p58 = por %p56, %p57
    %p59 = scmp.ne.s32.totalorder %s48, %s51
    %p60 = scmp.eq.s32.totalorder %s17, 1
    %p61 = por %p59, %p60
    %p62 = scmp.ne.s32.totalorder %s51, %s52
    %p63 = scmp.eq.s32.totalorder %s17, 0
    %p64 = por %p62, %p63
    %p65 = scmp.ne.s32.totalorder %s51, %s52
    %p66 = scmp.eq.s32.totalorder %s18, 1
    %p67 = por %p65, %p66
    %p69 = scmp.ne.s32.totalorder %s52, %s68
    %p70 = scmp.eq.s32.totalorder %s18, 0
    %p71 = por %p69, %p70
    %s73 = sadd.s32 %s72, 1
    %p76 = scmp.eq.s32.totalorder %s12, 1
    %p77 = scmp.ne.s32.totalorder %s72, %s74
    %p78 = scmp.eq.s32.totalorder %s12, 0
    %p79 = por %p77, %p78
    %p80 = scmp.ne.s32.totalorder %s72, %s74
    %p81 = scmp.eq.s32.totalorder %s17, 1
    %p82 = por %p80, %p81
    %p83 = scmp.ne.s32.totalorder %s74, %s75
    %p84 = scmp.eq.s32.totalorder %s17, 0
    %p85 = por %p83, %p84
    %p86 = scmp.ne.s32.totalorder %s74, %s75
    %p87 = scmp.eq.s32.totalorder %s18, 1
    %p88 = por %p86, %p87
    %p90 = scmp.ne.s32.totalorder %s75, %s89
    %p91 = scmp.eq.s32.totalorder %s18, 0
    %p92 = por %p90, %p91
    %s94 = sadd.s32 %s93, 1
    %p97 = scmp.eq.s32.totalorder %s12, 1
    %p98 = scmp.ne.s32.totalorder %s93, %s95
    %p99 = scmp.eq.s32.totalorder %s12, 0
    %p100 = por %p98, %p99
    %p101 = scmp.ne.s32.totalorder %s93, %s95
    %p102 = scmp.eq.s32.totalorder %s17, 1
    %p103 = por %p101, %p102
    %p104 = scmp.ne.s32.totalorder %s95, %s96
    %p105 = scmp.eq.s32.totalorder %s17, 0
    %p106 = por %p104, %p105
    %p107 = scmp.ne.s32.totalorder %s95, %s96
    %p108 = scmp.eq.s32.totalorder %s18, 1
    %p109 = por %p107, %p108
    %p111 = scmp.ne.s32.totalorder %s96, %s110
    %p112 = scmp.eq.s32.totalorder %s18, 0
    %p113 = por %p111, %p112
    %s115 = sadd.s32 %s114, 1
    %p118 = scmp.eq.s32.totalorder %s12, 1
    %p119 = scmp.ne.s32.totalorder %s114, %s116
    %p120 = scmp.eq.s32.totalorder %s12, 0
    %p121 = por %p119, %p120
    %p122 = scmp.ne.s32.totalorder %s114, %s116
    %p123 = scmp.eq.s32.totalorder %s17, 1
    %p124 = por %p122, %p123
    %p125 = scmp.ne.s32.totalorder %s116, %s117
    %p126 = scmp.eq.s32.totalorder %s17, 0
    %p127 = por %p125, %p126
    %p128 = scmp.ne.s32.totalorder %s116, %s117
    %p129 = scmp.eq.s32.totalorder %s18, 1
    %p130 = por %p128, %p129
    %p132 = scmp.ne.s32.totalorder %s117, %s131
    %p133 = scmp.eq.s32.totalorder %s18, 0
    %p134 = por %p132, %p133
    %s136 = sadd.s32 %s135, 1
    %p139 = scmp.eq.s32.totalorder %s12, 1
    %p140 = scmp.ne.s32.totalorder %s135, %s137
    %p141 = scmp.eq.s32.totalorder %s12, 0
    %p142 = por %p140, %p141
    %p143 = scmp.ne.s32.totalorder %s135, %s137
    %p144 = scmp.eq.s32.totalorder %s17, 1
    %p145 = por %p143, %p144
    %p146 = scmp.ne.s32.totalorder %s137, %s138
    %p147 = scmp.eq.s32.totalorder %s17, 0
    %p148 = por %p146, %p147
    %p149 = scmp.ne.s32.totalorder %s137, %s138
    %p150 = scmp.eq.s32.totalorder %s18, 1
    %p151 = por %p149, %p150
    %p153 = scmp.ne.s32.totalorder %s138, %s152
    %p154 = scmp.eq.s32.totalorder %s18, 0
    %p155 = por %p153, %p154
    %s156 = ssub.s32 %s12, %s19
    %p157 = scmp.eq.s32.totalorder %s156, 0
    %s159 = sadd.s32 %s158, 1
    %s160 = scalar_select %p157, %s158, %s159
    %p163 = pneg %p157
    %p164 = scmp.eq.s32.totalorder %s12, 1
    %p165 = por %p163, %p164
    %p166 = scmp.ne.s32.totalorder %s158, %s161
    %p167 = scmp.eq.s32.totalorder %s12, 0
    %p168 = por %p166, %p167
    %p169 = scmp.ne.s32.totalorder %s158, %s161
    %p170 = scmp.eq.s32.totalorder %s17, 1
    %p171 = por %p169, %p170
    %p172 = scmp.ne.s32.totalorder %s161, %s162
    %p173 = scmp.eq.s32.totalorder %s17, 0
    %p174 = por %p172, %p173
    %p175 = scmp.ne.s32.totalorder %s161, %s162
    %p176 = scmp.eq.s32.totalorder %s18, 1
    %p177 = por %p175, %p176
    %p179 = scmp.ne.s32.totalorder %s162, %s178
    %p180 = scmp.eq.s32.totalorder %s18, 0
    %p181 = por %p179, %p180
    %p182 = scmp.le.s32.totalorder 1, %s12
    %p183 = scmp.lt.s32.totalorder %s12, 3
    %p184 = pnand %p182, %p183
    %p185 = pneg %p184
    // Predicated region
    $region9: #{bottleneck_forward.9} parent=5 // pred_check
      _
    $region10: #{bottleneck_forward.9} parent=5 // pred_check_branch
      %187 = sbr.rel (%p184) target = $region12
    $region11: #{bottleneck_forward.9} parent=5 // pred_region
      %s188 = ssub.s32 %s12, 1
      // Predicated region
      $region13: #{bottleneck_forward.9} parent=11 // pred_check
        %p189 = pneg %p85
      $region14: #{bottleneck_forward.9} parent=11 // pred_check_branch
        %191 = sbr.rel (%p189) target = $region16
      $region15: #{bottleneck_forward.9} parent=11 // pred_region
        _
      $region16: #{bottleneck_forward.9} parent=11 // pred_fallthru
        _
      // Predicated region
      $region17: #{bottleneck_forward.9} parent=11 // pred_check
        %p192 = pneg %p106
      $region18: #{bottleneck_forward.9} parent=11 // pred_check_branch
        %194 = sbr.rel (%p192) target = $region20
      $region19: #{bottleneck_forward.9} parent=11 // pred_region
        _
      $region20: #{bottleneck_forward.9} parent=11 // pred_fallthru
        _
      // Predicated region
      $region21: #{bottleneck_forward.9} parent=11 // pred_check
        %p195 = pneg %p127
      $region22: #{bottleneck_forward.9} parent=11 // pred_check_branch
        %197 = sbr.rel (%p195) target = $region24
      $region23: #{bottleneck_forward.9} parent=11 // pred_region
        _
      $region24: #{bottleneck_forward.9} parent=11 // pred_fallthru
        _
      // Predicated region
      $region25: #{bottleneck_forward.9} parent=11 // pred_check
        %p198 = pneg %p148
      $region26: #{bottleneck_forward.9} parent=11 // pred_check_branch
        %200 = sbr.rel (%p198) target = $region28
      $region27: #{bottleneck_forward.9} parent=11 // pred_region
        _
      $region28: #{bottleneck_forward.9} parent=11 // pred_fallthru
        _
    $region12: #{bottleneck_forward.9} parent=5 // pred_fallthru
      _
    %p201 = scmp.lt.s32.totalorder %s12, 2
    // Predicated region
    $region29: #{bottleneck_forward.9} parent=5 // pred_check
      %p202 = pneg %p201
    $region30: #{bottleneck_forward.9} parent=5 // pred_check_branch
      %204 = sbr.rel (%p202) target = $region32
    $region31: #{bottleneck_forward.9} parent=5 // pred_region
      // Predicated region
      $region33: #{bottleneck_forward.9} parent=31 // pred_check
        %p205 = pneg %p32
      $region34: #{bottleneck_forward.9} parent=31 // pred_check_branch
        %207 = sbr.rel (%p205) target = $region36
      $region35: #{bottleneck_forward.9} parent=31 // pred_region
        %s208 = smul.u32 8, %s12
        %p209 = scmp.lt.s32.totalorder %s208, 15
        %s210 = scalar_select %p209, %s208, 15
        %s211 = smul.addr %s210, 4
        %s212 = scalar_lea.vmem %s0, %s211
        %s213 = smul.u32 8, %s12
      $region36: #{bottleneck_forward.9} parent=31 // pred_fallthru
        _
      // Predicated region
      $region37: #{bottleneck_forward.9} parent=31 // pred_check
        %p214 = pneg %p58
      $region38: #{bottleneck_forward.9} parent=31 // pred_check_branch
        %216 = sbr.rel (%p214) target = $region40
      $region39: #{bottleneck_forward.9} parent=31 // pred_region
        %s217 = smul.u32 8, %s12
        %p218 = scmp.lt.s32.totalorder %s217, 15
        %s219 = scalar_select %p218, %s217, 15
        %s220 = smul.addr %s219, 4
        %s221 = scalar_lea.vmem %s1, %s220
        %s222 = smul.u32 8, %s12
      $region40: #{bottleneck_forward.9} parent=31 // pred_fallthru
        _
    $region32: #{bottleneck_forward.9} parent=5 // pred_fallthru
      _
    %p223 = scmp.le.s32.totalorder 1, %s12
    %p224 = scmp.lt.s32.totalorder %s12, 3
    %p225 = pnand %p223, %p224
    %p226 = pneg %p225
    // Predicated region
    $region41: #{bottleneck_forward.9} parent=5 // pred_check
      _
    $region42: #{bottleneck_forward.9} parent=5 // pred_check_branch
      %228 = sbr.rel (%p225) target = $region44
    $region43: #{bottleneck_forward.9} parent=5 // pred_region
      %s229 = ssub.s32 %s12, 1
      %s230 = smul.u32 8, %s17
      %p231 = scmp.lt.s32.totalorder %s230, 15
      %s232 = scalar_select %p231, %s230, 15
      %s233 = smul.addr %s232, 4
      %s234 = scalar_lea.vmem %s0, %s233
      %p235 = pneg %p38
      %p236 = pneg %p35
      %s237 = smul.u32 8, %s17
      %p238 = scmp.lt.s32.totalorder %s237, 15
      %s239 = scalar_select %p238, %s237, 15
      %s240 = smul.addr %s239, 4
      %s241 = scalar_lea.vmem %s1, %s240
      %p242 = pneg %p64
      %p243 = pneg %p61
      %p244 = pneg %p85
      %p245 = pneg %p82
      %p246 = pneg %p106
      %p247 = pneg %p103
      %p248 = pneg %p127
      %p249 = pneg %p124
      %p250 = pneg %p148
      %p251 = pneg %p145
      %p252 = pneg %p174
      %p253 = pneg %p171
      %s254 = smul.u32 8, %s17
      %p255 = scmp.lt.s32.totalorder %s254, 15
      %s256 = scalar_select %p255, %s254, 15
      %s257 = smul.addr %s256, 8
      %s258 = scalar_lea.vmem %s6, %s257
      %s259 = smul.u32 8, %s17
      %p260 = scmp.lt.s32.totalorder %s259, 15
      %s261 = scalar_select %p260, %s259, 15
      %s262 = smul.addr %s261, 4
      %s263 = scalar_lea.vmem %s0, %s262
      %s264 = smul.u32 8, %s17
      %s265 = smul.u32 8, %s17
      %p266 = scmp.lt.s32.totalorder %s265, 15
      %s267 = scalar_select %p266, %s265, 15
      %s268 = smul.addr %s267, 4
      %s269 = scalar_lea.vmem %s1, %s268
      %s270 = smul.u32 8, %s17
      %s271 = smul.u32 8, %s17
      %p272 = scmp.lt.s32.totalorder %s271, 15
      %s273 = scalar_select %p272, %s271, 15
      %s274 = smul.addr %s273, 8
      %s275 = scalar_lea.vmem %s6, %s274
      %s276 = smul.u32 8, %s17
      %v277 = vld [vmem:[%s263] sm:$0xf]
      %v278 = vld [vmem:[%s263 + $0x4] sm:$0xf]
      %v279 = vld [vmem:[%s263 + $0x8] sm:$0xf]
      %v280 = vld [vmem:[%s263 + $0xc] sm:$0xf]
      %v281 = vld [vmem:[%s263 + $0x10] sm:$0xf]
      %v282 = vld [vmem:[%s263 + $0x14] sm:$0xf]
      %v283 = vld [vmem:[%s263 + $0x18] sm:$0xf]
      %v284 = vld [vmem:[%s263 + $0x1c] sm:$0xf]
      %v285 = vunpack.c.l.bf16 %v277
      %v286 = vunpack.c.l.bf16 %v278
      %v287 = vunpack.c.l.bf16 %v279
      %v288 = vunpack.c.l.bf16 %v280
      %v289 = vunpack.c.l.bf16 %v281
      %v290 = vunpack.c.l.bf16 %v282
      %v291 = vunpack.c.l.bf16 %v283
      %v292 = vunpack.c.l.bf16 %v284
      %v293 = vld [vmem:[%s2] sm:$0x1]
      %v295 = vperm.slane %v293, 0
      %v297 = vmul.f32 %v285, %v295
      %v298 = vmul.f32 %v286, %v295
      %v299 = vmul.f32 %v287, %v295
      %v300 = vmul.f32 %v288, %v295
      %v301 = vmul.f32 %v289, %v295
      %v302 = vmul.f32 %v290, %v295
      %v303 = vmul.f32 %v291, %v295
      %v304 = vmul.f32 %v292, %v295
      %v305 = vld [vmem:[%s3] sm:$0x1]
      %v307 = vperm.slane %v305, 0
      %v309 = vadd.f32 %v297, %v307
      %v310 = vadd.f32 %v298, %v307
      %v311 = vadd.f32 %v299, %v307
      %v312 = vadd.f32 %v300, %v307
      %v313 = vadd.f32 %v301, %v307
      %v314 = vadd.f32 %v302, %v307
      %v315 = vadd.f32 %v303, %v307
      %v316 = vadd.f32 %v304, %v307
      %v317 = vld [vmem:[%s269] sm:$0xf]
      %v318 = vld [vmem:[%s269 + $0x4] sm:$0xf]
      %v319 = vld [vmem:[%s269 + $0x8] sm:$0xf]
      %v320 = vld [vmem:[%s269 + $0xc] sm:$0xf]
      %v321 = vld [vmem:[%s269 + $0x10] sm:$0xf]
      %v322 = vld [vmem:[%s269 + $0x14] sm:$0xf]
      %v323 = vld [vmem:[%s269 + $0x18] sm:$0xf]
      %v324 = vld [vmem:[%s269 + $0x1c] sm:$0xf]
      %v325 = vunpack.c.l.bf16 %v317
      %v326 = vunpack.c.l.bf16 %v318
      %v327 = vunpack.c.l.bf16 %v319
      %v328 = vunpack.c.l.bf16 %v320
      %v329 = vunpack.c.l.bf16 %v321
      %v330 = vunpack.c.l.bf16 %v322
      %v331 = vunpack.c.l.bf16 %v323
      %v332 = vunpack.c.l.bf16 %v324
      %v333 = vld [vmem:[%s4] sm:$0x1]
      %v335 = vperm.slane %v333, 0
      %v337 = vmul.f32 %v325, %v335
      %v338 = vmul.f32 %v326, %v335
      %v339 = vmul.f32 %v327, %v335
      %v340 = vmul.f32 %v328, %v335
      %v341 = vmul.f32 %v329, %v335
      %v342 = vmul.f32 %v330, %v335
      %v343 = vmul.f32 %v331, %v335
      %v344 = vmul.f32 %v332, %v335
      %v345 = vld [vmem:[%s5] sm:$0x1]
      %v347 = vperm.slane %v345, 0
      %v349 = vadd.f32 %v337, %v347
      %v350 = vadd.f32 %v338, %v347
      %v351 = vadd.f32 %v339, %v347
      %v352 = vadd.f32 %v340, %v347
      %v353 = vadd.f32 %v341, %v347
      %v354 = vadd.f32 %v342, %v347
      %v355 = vadd.f32 %v343, %v347
      %v356 = vadd.f32 %v344, %v347
      %v357 = vadd.f32 %v309, %v349
      %v358 = vadd.f32 %v310, %v350
      %v359 = vadd.f32 %v311, %v351
      %v360 = vadd.f32 %v312, %v352
      %v361 = vadd.f32 %v313, %v353
      %v362 = vadd.f32 %v314, %v354
      %v363 = vadd.f32 %v315, %v355
      %v364 = vadd.f32 %v316, %v356
      %v365 = vmax.f32 %v357, 0.0
      %v366 = vmax.f32 %v358, 0.0
      %v367 = vmax.f32 %v359, 0.0
      %v368 = vmax.f32 %v360, 0.0
      %v369 = vmax.f32 %v361, 0.0
      %v370 = vmax.f32 %v362, 0.0
      %v371 = vmax.f32 %v363, 0.0
      %v372 = vmax.f32 %v364, 0.0
      %373 = vst [vmem:[%s275] sm:$0xff] %v365
      %374 = vst [vmem:[%s275 + $0x8] sm:$0xff] %v366
      %375 = vst [vmem:[%s275 + $0x10] sm:$0xff] %v367
      %376 = vst [vmem:[%s275 + $0x18] sm:$0xff] %v368
      %377 = vst [vmem:[%s275 + $0x20] sm:$0xff] %v369
      %378 = vst [vmem:[%s275 + $0x28] sm:$0xff] %v370
      %379 = vst [vmem:[%s275 + $0x30] sm:$0xff] %v371
      %380 = vst [vmem:[%s275 + $0x38] sm:$0xff] %v372
      %s381 = smul.u32 8, %s17
      %p382 = scmp.lt.s32.totalorder %s381, 15
      %s383 = scalar_select %p382, %s381, 15
      %s384 = smul.addr %s383, 8
      %s385 = scalar_lea.vmem %s6, %s384
      // Predicated region
      $region45: #{bottleneck_forward.9} parent=43 // pred_check
        %p386 = pneg %p171
      $region46: #{bottleneck_forward.9} parent=43 // pred_check_branch
        %388 = sbr.rel (%p386) target = $region48
      $region47: #{bottleneck_forward.9} parent=43 // pred_region
        %s389 = smul.u32 8, %s17
      $region48: #{bottleneck_forward.9} parent=43 // pred_fallthru
        _
    $region44: #{bottleneck_forward.9} parent=5 // pred_fallthru
      _
    %p390 = scmp.le.s32.totalorder 2, %s12
    // Predicated region
    $region49: #{bottleneck_forward.9} parent=5 // pred_check
      %p391 = pneg %p390
    $region50: #{bottleneck_forward.9} parent=5 // pred_check_branch
      %393 = sbr.rel (%p391) target = $region52
    $region51: #{bottleneck_forward.9} parent=5 // pred_region
      %s394 = ssub.s32 %s12, 2
      // Predicated region
      $region53: #{bottleneck_forward.9} parent=51 // pred_check
        %p395 = pneg %p177
      $region54: #{bottleneck_forward.9} parent=51 // pred_check_branch
        %397 = sbr.rel (%p395) target = $region56
      $region55: #{bottleneck_forward.9} parent=51 // pred_region
        %s398 = smul.u32 8, %s18
        %p399 = scmp.lt.s32.totalorder %s398, 15
        %s400 = scalar_select %p399, %s398, 15
        %s401 = smul.addr %s400, 8
        %s402 = scalar_lea.vmem %s6, %s401
      $region56: #{bottleneck_forward.9} parent=51 // pred_fallthru
        _
    $region52: #{bottleneck_forward.9} parent=5 // pred_fallthru
      _
  $region6: #{bottleneck_forward.9} parent=0 // loop_footer
    %s16 = sadd.s32 1, %s12
  $region7: #{bottleneck_forward.9} parent=0 // loop_footer_branch
    %11 = sbr.rel target = $region3
  $region8: #{bottleneck_forward.9} parent=0 // loop_exit
    _

</llo_original>
